<compile_context>
chip_gen: v6e
topology: v6e:2x2x1
jax: 0.10.0
libtpu: 0.0.40
codegen_flags: <defaults>
</compile_context>

<pallas_src>
import jax
import jax.numpy as jnp
from jax.experimental import pallas as pl
from jax.experimental.pallas import tpu as pltpu

# Small, shape-consistent sizes (seq_len, batch, input_size, hidden_size, layers)
T, B, D_IN, H, L = 6, 8, 64, 128, 2
D_PAD = 128             # x padded to a full lane tile -> 128-aligned [x, h] concat
D_OUT = 128             # lane-dense recons output width (sliced to D_IN outside)
G = 4 * H               # LSTM gate width
W_DTYPE = jnp.bfloat16  # LSTM / recons weight storage (f32 accumulate + gates)


# ----------------------------------------------------------------------------
# LSTM cell helpers.  Gate layout is [i, f, o | g] so each cell does a single
# sigmoid over the first 3H columns and a single tanh over the last H.
# `w` may be a Ref (kernel) or an array (reference); `b` is pre-broadcast f32.
# ----------------------------------------------------------------------------
def _gates_to_hc(gates, c_prev):
    ifo = jax.nn.sigmoid(gates[:, :3 * H])
    g = jnp.tanh(gates[:, 3 * H:])
    c = ifo[:, H:2 * H] * c_prev + ifo[:, 0:H] * g
    h = ifo[:, 2 * H:3 * H] * jnp.tanh(c)
    return h, c


def _cell(x, h_prev, c_prev, w, b):
    xh = jnp.concatenate([x, h_prev], axis=-1).astype(W_DTYPE)       # (B, 2*128)
    gates = jnp.dot(xh, w[...], preferred_element_type=jnp.float32) + b
    return _gates_to_hc(gates, c_prev)


def _cell_h_only(h_prev, c_prev, w_hh, b):
    # x_prev == 0 case: only the Whh half of the stacked weight contributes.
    gates = jnp.dot(h_prev.astype(W_DTYPE), w_hh,
                    preferred_element_type=jnp.float32) + b
    return _gates_to_hc(gates, c_prev)


# ----------------------------------------------------------------------------
# Single fused VAE kernel (no grid): encoder -> reparameterize -> decoder
# ----------------------------------------------------------------------------
def vae_kernel(x_ref, eps_ref,
               we0_ref, be0_ref, we1_ref, be1_ref,
               wmv_ref, bmv_ref,
               wd0_hbm, bd0_ref, wd1_hbm, bd1_ref,
               wrec_hbm, brec_ref,
               xhat_ref, mlv_ref,
               wd0_v, wd1_v, wrec_v, dma_sem):
    f32 = jnp.float32

    # ---- start decoder-weight DMAs; they overlap the encoder recurrence ----
    cp_wd0 = pltpu.make_async_copy(wd0_hbm, wd0_v, dma_sem.at[0])
    cp_wd1 = pltpu.make_async_copy(wd1_hbm, wd1_v, dma_sem.at[1])
    cp_wrec = pltpu.make_async_copy(wrec_hbm, wrec_v, dma_sem.at[2])
    cp_wd0.start()
    cp_wd1.start()
    cp_wrec.start()

    # ---- hoisted bias broadcasts (emitted once, not per unrolled step) -----
    be0 = jnp.broadcast_to(be0_ref[...], (B, G))
    be1 = jnp.broadcast_to(be1_ref[...], (B, G))
    bd0 = jnp.broadcast_to(bd0_ref[...], (B, G))
    bd1 = jnp.broadcast_to(bd1_ref[...], (B, G))

    # ---- encoder eLSTM over T steps (state carried in registers) -----------
    h0 = jnp.zeros((B, H), f32)
    c0 = jnp.zeros((B, H), f32)
    h1 = jnp.zeros((B, H), f32)
    c1 = jnp.zeros((B, H), f32)
    for t in range(T):                                   # static unroll, T small
        xt = x_ref[t * B:(t + 1) * B, :]                 # tile-aligned (8,128)
        h0, c0 = _cell(xt, h0, c0, we0_ref, be0)
        h1, c1 = _cell(h0, h1, c1, we1_ref, be1)

    # ---- mu / logvar + reparameterize, fused over layers (registers only) --
    h_cat = jnp.concatenate([h0, h1], axis=0)            # (L*B, H) = (16, 128)
    mlv = (jnp.dot(h_cat, wmv_ref[...], preferred_element_type=f32)
           + bmv_ref[...])                               # (L*B, 2H), f32 head
    mlv_ref[...] = mlv                                   # single dense store
    mu = mlv[:, 0:H]
    lv = mlv[:, H:2 * H]
    z = mu + eps_ref[...] * jnp.exp(0.5 * lv)            # (L*B, H)

    # ---- decoder dLSTM: h_0 := z, c_0 := encoder c_last --------------------
    cp_wd0.wait()
    cp_wd1.wait()
    hd0, cd0 = z[0:B, :], c0
    hd1, cd1 = z[B:2 * B, :], c1

    # t = 0: torch.zeros first input -> skip the dead half of the contraction
    hd0, cd0 = _cell_h_only(hd0, cd0, wd0_v[H:, :], bd0)
    hd1, cd1 = _cell(hd0, hd1, cd1, wd1_v, bd1)
    outs = [hd1]
    x_prev = hd1
    for t in range(1, T):
        hd0, cd0 = _cell(x_prev, hd0, cd0, wd0_v, bd0)
        hd1, cd1 = _cell(hd0, hd1, cd1, wd1_v, bd1)
        x_prev = hd1
        outs.append(hd1)

    # ---- batched `recons` Linear over all T*B rows; torch.flip is a free
    # trace-time list reversal; single lane-dense store of the whole slab ----
    h_dec = jnp.concatenate(outs[::-1], axis=0).astype(W_DTYPE)      # (T*B, H)
    cp_wrec.wait()
    xhat_ref[...] = (jnp.dot(h_dec, wrec_v[...], preferred_element_type=f32)
                     + brec_ref[...])


def vae_forward(x, params, eps):
    """x: (T, B, D_IN), eps: (L, B, H) -> x_hat (T,B,D_IN), (mu, logvar) (L,B,H)."""
    x_pad = jnp.pad(x, ((0, 0), (0, 0), (0, D_PAD - D_IN))).reshape(T * B, D_PAD)
    eps2 = eps.reshape(L * B, H)
    p = params
    vmem = pl.BlockSpec(memory_space=pltpu.MemorySpace.VMEM)
    hbm = pl.BlockSpec(memory_space=pl.ANY)
    xhat_pad, mlv = pl.pallas_call(
        vae_kernel,
        out_shape=(jax.ShapeDtypeStruct((T * B, D_OUT), jnp.float32),
                   jax.ShapeDtypeStruct((L * B, 2 * H), jnp.float32)),
        in_specs=[vmem, vmem,                 # x, eps
                  vmem, vmem, vmem, vmem,     # we0, be0, we1, be1
                  vmem, vmem,                 # wmv, bmv
                  hbm, vmem,                  # wd0 (manual DMA), bd0
                  hbm, vmem,                  # wd1 (manual DMA), bd1
                  hbm, vmem],                 # wrec (manual DMA), brec
        out_specs=(vmem, vmem),
        scratch_shapes=[pltpu.VMEM((2 * H, G), W_DTYPE),   # wd0 landing buffer
                        pltpu.VMEM((2 * H, G), W_DTYPE),   # wd1 landing buffer
                        pltpu.VMEM((H, D_OUT), W_DTYPE),   # wrec landing buffer
                        pltpu.SemaphoreType.DMA((3,))],
    )(x_pad, eps2,
      p["we0"], p["be0"], p["we1"], p["be1"],
      p["wmv"], p["bmv"],
      p["wd0"], p["bd0"], p["wd1"], p["bd1"],
      p["wrec"], p["brec"])
    x_hat = xhat_pad[:, :D_IN].reshape(T, B, D_IN)
    mu = mlv[:, :H].reshape(L, B, H)
    lv = mlv[:, H:].reshape(L, B, H)
    return x_hat, (mu, lv)


# ----------------------------------------------------------------------------
# Pure-JAX reference (same weights; correctness check only)
# ----------------------------------------------------------------------------
def _ref_vae(x, p, eps):
    f32 = jnp.float32
    x_pad = jnp.pad(x, ((0, 0), (0, 0), (0, D_PAD - D_IN)))

    h0 = jnp.zeros((B, H), f32)
    c0 = jnp.zeros((B, H), f32)
    h1 = jnp.zeros((B, H), f32)
    c1 = jnp.zeros((B, H), f32)
    for t in range(T):
        h0, c0 = _cell(x_pad[t], h0, c0, p["we0"], p["be0"])
        h1, c1 = _cell(h0, h1, c1, p["we1"], p["be1"])

    h_cat = jnp.concatenate([h0, h1], axis=0)                     # (L*B, H)
    mlv = jnp.dot(h_cat, p["wmv"], preferred_element_type=f32) + p["bmv"]
    mu, lv = mlv[:, :H], mlv[:, H:]
    z = mu + eps.reshape(L * B, H) * jnp.exp(0.5 * lv)

    hd0, hd1 = z[:B], z[B:]
    cd0, cd1 = c0, c1
    x_prev = jnp.zeros((B, H), f32)
    outs = []
    for t in range(T):
        hd0, cd0 = _cell(x_prev, hd0, cd0, p["wd0"], p["bd0"])
        hd1, cd1 = _cell(hd0, hd1, cd1, p["wd1"], p["bd1"])
        x_prev = hd1
        outs.append(jnp.dot(hd1.astype(W_DTYPE), p["wrec"],
                            preferred_element_type=f32) + p["brec"])
    x_hat = jnp.flip(jnp.stack(outs, axis=0), axis=0)[:, :, :D_IN]
    return x_hat, (mu.reshape(L, B, H), lv.reshape(L, B, H))


# ----------------------------------------------------------------------------
def init_params(key):
    bound = 1.0 / (H ** 0.5)
    names_shapes = [
        ("wih0", (D_IN, G)), ("whh0", (H, G)), ("be0", (1, G)),      # enc layer 0
        ("we1", (2 * H, G)), ("be1", (1, G)),                        # enc layer 1
        ("wmv", (H, 2 * H)), ("bmv", (1, 2 * H)),                    # [mu ; logvar]
        ("wd0", (2 * H, G)), ("bd0", (1, G)),                        # dec layer 0
        ("wd1", (2 * H, G)), ("bd1", (1, G)),                        # dec layer 1
        ("wrec", (H, D_IN)), ("brec", (1, D_IN)),                    # recons
    ]
    keys = jax.random.split(key, len(names_shapes))
    raw = {n: jax.random.uniform(kk, s, jnp.float32, -bound, bound)
           for kk, (n, s) in zip(keys, names_shapes)}
    # encoder layer-0 fused weight: [Wih ; zero rows for the x lane-padding ; Whh]
    we0 = jnp.concatenate(
        [raw["wih0"], jnp.zeros((D_PAD - D_IN, G), jnp.float32), raw["whh0"]],
        axis=0)
    # lane-dense recons head: zero-pad output columns D_IN -> D_OUT
    wrec = jnp.pad(raw["wrec"], ((0, 0), (0, D_OUT - D_IN)))
    brec = jnp.pad(raw["brec"], ((0, 0), (0, D_OUT - D_IN)))
    return {
        "we0": we0.astype(W_DTYPE),          "be0": raw["be0"],
        "we1": raw["we1"].astype(W_DTYPE),   "be1": raw["be1"],
        "wmv": raw["wmv"],                   "bmv": raw["bmv"],   # f32 VAE head
        "wd0": raw["wd0"].astype(W_DTYPE),   "bd0": raw["bd0"],
        "wd1": raw["wd1"].astype(W_DTYPE),   "bd1": raw["bd1"],
        "wrec": wrec.astype(W_DTYPE),        "brec": brec,
    }


if __name__ == "__main__":
    root = jax.random.PRNGKey(0)
    k_par, k_x, k_eps = jax.random.split(root, 3)
    params = init_params(k_par)
    x = jax.random.normal(k_x, (T, B, D_IN), jnp.float32)
    # torch.randn_like(std) noise supplied deterministically as an input
    eps = jax.random.normal(k_eps, (L, B, H), jnp.float32)

    fwd = jax.jit(vae_forward)
    x_hat, (h_mu, h_logvar) = fwd(x, params, eps)
    jax.block_until_ready((x_hat, h_mu, h_logvar))

    # sanity check against a pure-JAX reference using the same weights
    xr, (mr, lr) = _ref_vae(x, params, eps)
    assert x_hat.shape == (T, B, D_IN)
    assert h_mu.shape == (L, B, H) and h_logvar.shape == (L, B, H)
    assert jnp.allclose(x_hat, xr, atol=2e-3, rtol=2e-3)
    assert jnp.allclose(h_mu, mr, atol=2e-3, rtol=2e-3)
    assert jnp.allclose(h_logvar, lr, atol=2e-3, rtol=2e-3)

    print("KERNEL_OK")
</pallas_src>

<mosaic_0001>
module attributes {stable_mosaic.version = 11 : i64} {
  func.func @vae_kernel(%arg0: memref<48x128xf32, #tpu.memory_space<vmem>>, %arg1: memref<16x128xf32, #tpu.memory_space<vmem>>, %arg2: memref<256x512xbf16, #tpu.memory_space<vmem>>, %arg3: memref<1x512xf32, #tpu.memory_space<vmem>>, %arg4: memref<256x512xbf16, #tpu.memory_space<vmem>>, %arg5: memref<1x512xf32, #tpu.memory_space<vmem>>, %arg6: memref<128x256xf32, #tpu.memory_space<vmem>>, %arg7: memref<1x256xf32, #tpu.memory_space<vmem>>, %arg8: memref<256x512xbf16, #tpu.memory_space<any>>, %arg9: memref<1x512xf32, #tpu.memory_space<vmem>>, %arg10: memref<256x512xbf16, #tpu.memory_space<any>>, %arg11: memref<1x512xf32, #tpu.memory_space<vmem>>, %arg12: memref<128x128xbf16, #tpu.memory_space<any>>, %arg13: memref<1x128xf32, #tpu.memory_space<vmem>>, %arg14: memref<48x128xf32, #tpu.memory_space<vmem>>, %arg15: memref<16x256xf32, #tpu.memory_space<vmem>>, %arg16: memref<256x512xbf16, #tpu.memory_space<vmem>>, %arg17: memref<256x512xbf16, #tpu.memory_space<vmem>>, %arg18: memref<128x128xbf16, #tpu.memory_space<vmem>>, %arg19: memref<3x!tpu.dma_semaphore, #tpu.memory_space<semaphore_mem>>) attributes {dimension_semantics = [], scalar_prefetch = 0 : i64, scratch_operands = 4 : i64, tpu.core_type = #tpu.core_type<tc>} {
    %c0_i32 = arith.constant 0 : i32
    %0 = tpu.memref_slice %arg19[%c0_i32] : memref<3x!tpu.dma_semaphore, #tpu.memory_space<semaphore_mem>> -> memref<1x!tpu.dma_semaphore, #tpu.memory_space<semaphore_mem>>
    %1 = tpu.memref_squeeze %0 : memref<1x!tpu.dma_semaphore, #tpu.memory_space<semaphore_mem>> -> memref<!tpu.dma_semaphore, #tpu.memory_space<semaphore_mem>>
    tpu.enqueue_dma source(%arg8 : memref<256x512xbf16, #tpu.memory_space<any>>) target(%arg16 : memref<256x512xbf16, #tpu.memory_space<vmem>>) target_semaphore(%1 : memref<!tpu.dma_semaphore, #tpu.memory_space<semaphore_mem>>)
    %c1_i32 = arith.constant 1 : i32
    %2 = tpu.memref_slice %arg19[%c1_i32] : memref<3x!tpu.dma_semaphore, #tpu.memory_space<semaphore_mem>> -> memref<1x!tpu.dma_semaphore, #tpu.memory_space<semaphore_mem>>
    %3 = tpu.memref_squeeze %2 : memref<1x!tpu.dma_semaphore, #tpu.memory_space<semaphore_mem>> -> memref<!tpu.dma_semaphore, #tpu.memory_space<semaphore_mem>>
    tpu.enqueue_dma source(%arg10 : memref<256x512xbf16, #tpu.memory_space<any>>) target(%arg17 : memref<256x512xbf16, #tpu.memory_space<vmem>>) target_semaphore(%3 : memref<!tpu.dma_semaphore, #tpu.memory_space<semaphore_mem>>)
    %c2_i32 = arith.constant 2 : i32
    %4 = tpu.memref_slice %arg19[%c2_i32] : memref<3x!tpu.dma_semaphore, #tpu.memory_space<semaphore_mem>> -> memref<1x!tpu.dma_semaphore, #tpu.memory_space<semaphore_mem>>
    %5 = tpu.memref_squeeze %4 : memref<1x!tpu.dma_semaphore, #tpu.memory_space<semaphore_mem>> -> memref<!tpu.dma_semaphore, #tpu.memory_space<semaphore_mem>>
    tpu.enqueue_dma source(%arg12 : memref<128x128xbf16, #tpu.memory_space<any>>) target(%arg18 : memref<128x128xbf16, #tpu.memory_space<vmem>>) target_semaphore(%5 : memref<!tpu.dma_semaphore, #tpu.memory_space<semaphore_mem>>)
    %c0 = arith.constant 0 : index
    %c0_0 = arith.constant 0 : index
    %6 = vector.load %arg3[%c0, %c0_0] : memref<1x512xf32, #tpu.memory_space<vmem>>, vector<1x512xf32>
    %7 = vector.shape_cast %6 : vector<1x512xf32> to vector<1x512xf32>
    %8 = vector.broadcast %7 : vector<1x512xf32> to vector<8x512xf32>
    %c0_1 = arith.constant 0 : index
    %c0_2 = arith.constant 0 : index
    %9 = vector.load %arg5[%c0_1, %c0_2] : memref<1x512xf32, #tpu.memory_space<vmem>>, vector<1x512xf32>
    %10 = vector.shape_cast %9 : vector<1x512xf32> to vector<1x512xf32>
    %11 = vector.broadcast %10 : vector<1x512xf32> to vector<8x512xf32>
    %c0_3 = arith.constant 0 : index
    %c0_4 = arith.constant 0 : index
    %12 = vector.load %arg9[%c0_3, %c0_4] : memref<1x512xf32, #tpu.memory_space<vmem>>, vector<1x512xf32>
    %13 = vector.shape_cast %12 : vector<1x512xf32> to vector<1x512xf32>
    %14 = vector.broadcast %13 : vector<1x512xf32> to vector<8x512xf32>
    %c0_5 = arith.constant 0 : index
    %c0_6 = arith.constant 0 : index
    %15 = vector.load %arg11[%c0_5, %c0_6] : memref<1x512xf32, #tpu.memory_space<vmem>>, vector<1x512xf32>
    %16 = vector.shape_cast %15 : vector<1x512xf32> to vector<1x512xf32>
    %17 = vector.broadcast %16 : vector<1x512xf32> to vector<8x512xf32>
    %cst = arith.constant 0.000000e+00 : f32
    %18 = vector.broadcast %cst : f32 to vector<8x128xf32>
    %cst_7 = arith.constant 0.000000e+00 : f32
    %19 = vector.broadcast %cst_7 : f32 to vector<8x128xf32>
    %cst_8 = arith.constant 0.000000e+00 : f32
    %20 = vector.broadcast %cst_8 : f32 to vector<8x128xf32>
    %cst_9 = arith.constant 0.000000e+00 : f32
    %21 = vector.broadcast %cst_9 : f32 to vector<8x128xf32>
    %c0_10 = arith.constant 0 : index
    %c0_11 = arith.constant 0 : index
    %22 = vector.load %arg0[%c0_10, %c0_11] : memref<48x128xf32, #tpu.memory_space<vmem>>, vector<8x128xf32>
    %23 = tpu.concatenate %22, %18 in 1 : vector<8x128xf32>, vector<8x128xf32> -> vector<8x256xf32>
    %24 = arith.truncf %23 : vector<8x256xf32> to vector<8x256xbf16>
    %c0_12 = arith.constant 0 : index
    %c0_13 = arith.constant 0 : index
    %25 = vector.load %arg2[%c0_12, %c0_13] : memref<256x512xbf16, #tpu.memory_space<vmem>>, vector<256x512xbf16>
    %cst_14 = arith.constant dense<0.000000e+00> : vector<8x512xf32>
    %26 = tpu.matmul %24, %25, %cst_14 {dimension_numbers = #tpu.dot_dimension_numbers<[1], [0], [0], [1], [0, 0, 1, 1], [], []>} : vector<8x256xbf16>, vector<256x512xbf16>, vector<8x512xf32> -> vector<8x512xf32>
    %27 = arith.addf %26, %8 : vector<8x512xf32>
    %28 = vector.extract_strided_slice %27 {offsets = [0, 0], sizes = [8, 384], strides = [1, 1]} : vector<8x512xf32> to vector<8x384xf32>
    %29 = arith.negf %28 : vector<8x384xf32>
    %30 = math.exp %29 : vector<8x384xf32>
    %cst_15 = arith.constant 1.000000e+00 : f32
    %31 = vector.broadcast %cst_15 : f32 to vector<8x384xf32>
    %32 = arith.addf %31, %30 : vector<8x384xf32>
    %33 = arith.divf %31, %32 : vector<8x384xf32>
    %34 = vector.extract_strided_slice %27 {offsets = [0, 384], sizes = [8, 128], strides = [1, 1]} : vector<8x512xf32> to vector<8x128xf32>
    %35 = math.tanh %34 : vector<8x128xf32>
    %36 = vector.extract_strided_slice %33 {offsets = [0, 128], sizes = [8, 128], strides = [1, 1]} : vector<8x384xf32> to vector<8x128xf32>
    %37 = arith.mulf %36, %19 : vector<8x128xf32>
    %38 = vector.extract_strided_slice %33 {offsets = [0, 0], sizes = [8, 128], strides = [1, 1]} : vector<8x384xf32> to vector<8x128xf32>
    %39 = arith.mulf %38, %35 : vector<8x128xf32>
    %40 = arith.addf %37, %39 : vector<8x128xf32>
    %41 = vector.extract_strided_slice %33 {offsets = [0, 256], sizes = [8, 128], strides = [1, 1]} : vector<8x384xf32> to vector<8x128xf32>
    %42 = math.tanh %40 : vector<8x128xf32>
    %43 = arith.mulf %41, %42 : vector<8x128xf32>
    %44 = tpu.concatenate %43, %20 in 1 : vector<8x128xf32>, vector<8x128xf32> -> vector<8x256xf32>
    %45 = arith.truncf %44 : vector<8x256xf32> to vector<8x256xbf16>
    %c0_16 = arith.constant 0 : index
    %c0_17 = arith.constant 0 : index
    %46 = vector.load %arg4[%c0_16, %c0_17] : memref<256x512xbf16, #tpu.memory_space<vmem>>, vector<256x512xbf16>
    %cst_18 = arith.constant dense<0.000000e+00> : vector<8x512xf32>
    %47 = tpu.matmul %45, %46, %cst_18 {dimension_numbers = #tpu.dot_dimension_numbers<[1], [0], [0], [1], [0, 0, 1, 1], [], []>} : vector<8x256xbf16>, vector<256x512xbf16>, vector<8x512xf32> -> vector<8x512xf32>
    %48 = arith.addf %47, %11 : vector<8x512xf32>
    %49 = vector.extract_strided_slice %48 {offsets = [0, 0], sizes = [8, 384], strides = [1, 1]} : vector<8x512xf32> to vector<8x384xf32>
    %50 = arith.negf %49 : vector<8x384xf32>
    %51 = math.exp %50 : vector<8x384xf32>
    %cst_19 = arith.constant 1.000000e+00 : f32
    %52 = vector.broadcast %cst_19 : f32 to vector<8x384xf32>
    %53 = arith.addf %52, %51 : vector<8x384xf32>
    %54 = arith.divf %52, %53 : vector<8x384xf32>
    %55 = vector.extract_strided_slice %48 {offsets = [0, 384], sizes = [8, 128], strides = [1, 1]} : vector<8x512xf32> to vector<8x128xf32>
    %56 = math.tanh %55 : vector<8x128xf32>
    %57 = vector.extract_strided_slice %54 {offsets = [0, 128], sizes = [8, 128], strides = [1, 1]} : vector<8x384xf32> to vector<8x128xf32>
    %58 = arith.mulf %57, %21 : vector<8x128xf32>
    %59 = vector.extract_strided_slice %54 {offsets = [0, 0], sizes = [8, 128], strides = [1, 1]} : vector<8x384xf32> to vector<8x128xf32>
    %60 = arith.mulf %59, %56 : vector<8x128xf32>
    %61 = arith.addf %58, %60 : vector<8x128xf32>
    %62 = vector.extract_strided_slice %54 {offsets = [0, 256], sizes = [8, 128], strides = [1, 1]} : vector<8x384xf32> to vector<8x128xf32>
    %63 = math.tanh %61 : vector<8x128xf32>
    %64 = arith.mulf %62, %63 : vector<8x128xf32>
    %c8 = arith.constant 8 : index
    %c0_20 = arith.constant 0 : index
    %65 = vector.load %arg0[%c8, %c0_20] : memref<48x128xf32, #tpu.memory_space<vmem>>, vector<8x128xf32>
    %66 = tpu.concatenate %65, %43 in 1 : vector<8x128xf32>, vector<8x128xf32> -> vector<8x256xf32>
    %67 = arith.truncf %66 : vector<8x256xf32> to vector<8x256xbf16>
    %c0_21 = arith.constant 0 : index
    %c0_22 = arith.constant 0 : index
    %68 = vector.load %arg2[%c0_21, %c0_22] : memref<256x512xbf16, #tpu.memory_space<vmem>>, vector<256x512xbf16>
    %cst_23 = arith.constant dense<0.000000e+00> : vector<8x512xf32>
    %69 = tpu.matmul %67, %68, %cst_23 {dimension_numbers = #tpu.dot_dimension_numbers<[1], [0], [0], [1], [0, 0, 1, 1], [], []>} : vector<8x256xbf16>, vector<256x512xbf16>, vector<8x512xf32> -> vector<8x512xf32>
    %70 = arith.addf %69, %8 : vector<8x512xf32>
    %71 = vector.extract_strided_slice %70 {offsets = [0, 0], sizes = [8, 384], strides = [1, 1]} : vector<8x512xf32> to vector<8x384xf32>
    %72 = arith.negf %71 : vector<8x384xf32>
    %73 = math.exp %72 : vector<8x384xf32>
    %cst_24 = arith.constant 1.000000e+00 : f32
    %74 = vector.broadcast %cst_24 : f32 to vector<8x384xf32>
    %75 = arith.addf %74, %73 : vector<8x384xf32>
    %76 = arith.divf %74, %75 : vector<8x384xf32>
    %77 = vector.extract_strided_slice %70 {offsets = [0, 384], sizes = [8, 128], strides = [1, 1]} : vector<8x512xf32> to vector<8x128xf32>
    %78 = math.tanh %77 : vector<8x128xf32>
    %79 = vector.extract_strided_slice %76 {offsets = [0, 128], sizes = [8, 128], strides = [1, 1]} : vector<8x384xf32> to vector<8x128xf32>
    %80 = arith.mulf %79, %40 : vector<8x128xf32>
    %81 = vector.extract_strided_slice %76 {offsets = [0, 0], sizes = [8, 128], strides = [1, 1]} : vector<8x384xf32> to vector<8x128xf32>
    %82 = arith.mulf %81, %78 : vector<8x128xf32>
    %83 = arith.addf %80, %82 : vector<8x128xf32>
    %84 = vector.extract_strided_slice %76 {offsets = [0, 256], sizes = [8, 128], strides = [1, 1]} : vector<8x384xf32> to vector<8x128xf32>
    %85 = math.tanh %83 : vector<8x128xf32>
    %86 = arith.mulf %84, %85 : vector<8x128xf32>
    %87 = tpu.concatenate %86, %64 in 1 : vector<8x128xf32>, vector<8x128xf32> -> vector<8x256xf32>
    %88 = arith.truncf %87 : vector<8x256xf32> to vector<8x256xbf16>
    %c0_25 = arith.constant 0 : index
    %c0_26 = arith.constant 0 : index
    %89 = vector.load %arg4[%c0_25, %c0_26] : memref<256x512xbf16, #tpu.memory_space<vmem>>, vector<256x512xbf16>
    %cst_27 = arith.constant dense<0.000000e+00> : vector<8x512xf32>
    %90 = tpu.matmul %88, %89, %cst_27 {dimension_numbers = #tpu.dot_dimension_numbers<[1], [0], [0], [1], [0, 0, 1, 1], [], []>} : vector<8x256xbf16>, vector<256x512xbf16>, vector<8x512xf32> -> vector<8x512xf32>
    %91 = arith.addf %90, %11 : vector<8x512xf32>
    %92 = vector.extract_strided_slice %91 {offsets = [0, 0], sizes = [8, 384], strides = [1, 1]} : vector<8x512xf32> to vector<8x384xf32>
    %93 = arith.negf %92 : vector<8x384xf32>
    %94 = math.exp %93 : vector<8x384xf32>
    %cst_28 = arith.constant 1.000000e+00 : f32
    %95 = vector.broadcast %cst_28 : f32 to vector<8x384xf32>
    %96 = arith.addf %95, %94 : vector<8x384xf32>
    %97 = arith.divf %95, %96 : vector<8x384xf32>
    %98 = vector.extract_strided_slice %91 {offsets = [0, 384], sizes = [8, 128], strides = [1, 1]} : vector<8x512xf32> to vector<8x128xf32>
    %99 = math.tanh %98 : vector<8x128xf32>
    %100 = vector.extract_strided_slice %97 {offsets = [0, 128], sizes = [8, 128], strides = [1, 1]} : vector<8x384xf32> to vector<8x128xf32>
    %101 = arith.mulf %100, %61 : vector<8x128xf32>
    %102 = vector.extract_strided_slice %97 {offsets = [0, 0], sizes = [8, 128], strides = [1, 1]} : vector<8x384xf32> to vector<8x128xf32>
    %103 = arith.mulf %102, %99 : vector<8x128xf32>
    %104 = arith.addf %101, %103 : vector<8x128xf32>
    %105 = vector.extract_strided_slice %97 {offsets = [0, 256], sizes = [8, 128], strides = [1, 1]} : vector<8x384xf32> to vector<8x128xf32>
    %106 = math.tanh %104 : vector<8x128xf32>
    %107 = arith.mulf %105, %106 : vector<8x128xf32>
    %c16 = arith.constant 16 : index
    %c0_29 = arith.constant 0 : index
    %108 = vector.load %arg0[%c16, %c0_29] : memref<48x128xf32, #tpu.memory_space<vmem>>, vector<8x128xf32>
    %109 = tpu.concatenate %108, %86 in 1 : vector<8x128xf32>, vector<8x128xf32> -> vector<8x256xf32>
    %110 = arith.truncf %109 : vector<8x256xf32> to vector<8x256xbf16>
    %c0_30 = arith.constant 0 : index
    %c0_31 = arith.constant 0 : index
    %111 = vector.load %arg2[%c0_30, %c0_31] : memref<256x512xbf16, #tpu.memory_space<vmem>>, vector<256x512xbf16>
    %cst_32 = arith.constant dense<0.000000e+00> : vector<8x512xf32>
    %112 = tpu.matmul %110, %111, %cst_32 {dimension_numbers = #tpu.dot_dimension_numbers<[1], [0], [0], [1], [0, 0, 1, 1], [], []>} : vector<8x256xbf16>, vector<256x512xbf16>, vector<8x512xf32> -> vector<8x512xf32>
    %113 = arith.addf %112, %8 : vector<8x512xf32>
    %114 = vector.extract_strided_slice %113 {offsets = [0, 0], sizes = [8, 384], strides = [1, 1]} : vector<8x512xf32> to vector<8x384xf32>
    %115 = arith.negf %114 : vector<8x384xf32>
    %116 = math.exp %115 : vector<8x384xf32>
    %cst_33 = arith.constant 1.000000e+00 : f32
    %117 = vector.broadcast %cst_33 : f32 to vector<8x384xf32>
    %118 = arith.addf %117, %116 : vector<8x384xf32>
    %119 = arith.divf %117, %118 : vector<8x384xf32>
    %120 = vector.extract_strided_slice %113 {offsets = [0, 384], sizes = [8, 128], strides = [1, 1]} : vector<8x512xf32> to vector<8x128xf32>
    %121 = math.tanh %120 : vector<8x128xf32>
    %122 = vector.extract_strided_slice %119 {offsets = [0, 128], sizes = [8, 128], strides = [1, 1]} : vector<8x384xf32> to vector<8x128xf32>
    %123 = arith.mulf %122, %83 : vector<8x128xf32>
    %124 = vector.extract_strided_slice %119 {offsets = [0, 0], sizes = [8, 128], strides = [1, 1]} : vector<8x384xf32> to vector<8x128xf32>
    %125 = arith.mulf %124, %121 : vector<8x128xf32>
    %126 = arith.addf %123, %125 : vector<8x128xf32>
    %127 = vector.extract_strided_slice %119 {offsets = [0, 256], sizes = [8, 128], strides = [1, 1]} : vector<8x384xf32> to vector<8x128xf32>
    %128 = math.tanh %126 : vector<8x128xf32>
    %129 = arith.mulf %127, %128 : vector<8x128xf32>
    %130 = tpu.concatenate %129, %107 in 1 : vector<8x128xf32>, vector<8x128xf32> -> vector<8x256xf32>
    %131 = arith.truncf %130 : vector<8x256xf32> to vector<8x256xbf16>
    %c0_34 = arith.constant 0 : index
    %c0_35 = arith.constant 0 : index
    %132 = vector.load %arg4[%c0_34, %c0_35] : memref<256x512xbf16, #tpu.memory_space<vmem>>, vector<256x512xbf16>
    %cst_36 = arith.constant dense<0.000000e+00> : vector<8x512xf32>
    %133 = tpu.matmul %131, %132, %cst_36 {dimension_numbers = #tpu.dot_dimension_numbers<[1], [0], [0], [1], [0, 0, 1, 1], [], []>} : vector<8x256xbf16>, vector<256x512xbf16>, vector<8x512xf32> -> vector<8x512xf32>
    %134 = arith.addf %133, %11 : vector<8x512xf32>
    %135 = vector.extract_strided_slice %134 {offsets = [0, 0], sizes = [8, 384], strides = [1, 1]} : vector<8x512xf32> to vector<8x384xf32>
    %136 = arith.negf %135 : vector<8x384xf32>
    %137 = math.exp %136 : vector<8x384xf32>
    %cst_37 = arith.constant 1.000000e+00 : f32
    %138 = vector.broadcast %cst_37 : f32 to vector<8x384xf32>
    %139 = arith.addf %138, %137 : vector<8x384xf32>
    %140 = arith.divf %138, %139 : vector<8x384xf32>
    %141 = vector.extract_strided_slice %134 {offsets = [0, 384], sizes = [8, 128], strides = [1, 1]} : vector<8x512xf32> to vector<8x128xf32>
    %142 = math.tanh %141 : vector<8x128xf32>
    %143 = vector.extract_strided_slice %140 {offsets = [0, 128], sizes = [8, 128], strides = [1, 1]} : vector<8x384xf32> to vector<8x128xf32>
    %144 = arith.mulf %143, %104 : vector<8x128xf32>
    %145 = vector.extract_strided_slice %140 {offsets = [0, 0], sizes = [8, 128], strides = [1, 1]} : vector<8x384xf32> to vector<8x128xf32>
    %146 = arith.mulf %145, %142 : vector<8x128xf32>
    %147 = arith.addf %144, %146 : vector<8x128xf32>
    %148 = vector.extract_strided_slice %140 {offsets = [0, 256], sizes = [8, 128], strides = [1, 1]} : vector<8x384xf32> to vector<8x128xf32>
    %149 = math.tanh %147 : vector<8x128xf32>
    %150 = arith.mulf %148, %149 : vector<8x128xf32>
    %c24 = arith.constant 24 : index
    %c0_38 = arith.constant 0 : index
    %151 = vector.load %arg0[%c24, %c0_38] : memref<48x128xf32, #tpu.memory_space<vmem>>, vector<8x128xf32>
    %152 = tpu.concatenate %151, %129 in 1 : vector<8x128xf32>, vector<8x128xf32> -> vector<8x256xf32>
    %153 = arith.truncf %152 : vector<8x256xf32> to vector<8x256xbf16>
    %c0_39 = arith.constant 0 : index
    %c0_40 = arith.constant 0 : index
    %154 = vector.load %arg2[%c0_39, %c0_40] : memref<256x512xbf16, #tpu.memory_space<vmem>>, vector<256x512xbf16>
    %cst_41 = arith.constant dense<0.000000e+00> : vector<8x512xf32>
    %155 = tpu.matmul %153, %154, %cst_41 {dimension_numbers = #tpu.dot_dimension_numbers<[1], [0], [0], [1], [0, 0, 1, 1], [], []>} : vector<8x256xbf16>, vector<256x512xbf16>, vector<8x512xf32> -> vector<8x512xf32>
    %156 = arith.addf %155, %8 : vector<8x512xf32>
    %157 = vector.extract_strided_slice %156 {offsets = [0, 0], sizes = [8, 384], strides = [1, 1]} : vector<8x512xf32> to vector<8x384xf32>
    %158 = arith.negf %157 : vector<8x384xf32>
    %159 = math.exp %158 : vector<8x384xf32>
    %cst_42 = arith.constant 1.000000e+00 : f32
    %160 = vector.broadcast %cst_42 : f32 to vector<8x384xf32>
    %161 = arith.addf %160, %159 : vector<8x384xf32>
    %162 = arith.divf %160, %161 : vector<8x384xf32>
    %163 = vector.extract_strided_slice %156 {offsets = [0, 384], sizes = [8, 128], strides = [1, 1]} : vector<8x512xf32> to vector<8x128xf32>
    %164 = math.tanh %163 : vector<8x128xf32>
    %165 = vector.extract_strided_slice %162 {offsets = [0, 128], sizes = [8, 128], strides = [1, 1]} : vector<8x384xf32> to vector<8x128xf32>
    %166 = arith.mulf %165, %126 : vector<8x128xf32>
    %167 = vector.extract_strided_slice %162 {offsets = [0, 0], sizes = [8, 128], strides = [1, 1]} : vector<8x384xf32> to vector<8x128xf32>
    %168 = arith.mulf %167, %164 : vector<8x128xf32>
    %169 = arith.addf %166, %168 : vector<8x128xf32>
    %170 = vector.extract_strided_slice %162 {offsets = [0, 256], sizes = [8, 128], strides = [1, 1]} : vector<8x384xf32> to vector<8x128xf32>
    %171 = math.tanh %169 : vector<8x128xf32>
    %172 = arith.mulf %170, %171 : vector<8x128xf32>
    %173 = tpu.concatenate %172, %150 in 1 : vector<8x128xf32>, vector<8x128xf32> -> vector<8x256xf32>
    %174 = arith.truncf %173 : vector<8x256xf32> to vector<8x256xbf16>
    %c0_43 = arith.constant 0 : index
    %c0_44 = arith.constant 0 : index
    %175 = vector.load %arg4[%c0_43, %c0_44] : memref<256x512xbf16, #tpu.memory_space<vmem>>, vector<256x512xbf16>
    %cst_45 = arith.constant dense<0.000000e+00> : vector<8x512xf32>
    %176 = tpu.matmul %174, %175, %cst_45 {dimension_numbers = #tpu.dot_dimension_numbers<[1], [0], [0], [1], [0, 0, 1, 1], [], []>} : vector<8x256xbf16>, vector<256x512xbf16>, vector<8x512xf32> -> vector<8x512xf32>
    %177 = arith.addf %176, %11 : vector<8x512xf32>
    %178 = vector.extract_strided_slice %177 {offsets = [0, 0], sizes = [8, 384], strides = [1, 1]} : vector<8x512xf32> to vector<8x384xf32>
    %179 = arith.negf %178 : vector<8x384xf32>
    %180 = math.exp %179 : vector<8x384xf32>
    %cst_46 = arith.constant 1.000000e+00 : f32
    %181 = vector.broadcast %cst_46 : f32 to vector<8x384xf32>
    %182 = arith.addf %181, %180 : vector<8x384xf32>
    %183 = arith.divf %181, %182 : vector<8x384xf32>
    %184 = vector.extract_strided_slice %177 {offsets = [0, 384], sizes = [8, 128], strides = [1, 1]} : vector<8x512xf32> to vector<8x128xf32>
    %185 = math.tanh %184 : vector<8x128xf32>
    %186 = vector.extract_strided_slice %183 {offsets = [0, 128], sizes = [8, 128], strides = [1, 1]} : vector<8x384xf32> to vector<8x128xf32>
    %187 = arith.mulf %186, %147 : vector<8x128xf32>
    %188 = vector.extract_strided_slice %183 {offsets = [0, 0], sizes = [8, 128], strides = [1, 1]} : vector<8x384xf32> to vector<8x128xf32>
    %189 = arith.mulf %188, %185 : vector<8x128xf32>
    %190 = arith.addf %187, %189 : vector<8x128xf32>
    %191 = vector.extract_strided_slice %183 {offsets = [0, 256], sizes = [8, 128], strides = [1, 1]} : vector<8x384xf32> to vector<8x128xf32>
    %192 = math.tanh %190 : vector<8x128xf32>
    %193 = arith.mulf %191, %192 : vector<8x128xf32>
    %c32 = arith.constant 32 : index
    %c0_47 = arith.constant 0 : index
    %194 = vector.load %arg0[%c32, %c0_47] : memref<48x128xf32, #tpu.memory_space<vmem>>, vector<8x128xf32>
    %195 = tpu.concatenate %194, %172 in 1 : vector<8x128xf32>, vector<8x128xf32> -> vector<8x256xf32>
    %196 = arith.truncf %195 : vector<8x256xf32> to vector<8x256xbf16>
    %c0_48 = arith.constant 0 : index
    %c0_49 = arith.constant 0 : index
    %197 = vector.load %arg2[%c0_48, %c0_49] : memref<256x512xbf16, #tpu.memory_space<vmem>>, vector<256x512xbf16>
    %cst_50 = arith.constant dense<0.000000e+00> : vector<8x512xf32>
    %198 = tpu.matmul %196, %197, %cst_50 {dimension_numbers = #tpu.dot_dimension_numbers<[1], [0], [0], [1], [0, 0, 1, 1], [], []>} : vector<8x256xbf16>, vector<256x512xbf16>, vector<8x512xf32> -> vector<8x512xf32>
    %199 = arith.addf %198, %8 : vector<8x512xf32>
    %200 = vector.extract_strided_slice %199 {offsets = [0, 0], sizes = [8, 384], strides = [1, 1]} : vector<8x512xf32> to vector<8x384xf32>
    %201 = arith.negf %200 : vector<8x384xf32>
    %202 = math.exp %201 : vector<8x384xf32>
    %cst_51 = arith.constant 1.000000e+00 : f32
    %203 = vector.broadcast %cst_51 : f32 to vector<8x384xf32>
    %204 = arith.addf %203, %202 : vector<8x384xf32>
    %205 = arith.divf %203, %204 : vector<8x384xf32>
    %206 = vector.extract_strided_slice %199 {offsets = [0, 384], sizes = [8, 128], strides = [1, 1]} : vector<8x512xf32> to vector<8x128xf32>
    %207 = math.tanh %206 : vector<8x128xf32>
    %208 = vector.extract_strided_slice %205 {offsets = [0, 128], sizes = [8, 128], strides = [1, 1]} : vector<8x384xf32> to vector<8x128xf32>
    %209 = arith.mulf %208, %169 : vector<8x128xf32>
    %210 = vector.extract_strided_slice %205 {offsets = [0, 0], sizes = [8, 128], strides = [1, 1]} : vector<8x384xf32> to vector<8x128xf32>
    %211 = arith.mulf %210, %207 : vector<8x128xf32>
    %212 = arith.addf %209, %211 : vector<8x128xf32>
    %213 = vector.extract_strided_slice %205 {offsets = [0, 256], sizes = [8, 128], strides = [1, 1]} : vector<8x384xf32> to vector<8x128xf32>
    %214 = math.tanh %212 : vector<8x128xf32>
    %215 = arith.mulf %213, %214 : vector<8x128xf32>
    %216 = tpu.concatenate %215, %193 in 1 : vector<8x128xf32>, vector<8x128xf32> -> vector<8x256xf32>
    %217 = arith.truncf %216 : vector<8x256xf32> to vector<8x256xbf16>
    %c0_52 = arith.constant 0 : index
    %c0_53 = arith.constant 0 : index
    %218 = vector.load %arg4[%c0_52, %c0_53] : memref<256x512xbf16, #tpu.memory_space<vmem>>, vector<256x512xbf16>
    %cst_54 = arith.constant dense<0.000000e+00> : vector<8x512xf32>
    %219 = tpu.matmul %217, %218, %cst_54 {dimension_numbers = #tpu.dot_dimension_numbers<[1], [0], [0], [1], [0, 0, 1, 1], [], []>} : vector<8x256xbf16>, vector<256x512xbf16>, vector<8x512xf32> -> vector<8x512xf32>
    %220 = arith.addf %219, %11 : vector<8x512xf32>
    %221 = vector.extract_strided_slice %220 {offsets = [0, 0], sizes = [8, 384], strides = [1, 1]} : vector<8x512xf32> to vector<8x384xf32>
    %222 = arith.negf %221 : vector<8x384xf32>
    %223 = math.exp %222 : vector<8x384xf32>
    %cst_55 = arith.constant 1.000000e+00 : f32
    %224 = vector.broadcast %cst_55 : f32 to vector<8x384xf32>
    %225 = arith.addf %224, %223 : vector<8x384xf32>
    %226 = arith.divf %224, %225 : vector<8x384xf32>
    %227 = vector.extract_strided_slice %220 {offsets = [0, 384], sizes = [8, 128], strides = [1, 1]} : vector<8x512xf32> to vector<8x128xf32>
    %228 = math.tanh %227 : vector<8x128xf32>
    %229 = vector.extract_strided_slice %226 {offsets = [0, 128], sizes = [8, 128], strides = [1, 1]} : vector<8x384xf32> to vector<8x128xf32>
    %230 = arith.mulf %229, %190 : vector<8x128xf32>
    %231 = vector.extract_strided_slice %226 {offsets = [0, 0], sizes = [8, 128], strides = [1, 1]} : vector<8x384xf32> to vector<8x128xf32>
    %232 = arith.mulf %231, %228 : vector<8x128xf32>
    %233 = arith.addf %230, %232 : vector<8x128xf32>
    %234 = vector.extract_strided_slice %226 {offsets = [0, 256], sizes = [8, 128], strides = [1, 1]} : vector<8x384xf32> to vector<8x128xf32>
    %235 = math.tanh %233 : vector<8x128xf32>
    %236 = arith.mulf %234, %235 : vector<8x128xf32>
    %c40 = arith.constant 40 : index
    %c0_56 = arith.constant 0 : index
    %237 = vector.load %arg0[%c40, %c0_56] : memref<48x128xf32, #tpu.memory_space<vmem>>, vector<8x128xf32>
    %238 = tpu.concatenate %237, %215 in 1 : vector<8x128xf32>, vector<8x128xf32> -> vector<8x256xf32>
    %239 = arith.truncf %238 : vector<8x256xf32> to vector<8x256xbf16>
    %c0_57 = arith.constant 0 : index
    %c0_58 = arith.constant 0 : index
    %240 = vector.load %arg2[%c0_57, %c0_58] : memref<256x512xbf16, #tpu.memory_space<vmem>>, vector<256x512xbf16>
    %cst_59 = arith.constant dense<0.000000e+00> : vector<8x512xf32>
    %241 = tpu.matmul %239, %240, %cst_59 {dimension_numbers = #tpu.dot_dimension_numbers<[1], [0], [0], [1], [0, 0, 1, 1], [], []>} : vector<8x256xbf16>, vector<256x512xbf16>, vector<8x512xf32> -> vector<8x512xf32>
    %242 = arith.addf %241, %8 : vector<8x512xf32>
    %243 = vector.extract_strided_slice %242 {offsets = [0, 0], sizes = [8, 384], strides = [1, 1]} : vector<8x512xf32> to vector<8x384xf32>
    %244 = arith.negf %243 : vector<8x384xf32>
    %245 = math.exp %244 : vector<8x384xf32>
    %cst_60 = arith.constant 1.000000e+00 : f32
    %246 = vector.broadcast %cst_60 : f32 to vector<8x384xf32>
    %247 = arith.addf %246, %245 : vector<8x384xf32>
    %248 = arith.divf %246, %247 : vector<8x384xf32>
    %249 = vector.extract_strided_slice %242 {offsets = [0, 384], sizes = [8, 128], strides = [1, 1]} : vector<8x512xf32> to vector<8x128xf32>
    %250 = math.tanh %249 : vector<8x128xf32>
    %251 = vector.extract_strided_slice %248 {offsets = [0, 128], sizes = [8, 128], strides = [1, 1]} : vector<8x384xf32> to vector<8x128xf32>
    %252 = arith.mulf %251, %212 : vector<8x128xf32>
    %253 = vector.extract_strided_slice %248 {offsets = [0, 0], sizes = [8, 128], strides = [1, 1]} : vector<8x384xf32> to vector<8x128xf32>
    %254 = arith.mulf %253, %250 : vector<8x128xf32>
    %255 = arith.addf %252, %254 : vector<8x128xf32>
    %256 = vector.extract_strided_slice %248 {offsets = [0, 256], sizes = [8, 128], strides = [1, 1]} : vector<8x384xf32> to vector<8x128xf32>
    %257 = math.tanh %255 : vector<8x128xf32>
    %258 = arith.mulf %256, %257 : vector<8x128xf32>
    %259 = tpu.concatenate %258, %236 in 1 : vector<8x128xf32>, vector<8x128xf32> -> vector<8x256xf32>
    %260 = arith.truncf %259 : vector<8x256xf32> to vector<8x256xbf16>
    %c0_61 = arith.constant 0 : index
    %c0_62 = arith.constant 0 : index
    %261 = vector.load %arg4[%c0_61, %c0_62] : memref<256x512xbf16, #tpu.memory_space<vmem>>, vector<256x512xbf16>
    %cst_63 = arith.constant dense<0.000000e+00> : vector<8x512xf32>
    %262 = tpu.matmul %260, %261, %cst_63 {dimension_numbers = #tpu.dot_dimension_numbers<[1], [0], [0], [1], [0, 0, 1, 1], [], []>} : vector<8x256xbf16>, vector<256x512xbf16>, vector<8x512xf32> -> vector<8x512xf32>
    %263 = arith.addf %262, %11 : vector<8x512xf32>
    %264 = vector.extract_strided_slice %263 {offsets = [0, 0], sizes = [8, 384], strides = [1, 1]} : vector<8x512xf32> to vector<8x384xf32>
    %265 = arith.negf %264 : vector<8x384xf32>
    %266 = math.exp %265 : vector<8x384xf32>
    %cst_64 = arith.constant 1.000000e+00 : f32
    %267 = vector.broadcast %cst_64 : f32 to vector<8x384xf32>
    %268 = arith.addf %267, %266 : vector<8x384xf32>
    %269 = arith.divf %267, %268 : vector<8x384xf32>
    %270 = vector.extract_strided_slice %263 {offsets = [0, 384], sizes = [8, 128], strides = [1, 1]} : vector<8x512xf32> to vector<8x128xf32>
    %271 = math.tanh %270 : vector<8x128xf32>
    %272 = vector.extract_strided_slice %269 {offsets = [0, 128], sizes = [8, 128], strides = [1, 1]} : vector<8x384xf32> to vector<8x128xf32>
    %273 = arith.mulf %272, %233 : vector<8x128xf32>
    %274 = vector.extract_strided_slice %269 {offsets = [0, 0], sizes = [8, 128], strides = [1, 1]} : vector<8x384xf32> to vector<8x128xf32>
    %275 = arith.mulf %274, %271 : vector<8x128xf32>
    %276 = arith.addf %273, %275 : vector<8x128xf32>
    %277 = vector.extract_strided_slice %269 {offsets = [0, 256], sizes = [8, 128], strides = [1, 1]} : vector<8x384xf32> to vector<8x128xf32>
    %278 = math.tanh %276 : vector<8x128xf32>
    %279 = arith.mulf %277, %278 : vector<8x128xf32>
    %280 = tpu.concatenate %258, %279 in 0 : vector<8x128xf32>, vector<8x128xf32> -> vector<16x128xf32>
    %c0_65 = arith.constant 0 : index
    %c0_66 = arith.constant 0 : index
    %281 = vector.load %arg6[%c0_65, %c0_66] : memref<128x256xf32, #tpu.memory_space<vmem>>, vector<128x256xf32>
    %cst_67 = arith.constant dense<0.000000e+00> : vector<16x256xf32>
    %282 = tpu.matmul %280, %281, %cst_67 {dimension_numbers = #tpu.dot_dimension_numbers<[1], [0], [0], [1], [0, 0, 1, 1], [], []>} : vector<16x128xf32>, vector<128x256xf32>, vector<16x256xf32> -> vector<16x256xf32>
    %c0_68 = arith.constant 0 : index
    %c0_69 = arith.constant 0 : index
    %283 = vector.load %arg7[%c0_68, %c0_69] : memref<1x256xf32, #tpu.memory_space<vmem>>, vector<1x256xf32>
    %284 = vector.broadcast %283 : vector<1x256xf32> to vector<16x256xf32>
    %285 = arith.addf %282, %284 : vector<16x256xf32>
    %c0_70 = arith.constant 0 : index
    %c0_71 = arith.constant 0 : index
    %286 = vector.load %arg15[%c0_70, %c0_71] : memref<16x256xf32, #tpu.memory_space<vmem>>, vector<16x256xf32>
    tpu.vector_store %arg15[%c0_70, %c0_71], %285 {strides = array<i32>} : memref<16x256xf32, #tpu.memory_space<vmem>>, vector<16x256xf32>,
    %287 = vector.extract_strided_slice %285 {offsets = [0, 0], sizes = [16, 128], strides = [1, 1]} : vector<16x256xf32> to vector<16x128xf32>
    %288 = vector.extract_strided_slice %285 {offsets = [0, 128], sizes = [16, 128], strides = [1, 1]} : vector<16x256xf32> to vector<16x128xf32>
    %c0_72 = arith.constant 0 : index
    %c0_73 = arith.constant 0 : index
    %289 = vector.load %arg1[%c0_72, %c0_73] : memref<16x128xf32, #tpu.memory_space<vmem>>, vector<16x128xf32>
    %cst_74 = arith.constant 5.000000e-01 : f32
    %290 = vector.broadcast %cst_74 : f32 to vector<16x128xf32>
    %291 = arith.mulf %290, %288 : vector<16x128xf32>
    %292 = math.exp %291 : vector<16x128xf32>
    %293 = arith.mulf %289, %292 : vector<16x128xf32>
    %294 = arith.addf %287, %293 : vector<16x128xf32>
    %c0_i32_75 = arith.constant 0 : i32
    %295 = tpu.memref_slice %arg19[%c0_i32_75] : memref<3x!tpu.dma_semaphore, #tpu.memory_space<semaphore_mem>> -> memref<1x!tpu.dma_semaphore, #tpu.memory_space<semaphore_mem>>
    %296 = tpu.memref_squeeze %295 : memref<1x!tpu.dma_semaphore, #tpu.memory_space<semaphore_mem>> -> memref<!tpu.dma_semaphore, #tpu.memory_space<semaphore_mem>>
    tpu.wait_dma2 semaphore(%296 : memref<!tpu.dma_semaphore, #tpu.memory_space<semaphore_mem>>) src(%arg8 : memref<256x512xbf16, #tpu.memory_space<any>>) dst(%arg16 : memref<256x512xbf16, #tpu.memory_space<vmem>>)
    %c1_i32_76 = arith.constant 1 : i32
    %297 = tpu.memref_slice %arg19[%c1_i32_76] : memref<3x!tpu.dma_semaphore, #tpu.memory_space<semaphore_mem>> -> memref<1x!tpu.dma_semaphore, #tpu.memory_space<semaphore_mem>>
    %298 = tpu.memref_squeeze %297 : memref<1x!tpu.dma_semaphore, #tpu.memory_space<semaphore_mem>> -> memref<!tpu.dma_semaphore, #tpu.memory_space<semaphore_mem>>
    tpu.wait_dma2 semaphore(%298 : memref<!tpu.dma_semaphore, #tpu.memory_space<semaphore_mem>>) src(%arg10 : memref<256x512xbf16, #tpu.memory_space<any>>) dst(%arg17 : memref<256x512xbf16, #tpu.memory_space<vmem>>)
    %299 = vector.extract_strided_slice %294 {offsets = [0, 0], sizes = [8, 128], strides = [1, 1]} : vector<16x128xf32> to vector<8x128xf32>
    %300 = vector.extract_strided_slice %294 {offsets = [8, 0], sizes = [8, 128], strides = [1, 1]} : vector<16x128xf32> to vector<8x128xf32>
    %c128 = arith.constant 128 : index
    %c0_77 = arith.constant 0 : index
    %301 = vector.load %arg16[%c128, %c0_77] : memref<256x512xbf16, #tpu.memory_space<vmem>>, vector<128x512xbf16>
    %302 = arith.truncf %299 : vector<8x128xf32> to vector<8x128xbf16>
    %cst_78 = arith.constant dense<0.000000e+00> : vector<8x512xf32>
    %303 = tpu.matmul %302, %301, %cst_78 {dimension_numbers = #tpu.dot_dimension_numbers<[1], [0], [0], [1], [0, 0, 1, 1], [], []>} : vector<8x128xbf16>, vector<128x512xbf16>, vector<8x512xf32> -> vector<8x512xf32>
    %304 = arith.addf %303, %14 : vector<8x512xf32>
    %305 = vector.extract_strided_slice %304 {offsets = [0, 0], sizes = [8, 384], strides = [1, 1]} : vector<8x512xf32> to vector<8x384xf32>
    %306 = arith.negf %305 : vector<8x384xf32>
    %307 = math.exp %306 : vector<8x384xf32>
    %cst_79 = arith.constant 1.000000e+00 : f32
    %308 = vector.broadcast %cst_79 : f32 to vector<8x384xf32>
    %309 = arith.addf %308, %307 : vector<8x384xf32>
    %310 = arith.divf %308, %309 : vector<8x384xf32>
    %311 = vector.extract_strided_slice %304 {offsets = [0, 384], sizes = [8, 128], strides = [1, 1]} : vector<8x512xf32> to vector<8x128xf32>
    %312 = math.tanh %311 : vector<8x128xf32>
    %313 = vector.extract_strided_slice %310 {offsets = [0, 128], sizes = [8, 128], strides = [1, 1]} : vector<8x384xf32> to vector<8x128xf32>
    %314 = arith.mulf %313, %255 : vector<8x128xf32>
    %315 = vector.extract_strided_slice %310 {offsets = [0, 0], sizes = [8, 128], strides = [1, 1]} : vector<8x384xf32> to vector<8x128xf32>
    %316 = arith.mulf %315, %312 : vector<8x128xf32>
    %317 = arith.addf %314, %316 : vector<8x128xf32>
    %318 = vector.extract_strided_slice %310 {offsets = [0, 256], sizes = [8, 128], strides = [1, 1]} : vector<8x384xf32> to vector<8x128xf32>
    %319 = math.tanh %317 : vector<8x128xf32>
    %320 = arith.mulf %318, %319 : vector<8x128xf32>
    %321 = tpu.concatenate %320, %300 in 1 : vector<8x128xf32>, vector<8x128xf32> -> vector<8x256xf32>
    %322 = arith.truncf %321 : vector<8x256xf32> to vector<8x256xbf16>
    %c0_80 = arith.constant 0 : index
    %c0_81 = arith.constant 0 : index
    %323 = vector.load %arg17[%c0_80, %c0_81] : memref<256x512xbf16, #tpu.memory_space<vmem>>, vector<256x512xbf16>
    %cst_82 = arith.constant dense<0.000000e+00> : vector<8x512xf32>
    %324 = tpu.matmul %322, %323, %cst_82 {dimension_numbers = #tpu.dot_dimension_numbers<[1], [0], [0], [1], [0, 0, 1, 1], [], []>} : vector<8x256xbf16>, vector<256x512xbf16>, vector<8x512xf32> -> vector<8x512xf32>
    %325 = arith.addf %324, %17 : vector<8x512xf32>
    %326 = vector.extract_strided_slice %325 {offsets = [0, 0], sizes = [8, 384], strides = [1, 1]} : vector<8x512xf32> to vector<8x384xf32>
    %327 = arith.negf %326 : vector<8x384xf32>
    %328 = math.exp %327 : vector<8x384xf32>
    %cst_83 = arith.constant 1.000000e+00 : f32
    %329 = vector.broadcast %cst_83 : f32 to vector<8x384xf32>
    %330 = arith.addf %329, %328 : vector<8x384xf32>
    %331 = arith.divf %329, %330 : vector<8x384xf32>
    %332 = vector.extract_strided_slice %325 {offsets = [0, 384], sizes = [8, 128], strides = [1, 1]} : vector<8x512xf32> to vector<8x128xf32>
    %333 = math.tanh %332 : vector<8x128xf32>
    %334 = vector.extract_strided_slice %331 {offsets = [0, 128], sizes = [8, 128], strides = [1, 1]} : vector<8x384xf32> to vector<8x128xf32>
    %335 = arith.mulf %334, %276 : vector<8x128xf32>
    %336 = vector.extract_strided_slice %331 {offsets = [0, 0], sizes = [8, 128], strides = [1, 1]} : vector<8x384xf32> to vector<8x128xf32>
    %337 = arith.mulf %336, %333 : vector<8x128xf32>
    %338 = arith.addf %335, %337 : vector<8x128xf32>
    %339 = vector.extract_strided_slice %331 {offsets = [0, 256], sizes = [8, 128], strides = [1, 1]} : vector<8x384xf32> to vector<8x128xf32>
    %340 = math.tanh %338 : vector<8x128xf32>
    %341 = arith.mulf %339, %340 : vector<8x128xf32>
    %342 = tpu.concatenate %341, %320 in 1 : vector<8x128xf32>, vector<8x128xf32> -> vector<8x256xf32>
    %343 = arith.truncf %342 : vector<8x256xf32> to vector<8x256xbf16>
    %c0_84 = arith.constant 0 : index
    %c0_85 = arith.constant 0 : index
    %344 = vector.load %arg16[%c0_84, %c0_85] : memref<256x512xbf16, #tpu.memory_space<vmem>>, vector<256x512xbf16>
    %cst_86 = arith.constant dense<0.000000e+00> : vector<8x512xf32>
    %345 = tpu.matmul %343, %344, %cst_86 {dimension_numbers = #tpu.dot_dimension_numbers<[1], [0], [0], [1], [0, 0, 1, 1], [], []>} : vector<8x256xbf16>, vector<256x512xbf16>, vector<8x512xf32> -> vector<8x512xf32>
    %346 = arith.addf %345, %14 : vector<8x512xf32>
    %347 = vector.extract_strided_slice %346 {offsets = [0, 0], sizes = [8, 384], strides = [1, 1]} : vector<8x512xf32> to vector<8x384xf32>
    %348 = arith.negf %347 : vector<8x384xf32>
    %349 = math.exp %348 : vector<8x384xf32>
    %cst_87 = arith.constant 1.000000e+00 : f32
    %350 = vector.broadcast %cst_87 : f32 to vector<8x384xf32>
    %351 = arith.addf %350, %349 : vector<8x384xf32>
    %352 = arith.divf %350, %351 : vector<8x384xf32>
    %353 = vector.extract_strided_slice %346 {offsets = [0, 384], sizes = [8, 128], strides = [1, 1]} : vector<8x512xf32> to vector<8x128xf32>
    %354 = math.tanh %353 : vector<8x128xf32>
    %355 = vector.extract_strided_slice %352 {offsets = [0, 128], sizes = [8, 128], strides = [1, 1]} : vector<8x384xf32> to vector<8x128xf32>
    %356 = arith.mulf %355, %317 : vector<8x128xf32>
    %357 = vector.extract_strided_slice %352 {offsets = [0, 0], sizes = [8, 128], strides = [1, 1]} : vector<8x384xf32> to vector<8x128xf32>
    %358 = arith.mulf %357, %354 : vector<8x128xf32>
    %359 = arith.addf %356, %358 : vector<8x128xf32>
    %360 = vector.extract_strided_slice %352 {offsets = [0, 256], sizes = [8, 128], strides = [1, 1]} : vector<8x384xf32> to vector<8x128xf32>
    %361 = math.tanh %359 : vector<8x128xf32>
    %362 = arith.mulf %360, %361 : vector<8x128xf32>
    %363 = tpu.concatenate %362, %341 in 1 : vector<8x128xf32>, vector<8x128xf32> -> vector<8x256xf32>
    %364 = arith.truncf %363 : vector<8x256xf32> to vector<8x256xbf16>
    %c0_88 = arith.constant 0 : index
    %c0_89 = arith.constant 0 : index
    %365 = vector.load %arg17[%c0_88, %c0_89] : memref<256x512xbf16, #tpu.memory_space<vmem>>, vector<256x512xbf16>
    %cst_90 = arith.constant dense<0.000000e+00> : vector<8x512xf32>
    %366 = tpu.matmul %364, %365, %cst_90 {dimension_numbers = #tpu.dot_dimension_numbers<[1], [0], [0], [1], [0, 0, 1, 1], [], []>} : vector<8x256xbf16>, vector<256x512xbf16>, vector<8x512xf32> -> vector<8x512xf32>
    %367 = arith.addf %366, %17 : vector<8x512xf32>
    %368 = vector.extract_strided_slice %367 {offsets = [0, 0], sizes = [8, 384], strides = [1, 1]} : vector<8x512xf32> to vector<8x384xf32>
    %369 = arith.negf %368 : vector<8x384xf32>
    %370 = math.exp %369 : vector<8x384xf32>
    %cst_91 = arith.constant 1.000000e+00 : f32
    %371 = vector.broadcast %cst_91 : f32 to vector<8x384xf32>
    %372 = arith.addf %371, %370 : vector<8x384xf32>
    %373 = arith.divf %371, %372 : vector<8x384xf32>
    %374 = vector.extract_strided_slice %367 {offsets = [0, 384], sizes = [8, 128], strides = [1, 1]} : vector<8x512xf32> to vector<8x128xf32>
    %375 = math.tanh %374 : vector<8x128xf32>
    %376 = vector.extract_strided_slice %373 {offsets = [0, 128], sizes = [8, 128], strides = [1, 1]} : vector<8x384xf32> to vector<8x128xf32>
    %377 = arith.mulf %376, %338 : vector<8x128xf32>
    %378 = vector.extract_strided_slice %373 {offsets = [0, 0], sizes = [8, 128], strides = [1, 1]} : vector<8x384xf32> to vector<8x128xf32>
    %379 = arith.mulf %378, %375 : vector<8x128xf32>
    %380 = arith.addf %377, %379 : vector<8x128xf32>
    %381 = vector.extract_strided_slice %373 {offsets = [0, 256], sizes = [8, 128], strides = [1, 1]} : vector<8x384xf32> to vector<8x128xf32>
    %382 = math.tanh %380 : vector<8x128xf32>
    %383 = arith.mulf %381, %382 : vector<8x128xf32>
    %384 = tpu.concatenate %383, %362 in 1 : vector<8x128xf32>, vector<8x128xf32> -> vector<8x256xf32>
    %385 = arith.truncf %384 : vector<8x256xf32> to vector<8x256xbf16>
    %c0_92 = arith.constant 0 : index
    %c0_93 = arith.constant 0 : index
    %386 = vector.load %arg16[%c0_92, %c0_93] : memref<256x512xbf16, #tpu.memory_space<vmem>>, vector<256x512xbf16>
    %cst_94 = arith.constant dense<0.000000e+00> : vector<8x512xf32>
    %387 = tpu.matmul %385, %386, %cst_94 {dimension_numbers = #tpu.dot_dimension_numbers<[1], [0], [0], [1], [0, 0, 1, 1], [], []>} : vector<8x256xbf16>, vector<256x512xbf16>, vector<8x512xf32> -> vector<8x512xf32>
    %388 = arith.addf %387, %14 : vector<8x512xf32>
    %389 = vector.extract_strided_slice %388 {offsets = [0, 0], sizes = [8, 384], strides = [1, 1]} : vector<8x512xf32> to vector<8x384xf32>
    %390 = arith.negf %389 : vector<8x384xf32>
    %391 = math.exp %390 : vector<8x384xf32>
    %cst_95 = arith.constant 1.000000e+00 : f32
    %392 = vector.broadcast %cst_95 : f32 to vector<8x384xf32>
    %393 = arith.addf %392, %391 : vector<8x384xf32>
    %394 = arith.divf %392, %393 : vector<8x384xf32>
    %395 = vector.extract_strided_slice %388 {offsets = [0, 384], sizes = [8, 128], strides = [1, 1]} : vector<8x512xf32> to vector<8x128xf32>
    %396 = math.tanh %395 : vector<8x128xf32>
    %397 = vector.extract_strided_slice %394 {offsets = [0, 128], sizes = [8, 128], strides = [1, 1]} : vector<8x384xf32> to vector<8x128xf32>
    %398 = arith.mulf %397, %359 : vector<8x128xf32>
    %399 = vector.extract_strided_slice %394 {offsets = [0, 0], sizes = [8, 128], strides = [1, 1]} : vector<8x384xf32> to vector<8x128xf32>
    %400 = arith.mulf %399, %396 : vector<8x128xf32>
    %401 = arith.addf %398, %400 : vector<8x128xf32>
    %402 = vector.extract_strided_slice %394 {offsets = [0, 256], sizes = [8, 128], strides = [1, 1]} : vector<8x384xf32> to vector<8x128xf32>
    %403 = math.tanh %401 : vector<8x128xf32>
    %404 = arith.mulf %402, %403 : vector<8x128xf32>
    %405 = tpu.concatenate %404, %383 in 1 : vector<8x128xf32>, vector<8x128xf32> -> vector<8x256xf32>
    %406 = arith.truncf %405 : vector<8x256xf32> to vector<8x256xbf16>
    %c0_96 = arith.constant 0 : index
    %c0_97 = arith.constant 0 : index
    %407 = vector.load %arg17[%c0_96, %c0_97] : memref<256x512xbf16, #tpu.memory_space<vmem>>, vector<256x512xbf16>
    %cst_98 = arith.constant dense<0.000000e+00> : vector<8x512xf32>
    %408 = tpu.matmul %406, %407, %cst_98 {dimension_numbers = #tpu.dot_dimension_numbers<[1], [0], [0], [1], [0, 0, 1, 1], [], []>} : vector<8x256xbf16>, vector<256x512xbf16>, vector<8x512xf32> -> vector<8x512xf32>
    %409 = arith.addf %408, %17 : vector<8x512xf32>
    %410 = vector.extract_strided_slice %409 {offsets = [0, 0], sizes = [8, 384], strides = [1, 1]} : vector<8x512xf32> to vector<8x384xf32>
    %411 = arith.negf %410 : vector<8x384xf32>
    %412 = math.exp %411 : vector<8x384xf32>
    %cst_99 = arith.constant 1.000000e+00 : f32
    %413 = vector.broadcast %cst_99 : f32 to vector<8x384xf32>
    %414 = arith.addf %413, %412 : vector<8x384xf32>
    %415 = arith.divf %413, %414 : vector<8x384xf32>
    %416 = vector.extract_strided_slice %409 {offsets = [0, 384], sizes = [8, 128], strides = [1, 1]} : vector<8x512xf32> to vector<8x128xf32>
    %417 = math.tanh %416 : vector<8x128xf32>
    %418 = vector.extract_strided_slice %415 {offsets = [0, 128], sizes = [8, 128], strides = [1, 1]} : vector<8x384xf32> to vector<8x128xf32>
    %419 = arith.mulf %418, %380 : vector<8x128xf32>
    %420 = vector.extract_strided_slice %415 {offsets = [0, 0], sizes = [8, 128], strides = [1, 1]} : vector<8x384xf32> to vector<8x128xf32>
    %421 = arith.mulf %420, %417 : vector<8x128xf32>
    %422 = arith.addf %419, %421 : vector<8x128xf32>
    %423 = vector.extract_strided_slice %415 {offsets = [0, 256], sizes = [8, 128], strides = [1, 1]} : vector<8x384xf32> to vector<8x128xf32>
    %424 = math.tanh %422 : vector<8x128xf32>
    %425 = arith.mulf %423, %424 : vector<8x128xf32>
    %426 = tpu.concatenate %425, %404 in 1 : vector<8x128xf32>, vector<8x128xf32> -> vector<8x256xf32>
    %427 = arith.truncf %426 : vector<8x256xf32> to vector<8x256xbf16>
    %c0_100 = arith.constant 0 : index
    %c0_101 = arith.constant 0 : index
    %428 = vector.load %arg16[%c0_100, %c0_101] : memref<256x512xbf16, #tpu.memory_space<vmem>>, vector<256x512xbf16>
    %cst_102 = arith.constant dense<0.000000e+00> : vector<8x512xf32>
    %429 = tpu.matmul %427, %428, %cst_102 {dimension_numbers = #tpu.dot_dimension_numbers<[1], [0], [0], [1], [0, 0, 1, 1], [], []>} : vector<8x256xbf16>, vector<256x512xbf16>, vector<8x512xf32> -> vector<8x512xf32>
    %430 = arith.addf %429, %14 : vector<8x512xf32>
    %431 = vector.extract_strided_slice %430 {offsets = [0, 0], sizes = [8, 384], strides = [1, 1]} : vector<8x512xf32> to vector<8x384xf32>
    %432 = arith.negf %431 : vector<8x384xf32>
    %433 = math.exp %432 : vector<8x384xf32>
    %cst_103 = arith.constant 1.000000e+00 : f32
    %434 = vector.broadcast %cst_103 : f32 to vector<8x384xf32>
    %435 = arith.addf %434, %433 : vector<8x384xf32>
    %436 = arith.divf %434, %435 : vector<8x384xf32>
    %437 = vector.extract_strided_slice %430 {offsets = [0, 384], sizes = [8, 128], strides = [1, 1]} : vector<8x512xf32> to vector<8x128xf32>
    %438 = math.tanh %437 : vector<8x128xf32>
    %439 = vector.extract_strided_slice %436 {offsets = [0, 128], sizes = [8, 128], strides = [1, 1]} : vector<8x384xf32> to vector<8x128xf32>
    %440 = arith.mulf %439, %401 : vector<8x128xf32>
    %441 = vector.extract_strided_slice %436 {offsets = [0, 0], sizes = [8, 128], strides = [1, 1]} : vector<8x384xf32> to vector<8x128xf32>
    %442 = arith.mulf %441, %438 : vector<8x128xf32>
    %443 = arith.addf %440, %442 : vector<8x128xf32>
    %444 = vector.extract_strided_slice %436 {offsets = [0, 256], sizes = [8, 128], strides = [1, 1]} : vector<8x384xf32> to vector<8x128xf32>
    %445 = math.tanh %443 : vector<8x128xf32>
    %446 = arith.mulf %444, %445 : vector<8x128xf32>
    %447 = tpu.concatenate %446, %425 in 1 : vector<8x128xf32>, vector<8x128xf32> -> vector<8x256xf32>
    %448 = arith.truncf %447 : vector<8x256xf32> to vector<8x256xbf16>
    %c0_104 = arith.constant 0 : index
    %c0_105 = arith.constant 0 : index
    %449 = vector.load %arg17[%c0_104, %c0_105] : memref<256x512xbf16, #tpu.memory_space<vmem>>, vector<256x512xbf16>
    %cst_106 = arith.constant dense<0.000000e+00> : vector<8x512xf32>
    %450 = tpu.matmul %448, %449, %cst_106 {dimension_numbers = #tpu.dot_dimension_numbers<[1], [0], [0], [1], [0, 0, 1, 1], [], []>} : vector<8x256xbf16>, vector<256x512xbf16>, vector<8x512xf32> -> vector<8x512xf32>
    %451 = arith.addf %450, %17 : vector<8x512xf32>
    %452 = vector.extract_strided_slice %451 {offsets = [0, 0], sizes = [8, 384], strides = [1, 1]} : vector<8x512xf32> to vector<8x384xf32>
    %453 = arith.negf %452 : vector<8x384xf32>
    %454 = math.exp %453 : vector<8x384xf32>
    %cst_107 = arith.constant 1.000000e+00 : f32
    %455 = vector.broadcast %cst_107 : f32 to vector<8x384xf32>
    %456 = arith.addf %455, %454 : vector<8x384xf32>
    %457 = arith.divf %455, %456 : vector<8x384xf32>
    %458 = vector.extract_strided_slice %451 {offsets = [0, 384], sizes = [8, 128], strides = [1, 1]} : vector<8x512xf32> to vector<8x128xf32>
    %459 = math.tanh %458 : vector<8x128xf32>
    %460 = vector.extract_strided_slice %457 {offsets = [0, 128], sizes = [8, 128], strides = [1, 1]} : vector<8x384xf32> to vector<8x128xf32>
    %461 = arith.mulf %460, %422 : vector<8x128xf32>
    %462 = vector.extract_strided_slice %457 {offsets = [0, 0], sizes = [8, 128], strides = [1, 1]} : vector<8x384xf32> to vector<8x128xf32>
    %463 = arith.mulf %462, %459 : vector<8x128xf32>
    %464 = arith.addf %461, %463 : vector<8x128xf32>
    %465 = vector.extract_strided_slice %457 {offsets = [0, 256], sizes = [8, 128], strides = [1, 1]} : vector<8x384xf32> to vector<8x128xf32>
    %466 = math.tanh %464 : vector<8x128xf32>
    %467 = arith.mulf %465, %466 : vector<8x128xf32>
    %468 = tpu.concatenate %467, %446 in 1 : vector<8x128xf32>, vector<8x128xf32> -> vector<8x256xf32>
    %469 = arith.truncf %468 : vector<8x256xf32> to vector<8x256xbf16>
    %c0_108 = arith.constant 0 : index
    %c0_109 = arith.constant 0 : index
    %470 = vector.load %arg16[%c0_108, %c0_109] : memref<256x512xbf16, #tpu.memory_space<vmem>>, vector<256x512xbf16>
    %cst_110 = arith.constant dense<0.000000e+00> : vector<8x512xf32>
    %471 = tpu.matmul %469, %470, %cst_110 {dimension_numbers = #tpu.dot_dimension_numbers<[1], [0], [0], [1], [0, 0, 1, 1], [], []>} : vector<8x256xbf16>, vector<256x512xbf16>, vector<8x512xf32> -> vector<8x512xf32>
    %472 = arith.addf %471, %14 : vector<8x512xf32>
    %473 = vector.extract_strided_slice %472 {offsets = [0, 0], sizes = [8, 384], strides = [1, 1]} : vector<8x512xf32> to vector<8x384xf32>
    %474 = arith.negf %473 : vector<8x384xf32>
    %475 = math.exp %474 : vector<8x384xf32>
    %cst_111 = arith.constant 1.000000e+00 : f32
    %476 = vector.broadcast %cst_111 : f32 to vector<8x384xf32>
    %477 = arith.addf %476, %475 : vector<8x384xf32>
    %478 = arith.divf %476, %477 : vector<8x384xf32>
    %479 = vector.extract_strided_slice %472 {offsets = [0, 384], sizes = [8, 128], strides = [1, 1]} : vector<8x512xf32> to vector<8x128xf32>
    %480 = math.tanh %479 : vector<8x128xf32>
    %481 = vector.extract_strided_slice %478 {offsets = [0, 128], sizes = [8, 128], strides = [1, 1]} : vector<8x384xf32> to vector<8x128xf32>
    %482 = arith.mulf %481, %443 : vector<8x128xf32>
    %483 = vector.extract_strided_slice %478 {offsets = [0, 0], sizes = [8, 128], strides = [1, 1]} : vector<8x384xf32> to vector<8x128xf32>
    %484 = arith.mulf %483, %480 : vector<8x128xf32>
    %485 = arith.addf %482, %484 : vector<8x128xf32>
    %486 = vector.extract_strided_slice %478 {offsets = [0, 256], sizes = [8, 128], strides = [1, 1]} : vector<8x384xf32> to vector<8x128xf32>
    %487 = math.tanh %485 : vector<8x128xf32>
    %488 = arith.mulf %486, %487 : vector<8x128xf32>
    %489 = tpu.concatenate %488, %467 in 1 : vector<8x128xf32>, vector<8x128xf32> -> vector<8x256xf32>
    %490 = arith.truncf %489 : vector<8x256xf32> to vector<8x256xbf16>
    %c0_112 = arith.constant 0 : index
    %c0_113 = arith.constant 0 : index
    %491 = vector.load %arg17[%c0_112, %c0_113] : memref<256x512xbf16, #tpu.memory_space<vmem>>, vector<256x512xbf16>
    %cst_114 = arith.constant dense<0.000000e+00> : vector<8x512xf32>
    %492 = tpu.matmul %490, %491, %cst_114 {dimension_numbers = #tpu.dot_dimension_numbers<[1], [0], [0], [1], [0, 0, 1, 1], [], []>} : vector<8x256xbf16>, vector<256x512xbf16>, vector<8x512xf32> -> vector<8x512xf32>
    %493 = arith.addf %492, %17 : vector<8x512xf32>
    %494 = vector.extract_strided_slice %493 {offsets = [0, 0], sizes = [8, 384], strides = [1, 1]} : vector<8x512xf32> to vector<8x384xf32>
    %495 = arith.negf %494 : vector<8x384xf32>
    %496 = math.exp %495 : vector<8x384xf32>
    %cst_115 = arith.constant 1.000000e+00 : f32
    %497 = vector.broadcast %cst_115 : f32 to vector<8x384xf32>
    %498 = arith.addf %497, %496 : vector<8x384xf32>
    %499 = arith.divf %497, %498 : vector<8x384xf32>
    %500 = vector.extract_strided_slice %493 {offsets = [0, 384], sizes = [8, 128], strides = [1, 1]} : vector<8x512xf32> to vector<8x128xf32>
    %501 = math.tanh %500 : vector<8x128xf32>
    %502 = vector.extract_strided_slice %499 {offsets = [0, 128], sizes = [8, 128], strides = [1, 1]} : vector<8x384xf32> to vector<8x128xf32>
    %503 = arith.mulf %502, %464 : vector<8x128xf32>
    %504 = vector.extract_strided_slice %499 {offsets = [0, 0], sizes = [8, 128], strides = [1, 1]} : vector<8x384xf32> to vector<8x128xf32>
    %505 = arith.mulf %504, %501 : vector<8x128xf32>
    %506 = arith.addf %503, %505 : vector<8x128xf32>
    %507 = vector.extract_strided_slice %499 {offsets = [0, 256], sizes = [8, 128], strides = [1, 1]} : vector<8x384xf32> to vector<8x128xf32>
    %508 = math.tanh %506 : vector<8x128xf32>
    %509 = arith.mulf %507, %508 : vector<8x128xf32>
    %510 = tpu.concatenate %509, %488 in 1 : vector<8x128xf32>, vector<8x128xf32> -> vector<8x256xf32>
    %511 = arith.truncf %510 : vector<8x256xf32> to vector<8x256xbf16>
    %c0_116 = arith.constant 0 : index
    %c0_117 = arith.constant 0 : index
    %512 = vector.load %arg16[%c0_116, %c0_117] : memref<256x512xbf16, #tpu.memory_space<vmem>>, vector<256x512xbf16>
    %cst_118 = arith.constant dense<0.000000e+00> : vector<8x512xf32>
    %513 = tpu.matmul %511, %512, %cst_118 {dimension_numbers = #tpu.dot_dimension_numbers<[1], [0], [0], [1], [0, 0, 1, 1], [], []>} : vector<8x256xbf16>, vector<256x512xbf16>, vector<8x512xf32> -> vector<8x512xf32>
    %514 = arith.addf %513, %14 : vector<8x512xf32>
    %515 = vector.extract_strided_slice %514 {offsets = [0, 0], sizes = [8, 384], strides = [1, 1]} : vector<8x512xf32> to vector<8x384xf32>
    %516 = arith.negf %515 : vector<8x384xf32>
    %517 = math.exp %516 : vector<8x384xf32>
    %cst_119 = arith.constant 1.000000e+00 : f32
    %518 = vector.broadcast %cst_119 : f32 to vector<8x384xf32>
    %519 = arith.addf %518, %517 : vector<8x384xf32>
    %520 = arith.divf %518, %519 : vector<8x384xf32>
    %521 = vector.extract_strided_slice %514 {offsets = [0, 384], sizes = [8, 128], strides = [1, 1]} : vector<8x512xf32> to vector<8x128xf32>
    %522 = math.tanh %521 : vector<8x128xf32>
    %523 = vector.extract_strided_slice %520 {offsets = [0, 128], sizes = [8, 128], strides = [1, 1]} : vector<8x384xf32> to vector<8x128xf32>
    %524 = arith.mulf %523, %485 : vector<8x128xf32>
    %525 = vector.extract_strided_slice %520 {offsets = [0, 0], sizes = [8, 128], strides = [1, 1]} : vector<8x384xf32> to vector<8x128xf32>
    %526 = arith.mulf %525, %522 : vector<8x128xf32>
    %527 = arith.addf %524, %526 : vector<8x128xf32>
    %528 = vector.extract_strided_slice %520 {offsets = [0, 256], sizes = [8, 128], strides = [1, 1]} : vector<8x384xf32> to vector<8x128xf32>
    %529 = math.tanh %527 : vector<8x128xf32>
    %530 = arith.mulf %528, %529 : vector<8x128xf32>
    %531 = tpu.concatenate %530, %509 in 1 : vector<8x128xf32>, vector<8x128xf32> -> vector<8x256xf32>
    %532 = arith.truncf %531 : vector<8x256xf32> to vector<8x256xbf16>
    %c0_120 = arith.constant 0 : index
    %c0_121 = arith.constant 0 : index
    %533 = vector.load %arg17[%c0_120, %c0_121] : memref<256x512xbf16, #tpu.memory_space<vmem>>, vector<256x512xbf16>
    %cst_122 = arith.constant dense<0.000000e+00> : vector<8x512xf32>
    %534 = tpu.matmul %532, %533, %cst_122 {dimension_numbers = #tpu.dot_dimension_numbers<[1], [0], [0], [1], [0, 0, 1, 1], [], []>} : vector<8x256xbf16>, vector<256x512xbf16>, vector<8x512xf32> -> vector<8x512xf32>
    %535 = arith.addf %534, %17 : vector<8x512xf32>
    %536 = vector.extract_strided_slice %535 {offsets = [0, 0], sizes = [8, 384], strides = [1, 1]} : vector<8x512xf32> to vector<8x384xf32>
    %537 = arith.negf %536 : vector<8x384xf32>
    %538 = math.exp %537 : vector<8x384xf32>
    %cst_123 = arith.constant 1.000000e+00 : f32
    %539 = vector.broadcast %cst_123 : f32 to vector<8x384xf32>
    %540 = arith.addf %539, %538 : vector<8x384xf32>
    %541 = arith.divf %539, %540 : vector<8x384xf32>
    %542 = vector.extract_strided_slice %535 {offsets = [0, 384], sizes = [8, 128], strides = [1, 1]} : vector<8x512xf32> to vector<8x128xf32>
    %543 = math.tanh %542 : vector<8x128xf32>
    %544 = vector.extract_strided_slice %541 {offsets = [0, 128], sizes = [8, 128], strides = [1, 1]} : vector<8x384xf32> to vector<8x128xf32>
    %545 = arith.mulf %544, %506 : vector<8x128xf32>
    %546 = vector.extract_strided_slice %541 {offsets = [0, 0], sizes = [8, 128], strides = [1, 1]} : vector<8x384xf32> to vector<8x128xf32>
    %547 = arith.mulf %546, %543 : vector<8x128xf32>
    %548 = arith.addf %545, %547 : vector<8x128xf32>
    %549 = vector.extract_strided_slice %541 {offsets = [0, 256], sizes = [8, 128], strides = [1, 1]} : vector<8x384xf32> to vector<8x128xf32>
    %550 = math.tanh %548 : vector<8x128xf32>
    %551 = arith.mulf %549, %550 : vector<8x128xf32>
    %552 = tpu.concatenate %551, %509, %467, %425, %383, %341 in 0 : vector<8x128xf32>, vector<8x128xf32>, vector<8x128xf32>, vector<8x128xf32>, vector<8x128xf32>, vector<8x128xf32> -> vector<48x128xf32>
    %553 = arith.truncf %552 : vector<48x128xf32> to vector<48x128xbf16>
    %c2_i32_124 = arith.constant 2 : i32
    %554 = tpu.memref_slice %arg19[%c2_i32_124] : memref<3x!tpu.dma_semaphore, #tpu.memory_space<semaphore_mem>> -> memref<1x!tpu.dma_semaphore, #tpu.memory_space<semaphore_mem>>
    %555 = tpu.memref_squeeze %554 : memref<1x!tpu.dma_semaphore, #tpu.memory_space<semaphore_mem>> -> memref<!tpu.dma_semaphore, #tpu.memory_space<semaphore_mem>>
    tpu.wait_dma2 semaphore(%555 : memref<!tpu.dma_semaphore, #tpu.memory_space<semaphore_mem>>) src(%arg12 : memref<128x128xbf16, #tpu.memory_space<any>>) dst(%arg18 : memref<128x128xbf16, #tpu.memory_space<vmem>>)
    %c0_125 = arith.constant 0 : index
    %c0_126 = arith.constant 0 : index
    %556 = vector.load %arg18[%c0_125, %c0_126] : memref<128x128xbf16, #tpu.memory_space<vmem>>, vector<128x128xbf16>
    %cst_127 = arith.constant dense<0.000000e+00> : vector<48x128xf32>
    %557 = tpu.matmul %553, %556, %cst_127 {dimension_numbers = #tpu.dot_dimension_numbers<[1], [0], [0], [1], [0, 0, 1, 1], [], []>} : vector<48x128xbf16>, vector<128x128xbf16>, vector<48x128xf32> -> vector<48x128xf32>
    %c0_128 = arith.constant 0 : index
    %c0_129 = arith.constant 0 : index
    %558 = vector.load %arg13[%c0_128, %c0_129] : memref<1x128xf32, #tpu.memory_space<vmem>>, vector<1x128xf32>
    %559 = vector.broadcast %558 : vector<1x128xf32> to vector<48x128xf32>
    %560 = arith.addf %557, %559 : vector<48x128xf32>
    %c0_130 = arith.constant 0 : index
    %c0_131 = arith.constant 0 : index
    %561 = vector.load %arg14[%c0_130, %c0_131] : memref<48x128xf32, #tpu.memory_space<vmem>>, vector<48x128xf32>
    tpu.vector_store %arg14[%c0_130, %c0_131], %560 {strides = array<i32>} : memref<48x128xf32, #tpu.memory_space<vmem>>, vector<48x128xf32>,
    return
  }
}

</mosaic_0001>

<llo_original>
// kernel: vae_forward.1
$region0: #{vae_forward.1}
  #allocation0 [shape = 'u32[]', space=smem, size = 0x4, offset = 0x4, fixed_abs, tag = 'smem constant byte address 0x4 - core index']
  #allocation1 [shape = 'u32[144,128]{1,0:T(1,128)}', space=vmem, size = 0x12000, scoped, tag = 'internal scratch']
  #allocation2 [shape = 'bf16[256,512]{1,0:T(8,128)(2,1)}', space=vmem, size = 0x40000, scoped, tag = 'scratch operand']
  #allocation3 [shape = 'bf16[256,512]{1,0:T(8,128)(2,1)}', space=vmem, size = 0x40000, scoped, tag = 'scratch operand']
  #allocation4 [shape = 'bf16[128,128]{1,0:T(8,128)(2,1)}', space=vmem, size = 0x8000, scoped, tag = 'scratch operand']
  #allocation5 [shape = 's32[3]{0}', space=sflag, size = 0xc, scoped, tag = 'scratch operand']
  #allocation11 [shape = 's32[]', space=sflag, size = 0x4, offset = 0, fixed_abs, tag = 'sflag constant byte address 0x0 - dummy sync flag']
  #allocation12 [shape = 's32[]', space=sflag, size = 0x4, offset = 0, fixed_abs, tag = 'sflag constant byte address 0x0 - dummy sync flag']
  #allocation13 [shape = 'u32[]', space=smem, size = 0x4, offset = 0x44, fixed_abs, tag = 'smem constant byte address 0x44 - assertion arg 0']
  #allocation14 [shape = 'u32[]', space=smem, size = 0x4, offset = 0x48, fixed_abs, tag = 'smem constant byte address 0x48 - assertion arg 1']
  #allocation15 [shape = 's32[]', space=sflag, size = 0x4, offset = 0, fixed_abs, tag = 'sflag constant byte address 0x0 - dummy sync flag']
  #allocation16 [shape = 's32[]', space=sflag, size = 0x4, offset = 0, fixed_abs, tag = 'sflag constant byte address 0x0 - dummy sync flag']
  #allocation17 [shape = 's32[]', space=sflag, size = 0x4, offset = 0, fixed_abs, tag = 'sflag constant byte address 0x0 - dummy sync flag']
  %s0 = inlined_call_operand.vmem [shape: f32[48,128], index: 0, kind: input, shape index: {}]
  %s1 = inlined_call_operand.vmem [shape: f32[16,128], index: 1, kind: input, shape index: {}]
  %s2 = inlined_call_operand.hbm [shape: bf16[256,512], index: 2, kind: input, shape index: {}]
  %s3 = inlined_call_operand.vmem [shape: f32[1,512], index: 3, kind: input, shape index: {}]
  %s4 = inlined_call_operand.hbm [shape: bf16[256,512], index: 4, kind: input, shape index: {}]
  %s5 = inlined_call_operand.vmem [shape: f32[1,512], index: 5, kind: input, shape index: {}]
  %s6 = inlined_call_operand.hbm [shape: f32[128,256], index: 6, kind: input, shape index: {}]
  %s7 = inlined_call_operand.vmem [shape: f32[1,256], index: 7, kind: input, shape index: {}]
  %s8 = inlined_call_operand.hbm [shape: bf16[256,512], index: 8, kind: input, shape index: {}]
  %s9 = inlined_call_operand.vmem [shape: f32[1,512], index: 9, kind: input, shape index: {}]
  %s10 = inlined_call_operand.hbm [shape: bf16[256,512], index: 10, kind: input, shape index: {}]
  %s11 = inlined_call_operand.vmem [shape: f32[1,512], index: 11, kind: input, shape index: {}]
  %s12 = inlined_call_operand.vmem [shape: bf16[128,128], index: 12, kind: input, shape index: {}]
  %s13 = inlined_call_operand.vmem [shape: f32[1,128], index: 13, kind: input, shape index: {}]
  %s14 = inlined_call_operand.vmem [shape: f32[48,128], index: 14, kind: output, shape index: {0}]
  %s15 = inlined_call_operand.vmem [shape: f32[16,256], index: 15, kind: output, shape index: {1}]
  %16 = xla_tuple %s14, %s15
  %s17 = sld [smem:[#allocation0]]
  $region116: #{vae_forward.1} parent=0
    _
  %s19 = ssub.s32 1, %s17
  %s20 = scalar_select 0, %s19, %s17
  $region1: #{vae_forward.1} parent=0
    #allocation6 [shape = 'u8[262144]{0}', space=vmem, size = 0x40000, scoped, tag = 'input window, operand 2, single buffered']
    #allocation7 [shape = 's32[1]{0}', space=sflag, size = 0x4, scoped, tag = 'scoped memory for vae_forward.1']
    #allocation8 [shape = 'u8[262144]{0}', space=vmem, size = 0x40000, scoped, tag = 'input window, operand 4, single buffered']
    #allocation9 [shape = 's32[1]{0}', space=sflag, size = 0x4, scoped, tag = 'scoped memory for vae_forward.1']
    #allocation10 [shape = 'u8[131072]{0}', space=vmem, size = 0x20000, scoped, tag = 'input window, operand 6, single buffered']
    %21 = vsyncpa [#allocation7], 0
    %22 = vsyncpa [#allocation9], 0
    // Predicated region
    $region2: #{vae_forward.1} parent=1 // pred_check
      _
    $region3: #{vae_forward.1} parent=1 // pred_check_branch
      %24 = sbr.rel (0) target = $region5
    $region4: #{vae_forward.1} parent=1 // pred_region
      _
    $region5: #{vae_forward.1} parent=1 // pred_fallthru
      _
    // Predicated region
    $region6: #{vae_forward.1} parent=1 // pred_check
      _
    $region7: #{vae_forward.1} parent=1 // pred_check_branch
      %26 = sbr.rel (0) target = $region9
    $region8: #{vae_forward.1} parent=1 // pred_region
      _
    $region9: #{vae_forward.1} parent=1 // pred_fallthru
      _
    // Predicated region
    $region10: #{vae_forward.1} parent=1 // pred_check
      _
    $region11: #{vae_forward.1} parent=1 // pred_check_branch
      %28 = sbr.rel (0) target = $region13
    $region12: #{vae_forward.1} parent=1 // pred_region
      %s30 = ssub.s32 8192, 8192
      %31 = vsyncadd [#allocation7], %s30
      %s32 = sshll.u32 [#allocation6], 4
      %s33 = int_to_ptr.vmem [resolvable:$true] %s32
      %38 = dma.hbm_to_vmem [thread:$0]  %s2, 8192, %s33, [#allocation7], 256, 256, 16
    $region13: #{vae_forward.1} parent=1 // pred_fallthru
      _
    // Predicated region
    $region14: #{vae_forward.1} parent=1 // pred_check
      _
    $region15: #{vae_forward.1} parent=1 // pred_check_branch
      %40 = sbr.rel (0) target = $region17
    $region16: #{vae_forward.1} parent=1 // pred_region
      _
    $region17: #{vae_forward.1} parent=1 // pred_fallthru
      _
    // Predicated region
    $region18: #{vae_forward.1} parent=1 // pred_check
      _
    $region19: #{vae_forward.1} parent=1 // pred_check_branch
      %42 = sbr.rel (0) target = $region21
    $region20: #{vae_forward.1} parent=1 // pred_region
      %s44 = ssub.s32 8192, 8192
      %45 = vsyncadd [#allocation9], %s44
      %s46 = sshll.u32 [#allocation8], 4
      %s47 = int_to_ptr.vmem [resolvable:$true] %s46
      %52 = dma.hbm_to_vmem [thread:$0]  %s4, 8192, %s47, [#allocation9], 256, 256, 16
    $region21: #{vae_forward.1} parent=1 // pred_fallthru
      _
    // Predicated region
    $region22: #{vae_forward.1} parent=1 // pred_check
      _
    $region23: #{vae_forward.1} parent=1 // pred_check_branch
      %54 = sbr.rel (0) target = $region25
    $region24: #{vae_forward.1} parent=1 // pred_region
      _
    $region25: #{vae_forward.1} parent=1 // pred_fallthru
      _
    // Predicated region
    $region26: #{vae_forward.1} parent=1 // pred_check
      _
    $region27: #{vae_forward.1} parent=1 // pred_check_branch
      %56 = sbr.rel (0) target = $region29
    $region28: #{vae_forward.1} parent=1 // pred_region
      %s58 = ssub.s32 4096, 4096
      %59 = vsyncadd [#allocation9], %s58
      %s60 = sshll.u32 [#allocation10], 4
      %s61 = int_to_ptr.vmem [resolvable:$true] %s60
      %66 = dma.hbm_to_vmem [thread:$0]  %s6, 4096, %s61, [#allocation9], 256, 256, 16
    $region29: #{vae_forward.1} parent=1 // pred_fallthru
      _
    // Predicated region
    $region30: #{vae_forward.1} parent=1 // pred_check
      _
    $region31: #{vae_forward.1} parent=1 // pred_check_branch
      %68 = sbr.rel (0) target = $region33
    $region32: #{vae_forward.1} parent=1 // pred_region
      _
    $region33: #{vae_forward.1} parent=1 // pred_fallthru
      _
    // Predicated region
    $region34: #{vae_forward.1} parent=1 // pred_check
      _
    $region35: #{vae_forward.1} parent=1 // pred_check_branch
      %70 = sbr.rel (0) target = $region37
    $region36: #{vae_forward.1} parent=1 // pred_region
      _
    $region37: #{vae_forward.1} parent=1 // pred_fallthru
      _
    // Predicated region
    $region38: #{vae_forward.1} parent=1 // pred_check
      _
    $region39: #{vae_forward.1} parent=1 // pred_check_branch
      %72 = sbr.rel (0) target = $region41
    $region40: #{vae_forward.1} parent=1 // pred_region
      _
    $region41: #{vae_forward.1} parent=1 // pred_fallthru
      _
    // Predicated region
    $region42: #{vae_forward.1} parent=1 // pred_check
      _
    $region43: #{vae_forward.1} parent=1 // pred_check_branch
      %74 = sbr.rel (0) target = $region45
    $region44: #{vae_forward.1} parent=1 // pred_region
      _
    $region45: #{vae_forward.1} parent=1 // pred_fallthru
      _
    // Predicated region
    $region46: #{vae_forward.1} parent=1 // pred_check
      _
    $region47: #{vae_forward.1} parent=1 // pred_check_branch
      %76 = sbr.rel (0) target = $region49
    $region48: #{vae_forward.1} parent=1 // pred_region
      %77 = dma.done [#allocation7], 8192
    $region49: #{vae_forward.1} parent=1 // pred_fallthru
      _
    // Predicated region
    $region50: #{vae_forward.1} parent=1 // pred_check
      _
    $region51: #{vae_forward.1} parent=1 // pred_check_branch
      %79 = sbr.rel (0) target = $region53
    $region52: #{vae_forward.1} parent=1 // pred_region
      %80 = dma.done [#allocation9], 8192
    $region53: #{vae_forward.1} parent=1 // pred_fallthru
      _
    // Predicated region
    $region54: #{vae_forward.1} parent=1 // pred_check
      _
    $region55: #{vae_forward.1} parent=1 // pred_check_branch
      %82 = sbr.rel (0) target = $region57
    $region56: #{vae_forward.1} parent=1 // pred_region
      %83 = dma.done [#allocation9], 4096
    $region57: #{vae_forward.1} parent=1 // pred_fallthru
      _
    // Predicated region
    $region58: #{vae_forward.1} parent=1 // pred_check
      _
    $region59: #{vae_forward.1} parent=1 // pred_check_branch
      %86 = sbr.rel target = $region61
    $region60: #{vae_forward.1} parent=1 // pred_region
      %87 = sst [smem:[#allocation13]] [#allocation12]
      %88 = sst [smem:[#allocation14]] [#allocation11]
    $region61: #{vae_forward.1} parent=1 // pred_fallthru
      _
    %90 = shalt.err (0)
    %s92 = sshll.u32 [#allocation2], 4
    %s93 = int_to_ptr.vmem [resolvable:$true] %s92
    %95 = dma.hbm_to_vmem [thread:$0]  %s8, 8192, %s93, [#allocation5]
    %s96 = scalar_lea.sflag [#allocation5], 1
    // Predicated region
    $region62: #{vae_forward.1} parent=1 // pred_check
      _
    $region63: #{vae_forward.1} parent=1 // pred_check_branch
      %98 = sbr.rel target = $region65
    $region64: #{vae_forward.1} parent=1 // pred_region
      %99 = sst [smem:[#allocation13]] [#allocation16]
      %100 = sst [smem:[#allocation14]] [#allocation15]
    $region65: #{vae_forward.1} parent=1 // pred_fallthru
      _
    %102 = shalt.err (0)
    %s104 = sshll.u32 [#allocation3], 4
    %s105 = int_to_ptr.vmem [resolvable:$true] %s104
    %107 = dma.hbm_to_vmem [thread:$0]  %s10, 8192, %s105, %s96
    %s108 = scalar_lea.sflag [#allocation5], 2
    %p110 = scmp.lt.u32.totalorder 64, 8
    %p111 = pneg %p110
    // Predicated region
    $region66: #{vae_forward.1} parent=1 // pred_check
      _
    $region67: #{vae_forward.1} parent=1 // pred_check_branch
      %113 = sbr.rel (%p110) target = $region69
    $region68: #{vae_forward.1} parent=1 // pred_region
      %s129 = sand.u32 64, 7
      %p130 = scmp.eq.s32.totalorder %s129, 0
      // Predicated region
      $region81: #{vae_forward.1} parent=68 // pred_check
        %p131 = pneg %p130
      $region82: #{vae_forward.1} parent=68 // pred_check_branch
        %133 = sbr.rel (%p131) target = $region84
      $region83: #{vae_forward.1} parent=68 // pred_region
        loop: start=0, step=1, limit=1
        $region85: #{vae_forward.1} parent=83 // loop_pre_header
          _
        $region86: #{vae_forward.1} parent=83 // loop_header
          %s135 = sphi 0, %s139
          %p136 = scmp.ge.s32.totalorder %s135, 1
          %s140 = sphi %s12, %s12
          %s141 = sphi [#allocation4], [#allocation4]
        $region87: #{vae_forward.1} parent=83 // loop_header_branch
          %138 = sbr.rel (%p136) target = $region91
        $region88: #{vae_forward.1} parent=83 // loop_body
          %v142 = vld [vmem:[%s140] sm:$0xff]
          %143 = vst [vmem:[%s141] sm:$0xff] %v142
          %v144 = vld [vmem:[%s140 + $0x8] sm:$0xff]
          %145 = vst [vmem:[%s141 + $0x8] sm:$0xff] %v144
          %v146 = vld [vmem:[%s140 + $0x10] sm:$0xff]
          %147 = vst [vmem:[%s141 + $0x10] sm:$0xff] %v146
          %v148 = vld [vmem:[%s140 + $0x18] sm:$0xff]
          %149 = vst [vmem:[%s141 + $0x18] sm:$0xff] %v148
          %v150 = vld [vmem:[%s140 + $0x20] sm:$0xff]
          %151 = vst [vmem:[%s141 + $0x20] sm:$0xff] %v150
          %v152 = vld [vmem:[%s140 + $0x28] sm:$0xff]
          %153 = vst [vmem:[%s141 + $0x28] sm:$0xff] %v152
          %v154 = vld [vmem:[%s140 + $0x30] sm:$0xff]
          %155 = vst [vmem:[%s141 + $0x30] sm:$0xff] %v154
          %v156 = vld [vmem:[%s140 + $0x38] sm:$0xff]
          %157 = vst [vmem:[%s141 + $0x38] sm:$0xff] %v156
        $region89: #{vae_forward.1} parent=83 // loop_footer
          %s139 = sadd.s32 1, %s135
        $region90: #{vae_forward.1} parent=83 // loop_footer_branch
          %134 = sbr.rel target = $region86
        $region91: #{vae_forward.1} parent=83 // loop_exit
          _
      $region84: #{vae_forward.1} parent=68 // pred_fallthru
        _
      %p158 = pneg %p130
      // Predicated region
      $region92: #{vae_forward.1} parent=68 // pred_check
        _
      $region93: #{vae_forward.1} parent=68 // pred_check_branch
        %160 = sbr.rel (%p130) target = $region95
      $region94: #{vae_forward.1} parent=68 // pred_region
        %s161 = sand.u32 64, 7
      $region95: #{vae_forward.1} parent=68 // pred_fallthru
        _
    $region69: #{vae_forward.1} parent=1 // pred_fallthru
      _
    // Predicated region
    $region70: #{vae_forward.1} parent=1 // pred_check
      %p114 = pneg %p110
    $region71: #{vae_forward.1} parent=1 // pred_check_branch
      %116 = sbr.rel (%p114) target = $region73
    $region72: #{vae_forward.1} parent=1 // pred_region
      %s117 = sshll.u32 1, 64
      %s118 = ssub.s32 %s117, 1
      loop: start=0, step=1, limit=1
      $region74: #{vae_forward.1} parent=72 // loop_pre_header
        _
      $region75: #{vae_forward.1} parent=72 // loop_header
        %s120 = sphi 0, %s124
        %p121 = scmp.ge.s32.totalorder %s120, 1
        %s125 = sphi %s12, %s12
        %s126 = sphi [#allocation4], [#allocation4]
      $region76: #{vae_forward.1} parent=72 // loop_header_branch
        %123 = sbr.rel (%p121) target = $region80
      $region77: #{vae_forward.1} parent=72 // loop_body
        %v127 = vld [vmem:[%s125] sm:%s118]
        %128 = vst [vmem:[%s126] sm:%s118] %v127
      $region78: #{vae_forward.1} parent=72 // loop_footer
        %s124 = sadd.s32 1, %s120
      $region79: #{vae_forward.1} parent=72 // loop_footer_branch
        %119 = sbr.rel target = $region75
      $region80: #{vae_forward.1} parent=72 // loop_exit
        _
    $region73: #{vae_forward.1} parent=1 // pred_fallthru
      _
    // Predicated region
    $region96: #{vae_forward.1} parent=1 // pred_check
      _
    $region97: #{vae_forward.1} parent=1 // pred_check_branch
      %164 = sbr.rel (0) target = $region99
    $region98: #{vae_forward.1} parent=1 // pred_region
      %165 = vsyncadd %s108, 1024
    $region99: #{vae_forward.1} parent=1 // pred_fallthru
      _
    %v166 = vld [vmem:[%s3] sm:$0xf]
    %v168 = vlaneseq
    %v169 = vshrl.u32 %v168, 7
    %v170 = vsub.s32 0, %v169
    %v171 = vrot.slane %v166, %v170
    %v172 = vlaneseq
    %v173 = vshrl.u32 %v172, 7
    %v174 = vsub.s32 1, %v173
    %v175 = vrot.slane %v166, %v174
    %v176 = vlaneseq
    %v177 = vshrl.u32 %v176, 7
    %v178 = vsub.s32 2, %v177
    %v179 = vrot.slane %v166, %v178
    %v180 = vlaneseq
    %v181 = vshrl.u32 %v180, 7
    %v182 = vsub.s32 3, %v181
    %v183 = vrot.slane %v166, %v182
    %v188 = vld [vmem:[%s5] sm:$0xf]
    %v190 = vlaneseq
    %v191 = vshrl.u32 %v190, 7
    %v192 = vsub.s32 0, %v191
    %v193 = vrot.slane %v188, %v192
    %v194 = vlaneseq
    %v195 = vshrl.u32 %v194, 7
    %v196 = vsub.s32 1, %v195
    %v197 = vrot.slane %v188, %v196
    %v198 = vlaneseq
    %v199 = vshrl.u32 %v198, 7
    %v200 = vsub.s32 2, %v199
    %v201 = vrot.slane %v188, %v200
    %v202 = vlaneseq
    %v203 = vshrl.u32 %v202, 7
    %v204 = vsub.s32 3, %v203
    %v205 = vrot.slane %v188, %v204
    %v210 = vld [vmem:[%s9] sm:$0xf]
    %v212 = vlaneseq
    %v213 = vshrl.u32 %v212, 7
    %v214 = vsub.s32 0, %v213
    %v215 = vrot.slane %v210, %v214
    %v216 = vlaneseq
    %v217 = vshrl.u32 %v216, 7
    %v218 = vsub.s32 1, %v217
    %v219 = vrot.slane %v210, %v218
    %v220 = vlaneseq
    %v221 = vshrl.u32 %v220, 7
    %v222 = vsub.s32 2, %v221
    %v223 = vrot.slane %v210, %v222
    %v224 = vlaneseq
    %v225 = vshrl.u32 %v224, 7
    %v226 = vsub.s32 3, %v225
    %v227 = vrot.slane %v210, %v226
    %v232 = vld [vmem:[%s11] sm:$0xf]
    %v234 = vlaneseq
    %v235 = vshrl.u32 %v234, 7
    %v236 = vsub.s32 0, %v235
    %v237 = vrot.slane %v232, %v236
    %v238 = vlaneseq
    %v239 = vshrl.u32 %v238, 7
    %v240 = vsub.s32 1, %v239
    %v241 = vrot.slane %v232, %v240
    %v242 = vlaneseq
    %v243 = vshrl.u32 %v242, 7
    %v244 = vsub.s32 2, %v243
    %v245 = vrot.slane %v232, %v244
    %v246 = vlaneseq
    %v247 = vshrl.u32 %v246, 7
    %v248 = vsub.s32 3, %v247
    %v249 = vrot.slane %v232, %v248
    %v254 = vld [vmem:[%s0] sm:$0xff]
    %v255 = vpack.c.bf16 %v254, %v254
    %v256 = vpack.c.bf16 0.0, 0.0
    %v257 = vld [vmem:[#allocation6] sm:$0xff]
    %v258 = vld [vmem:[#allocation6 + $0x8] sm:$0xff]
    %v259 = vld [vmem:[#allocation6 + $0x10] sm:$0xff]
    %v260 = vld [vmem:[#allocation6 + $0x18] sm:$0xff]
    %v261 = vld [vmem:[#allocation6 + $0x20] sm:$0xff]
    %v262 = vld [vmem:[#allocation6 + $0x28] sm:$0xff]
    %v263 = vld [vmem:[#allocation6 + $0x30] sm:$0xff]
    %v264 = vld [vmem:[#allocation6 + $0x38] sm:$0xff]
    %v265 = vld [vmem:[#allocation6 + $0x40] sm:$0xff]
    %v266 = vld [vmem:[#allocation6 + $0x48] sm:$0xff]
    %v267 = vld [vmem:[#allocation6 + $0x50] sm:$0xff]
    %v268 = vld [vmem:[#allocation6 + $0x58] sm:$0xff]
    %v269 = vld [vmem:[#allocation6 + $0x60] sm:$0xff]
    %v270 = vld [vmem:[#allocation6 + $0x68] sm:$0xff]
    %v271 = vld [vmem:[#allocation6 + $0x70] sm:$0xff]
    %v272 = vld [vmem:[#allocation6 + $0x78] sm:$0xff]
    %v273 = vld [vmem:[#allocation6 + $0x80] sm:$0xff]
    %v274 = vld [vmem:[#allocation6 + $0x88] sm:$0xff]
    %v275 = vld [vmem:[#allocation6 + $0x90] sm:$0xff]
    %v276 = vld [vmem:[#allocation6 + $0x98] sm:$0xff]
    %v277 = vld [vmem:[#allocation6 + $0xa0] sm:$0xff]
    %v278 = vld [vmem:[#allocation6 + $0xa8] sm:$0xff]
    %v279 = vld [vmem:[#allocation6 + $0xb0] sm:$0xff]
    %v280 = vld [vmem:[#allocation6 + $0xb8] sm:$0xff]
    %v281 = vld [vmem:[#allocation6 + $0xc0] sm:$0xff]
    %v282 = vld [vmem:[#allocation6 + $0xc8] sm:$0xff]
    %v283 = vld [vmem:[#allocation6 + $0xd0] sm:$0xff]
    %v284 = vld [vmem:[#allocation6 + $0xd8] sm:$0xff]
    %v285 = vld [vmem:[#allocation6 + $0xe0] sm:$0xff]
    %v286 = vld [vmem:[#allocation6 + $0xe8] sm:$0xff]
    %v287 = vld [vmem:[#allocation6 + $0xf0] sm:$0xff]
    %v288 = vld [vmem:[#allocation6 + $0xf8] sm:$0xff]
    %v289 = vld [vmem:[#allocation6 + $0x100] sm:$0xff]
    %v290 = vld [vmem:[#allocation6 + $0x108] sm:$0xff]
    %v291 = vld [vmem:[#allocation6 + $0x110] sm:$0xff]
    %v292 = vld [vmem:[#allocation6 + $0x118] sm:$0xff]
    %v293 = vld [vmem:[#allocation6 + $0x120] sm:$0xff]
    %v294 = vld [vmem:[#allocation6 + $0x128] sm:$0xff]
    %v295 = vld [vmem:[#allocation6 + $0x130] sm:$0xff]
    %v296 = vld [vmem:[#allocation6 + $0x138] sm:$0xff]
    %v297 = vld [vmem:[#allocation6 + $0x140] sm:$0xff]
    %v298 = vld [vmem:[#allocation6 + $0x148] sm:$0xff]
    %v299 = vld [vmem:[#allocation6 + $0x150] sm:$0xff]
    %v300 = vld [vmem:[#allocation6 + $0x158] sm:$0xff]
    %v301 = vld [vmem:[#allocation6 + $0x160] sm:$0xff]
    %v302 = vld [vmem:[#allocation6 + $0x168] sm:$0xff]
    %v303 = vld [vmem:[#allocation6 + $0x170] sm:$0xff]
    %v304 = vld [vmem:[#allocation6 + $0x178] sm:$0xff]
    %v305 = vld [vmem:[#allocation6 + $0x180] sm:$0xff]
    %v306 = vld [vmem:[#allocation6 + $0x188] sm:$0xff]
    %v307 = vld [vmem:[#allocation6 + $0x190] sm:$0xff]
    %v308 = vld [vmem:[#allocation6 + $0x198] sm:$0xff]
    %v309 = vld [vmem:[#allocation6 + $0x1a0] sm:$0xff]
    %v310 = vld [vmem:[#allocation6 + $0x1a8] sm:$0xff]
    %v311 = vld [vmem:[#allocation6 + $0x1b0] sm:$0xff]
    %v312 = vld [vmem:[#allocation6 + $0x1b8] sm:$0xff]
    %v313 = vld [vmem:[#allocation6 + $0x1c0] sm:$0xff]
    %v314 = vld [vmem:[#allocation6 + $0x1c8] sm:$0xff]
    %v315 = vld [vmem:[#allocation6 + $0x1d0] sm:$0xff]
    %v316 = vld [vmem:[#allocation6 + $0x1d8] sm:$0xff]
    %v317 = vld [vmem:[#allocation6 + $0x1e0] sm:$0xff]
    %v318 = vld [vmem:[#allocation6 + $0x1e8] sm:$0xff]
    %v319 = vld [vmem:[#allocation6 + $0x1f0] sm:$0xff]
    %v320 = vld [vmem:[#allocation6 + $0x1f8] sm:$0xff]
    %v385 = vunpack.c.l.b16 %v257
    %v386 = vunpack.c.h.b16 %v257
    %v387 = vunpack.c.l.b16 %v258
    %v388 = vunpack.c.h.b16 %v258
    %v389 = vunpack.c.l.b16 %v259
    %v390 = vunpack.c.h.b16 %v259
    %v391 = vunpack.c.l.b16 %v260
    %v392 = vunpack.c.h.b16 %v260
    %v393 = vunpack.c.l.b16 %v261
    %v394 = vunpack.c.h.b16 %v261
    %v395 = vunpack.c.l.b16 %v262
    %v396 = vunpack.c.h.b16 %v262
    %v397 = vunpack.c.l.b16 %v263
    %v398 = vunpack.c.h.b16 %v263
    %v399 = vunpack.c.l.b16 %v264
    %v400 = vunpack.c.h.b16 %v264
    %v401 = vunpack.c.l.b16 %v265
    %v402 = vunpack.c.h.b16 %v265
    %v403 = vunpack.c.l.b16 %v266
    %v404 = vunpack.c.h.b16 %v266
    %v405 = vunpack.c.l.b16 %v267
    %v406 = vunpack.c.h.b16 %v267
    %v407 = vunpack.c.l.b16 %v268
    %v408 = vunpack.c.h.b16 %v268
    %v409 = vunpack.c.l.b16 %v269
    %v410 = vunpack.c.h.b16 %v269
    %v411 = vunpack.c.l.b16 %v270
    %v412 = vunpack.c.h.b16 %v270
    %v413 = vunpack.c.l.b16 %v271
    %v414 = vunpack.c.h.b16 %v271
    %v415 = vunpack.c.l.b16 %v272
    %v416 = vunpack.c.h.b16 %v272
    %v417 = vunpack.c.l.b16 %v273
    %v418 = vunpack.c.h.b16 %v273
    %v419 = vunpack.c.l.b16 %v274
    %v420 = vunpack.c.h.b16 %v274
    %v421 = vunpack.c.l.b16 %v275
    %v422 = vunpack.c.h.b16 %v275
    %v423 = vunpack.c.l.b16 %v276
    %v424 = vunpack.c.h.b16 %v276
    %v425 = vunpack.c.l.b16 %v277
    %v426 = vunpack.c.h.b16 %v277
    %v427 = vunpack.c.l.b16 %v278
    %v428 = vunpack.c.h.b16 %v278
    %v429 = vunpack.c.l.b16 %v279
    %v430 = vunpack.c.h.b16 %v279
    %v431 = vunpack.c.l.b16 %v280
    %v432 = vunpack.c.h.b16 %v280
    %v433 = vunpack.c.l.b16 %v281
    %v434 = vunpack.c.h.b16 %v281
    %v435 = vunpack.c.l.b16 %v282
    %v436 = vunpack.c.h.b16 %v282
    %v437 = vunpack.c.l.b16 %v283
    %v438 = vunpack.c.h.b16 %v283
    %v439 = vunpack.c.l.b16 %v284
    %v440 = vunpack.c.h.b16 %v284
    %v441 = vunpack.c.l.b16 %v285
    %v442 = vunpack.c.h.b16 %v285
    %v443 = vunpack.c.l.b16 %v286
    %v444 = vunpack.c.h.b16 %v286
    %v445 = vunpack.c.l.b16 %v287
    %v446 = vunpack.c.h.b16 %v287
    %v447 = vunpack.c.l.b16 %v288
    %v448 = vunpack.c.h.b16 %v288
    %v449 = vunpack.c.l.b16 %v289
    %v450 = vunpack.c.h.b16 %v289
    %v451 = vunpack.c.l.b16 %v290
    %v452 = vunpack.c.h.b16 %v290
    %v453 = vunpack.c.l.b16 %v291
    %v454 = vunpack.c.h.b16 %v291
    %v455 = vunpack.c.l.b16 %v292
    %v456 = vunpack.c.h.b16 %v292
    %v457 = vunpack.c.l.b16 %v293
    %v458 = vunpack.c.h.b16 %v293
    %v459 = vunpack.c.l.b16 %v294
    %v460 = vunpack.c.h.b16 %v294
    %v461 = vunpack.c.l.b16 %v295
    %v462 = vunpack.c.h.b16 %v295
    %v463 = vunpack.c.l.b16 %v296
    %v464 = vunpack.c.h.b16 %v296
    %v465 = vunpack.c.l.b16 %v297
    %v466 = vunpack.c.h.b16 %v297
    %v467 = vunpack.c.l.b16 %v298
    %v468 = vunpack.c.h.b16 %v298
    %v469 = vunpack.c.l.b16 %v299
    %v470 = vunpack.c.h.b16 %v299
    %v471 = vunpack.c.l.b16 %v300
    %v472 = vunpack.c.h.b16 %v300
    %v473 = vunpack.c.l.b16 %v301
    %v474 = vunpack.c.h.b16 %v301
    %v475 = vunpack.c.l.b16 %v302
    %v476 = vunpack.c.h.b16 %v302
    %v477 = vunpack.c.l.b16 %v303
    %v478 = vunpack.c.h.b16 %v303
    %v479 = vunpack.c.l.b16 %v304
    %v480 = vunpack.c.h.b16 %v304
    %v481 = vunpack.c.l.b16 %v305
    %v482 = vunpack.c.h.b16 %v305
    %v483 = vunpack.c.l.b16 %v306
    %v484 = vunpack.c.h.b16 %v306
    %v485 = vunpack.c.l.b16 %v307
    %v486 = vunpack.c.h.b16 %v307
    %v487 = vunpack.c.l.b16 %v308
    %v488 = vunpack.c.h.b16 %v308
    %v489 = vunpack.c.l.b16 %v309
    %v490 = vunpack.c.h.b16 %v309
    %v491 = vunpack.c.l.b16 %v310
    %v492 = vunpack.c.h.b16 %v310
    %v493 = vunpack.c.l.b16 %v311
    %v494 = vunpack.c.h.b16 %v311
    %v495 = vunpack.c.l.b16 %v312
    %v496 = vunpack.c.h.b16 %v312
    %v497 = vunpack.c.l.b16 %v313
    %v498 = vunpack.c.h.b16 %v313
    %v499 = vunpack.c.l.b16 %v314
    %v500 = vunpack.c.h.b16 %v314
    %v501 = vunpack.c.l.b16 %v315
    %v502 = vunpack.c.h.b16 %v315
    %v503 = vunpack.c.l.b16 %v316
    %v504 = vunpack.c.h.b16 %v316
    %v505 = vunpack.c.l.b16 %v317
    %v506 = vunpack.c.h.b16 %v317
    %v507 = vunpack.c.l.b16 %v318
    %v508 = vunpack.c.h.b16 %v318
    %v509 = vunpack.c.l.b16 %v319
    %v510 = vunpack.c.h.b16 %v319
    %v511 = vunpack.c.l.b16 %v320
    %v512 = vunpack.c.h.b16 %v320
    %v513 = vpack.c.b16 %v389, %v385
    %v514 = vpack.c.b16 %v390, %v386
    %v515 = vpack.c.b16 %v391, %v387
    %v516 = vpack.c.b16 %v392, %v388
    %v517 = vpack.c.b16 %v397, %v393
    %v518 = vpack.c.b16 %v398, %v394
    %v519 = vpack.c.b16 %v399, %v395
    %v520 = vpack.c.b16 %v400, %v396
    %v521 = vpack.c.b16 %v405, %v401
    %v522 = vpack.c.b16 %v406, %v402
    %v523 = vpack.c.b16 %v407, %v403
    %v524 = vpack.c.b16 %v408, %v404
    %v525 = vpack.c.b16 %v413, %v409
    %v526 = vpack.c.b16 %v414, %v410
    %v527 = vpack.c.b16 %v415, %v411
    %v528 = vpack.c.b16 %v416, %v412
    %v529 = vpack.c.b16 %v421, %v417
    %v530 = vpack.c.b16 %v422, %v418
    %v531 = vpack.c.b16 %v423, %v419
    %v532 = vpack.c.b16 %v424, %v420
    %v533 = vpack.c.b16 %v429, %v425
    %v534 = vpack.c.b16 %v430, %v426
    %v535 = vpack.c.b16 %v431, %v427
    %v536 = vpack.c.b16 %v432, %v428
    %v537 = vpack.c.b16 %v437, %v433
    %v538 = vpack.c.b16 %v438, %v434
    %v539 = vpack.c.b16 %v439, %v435
    %v540 = vpack.c.b16 %v440, %v436
    %v541 = vpack.c.b16 %v445, %v441
    %v542 = vpack.c.b16 %v446, %v442
    %v543 = vpack.c.b16 %v447, %v443
    %v544 = vpack.c.b16 %v448, %v444
    %v545 = vpack.c.b16 %v453, %v449
    %v546 = vpack.c.b16 %v454, %v450
    %v547 = vpack.c.b16 %v455, %v451
    %v548 = vpack.c.b16 %v456, %v452
    %v549 = vpack.c.b16 %v461, %v457
    %v550 = vpack.c.b16 %v462, %v458
    %v551 = vpack.c.b16 %v463, %v459
    %v552 = vpack.c.b16 %v464, %v460
    %v553 = vpack.c.b16 %v469, %v465
    %v554 = vpack.c.b16 %v470, %v466
    %v555 = vpack.c.b16 %v471, %v467
    %v556 = vpack.c.b16 %v472, %v468
    %v557 = vpack.c.b16 %v477, %v473
    %v558 = vpack.c.b16 %v478, %v474
    %v559 = vpack.c.b16 %v479, %v475
    %v560 = vpack.c.b16 %v480, %v476
    %v561 = vpack.c.b16 %v485, %v481
    %v562 = vpack.c.b16 %v486, %v482
    %v563 = vpack.c.b16 %v487, %v483
    %v564 = vpack.c.b16 %v488, %v484
    %v565 = vpack.c.b16 %v493, %v489
    %v566 = vpack.c.b16 %v494, %v490
    %v567 = vpack.c.b16 %v495, %v491
    %v568 = vpack.c.b16 %v496, %v492
    %v569 = vpack.c.b16 %v501, %v497
    %v570 = vpack.c.b16 %v502, %v498
    %v571 = vpack.c.b16 %v503, %v499
    %v572 = vpack.c.b16 %v504, %v500
    %v573 = vpack.c.b16 %v509, %v505
    %v574 = vpack.c.b16 %v510, %v506
    %v575 = vpack.c.b16 %v511, %v507
    %v576 = vpack.c.b16 %v512, %v508
    %641 = vmatprep.subr.bf16.mxu0 %v542
    %642 = vmatpush1.bf16.msra.mxu0 %v541
    %643 = vmatprep.subr.bf16.mxu0 %v538
    %644 = vmatpush1.bf16.msra.mxu0 %v537
    %645 = vmatprep.subr.bf16.mxu0 %v534
    %646 = vmatpush1.bf16.msra.mxu0 %v533
    %647 = vmatprep.subr.bf16.mxu0 %v530
    %648 = vmatpush1.bf16.msra.mxu0 %v529
    %649 = vmatprep.subr.bf16.mxu0 %v526
    %650 = vmatpush1.bf16.msra.mxu0 %v525
    %651 = vmatprep.subr.bf16.mxu0 %v522
    %652 = vmatpush1.bf16.msra.mxu0 %v521
    %653 = vmatprep.subr.bf16.mxu0 %v518
    %654 = vmatpush1.bf16.msra.mxu0 %v517
    %655 = vmatprep.subr.bf16.mxu0 %v514
    %656 = vmatpush1.bf16.msra.mxu0 %v513
    %657 = vmatprep.subr.bf16.mxu0 %v574
    %658 = vmatpush2.bf16.msra.mxu0 %v573
    %659 = vmatprep.subr.bf16.mxu0 %v570
    %660 = vmatpush2.bf16.msra.mxu0 %v569
    %661 = vmatprep.subr.bf16.mxu0 %v566
    %662 = vmatpush2.bf16.msra.mxu0 %v565
    %663 = vmatprep.subr.bf16.mxu0 %v562
    %664 = vmatpush2.bf16.msra.mxu0 %v561
    %665 = vmatprep.subr.bf16.mxu0 %v558
    %666 = vmatpush2.bf16.msra.mxu0 %v557
    %667 = vmatprep.subr.bf16.mxu0 %v554
    %668 = vmatpush2.bf16.msra.mxu0 %v553
    %669 = vmatprep.subr.bf16.mxu0 %v550
    %670 = vmatpush2.bf16.msra.mxu0 %v549
    %671 = vmatprep.subr.bf16.mxu0 %v546
    %672 = vmatpush2.bf16.msra.mxu0 %v545
    %673 = vmatprep.mubr.bf16.mxu0 %v256
    %674 = vmatmul.mubr.bf16.gmra.mxu0 %v255
    %v675 = vpop.f32.mrf.mxu0
    %v676 = vadd.f32 %v171, %v675
    %v677 = vpop.f32.mrf.mxu0
    %v678 = vadd.f32 %v175, %v677
    %v679 = vpop.f32.mrf.mxu0
    %v680 = vpop.f32.mrf.mxu0
    %681 = vdwg.mxu0
    %682 = vmatprep.subr.bf16.mxu0 %v544
    %683 = vmatpush1.bf16.msra.mxu0 %v543
    %684 = vmatprep.subr.bf16.mxu0 %v540
    %685 = vmatpush1.bf16.msra.mxu0 %v539
    %686 = vmatprep.subr.bf16.mxu0 %v536
    %687 = vmatpush1.bf16.msra.mxu0 %v535
    %688 = vmatprep.subr.bf16.mxu0 %v532
    %689 = vmatpush1.bf16.msra.mxu0 %v531
    %690 = vmatprep.subr.bf16.mxu0 %v528
    %691 = vmatpush1.bf16.msra.mxu0 %v527
    %692 = vmatprep.subr.bf16.mxu0 %v524
    %693 = vmatpush1.bf16.msra.mxu0 %v523
    %694 = vmatprep.subr.bf16.mxu0 %v520
    %695 = vmatpush1.bf16.msra.mxu0 %v519
    %696 = vmatprep.subr.bf16.mxu0 %v516
    %697 = vmatpush1.bf16.msra.mxu0 %v515
    %698 = vmatprep.subr.bf16.mxu0 %v576
    %699 = vmatpush2.bf16.msra.mxu0 %v575
    %700 = vmatprep.subr.bf16.mxu0 %v572
    %701 = vmatpush2.bf16.msra.mxu0 %v571
    %702 = vmatprep.subr.bf16.mxu0 %v568
    %703 = vmatpush2.bf16.msra.mxu0 %v567
    %704 = vmatprep.subr.bf16.mxu0 %v564
    %705 = vmatpush2.bf16.msra.mxu0 %v563
    %706 = vmatprep.subr.bf16.mxu0 %v560
    %707 = vmatpush2.bf16.msra.mxu0 %v559
    %708 = vmatprep.subr.bf16.mxu0 %v556
    %709 = vmatpush2.bf16.msra.mxu0 %v555
    %710 = vmatprep.subr.bf16.mxu0 %v552
    %711 = vmatpush2.bf16.msra.mxu0 %v551
    %712 = vmatprep.subr.bf16.mxu0 %v548
    %713 = vmatpush2.bf16.msra.mxu0 %v547
    %714 = vmatprep.mubr.bf16.mxu0 %v256
    %715 = vmatmul.mubr.bf16.gmra.mxu0 %v255
    %v716 = vpop.f32.mrf.mxu0
    %v717 = vadd.f32 %v179, %v716
    %v718 = vpop.f32.mrf.mxu0
    %v719 = vadd.f32 %v183, %v718
    %v720 = vpop.f32.mrf.mxu0
    %v721 = vpop.f32.mrf.mxu0
    %722 = vdwg.mxu0
    %v723 = vxor.u32 %v676, 2147483648
    %v724 = vxor.u32 %v678, 2147483648
    %v725 = vxor.u32 %v717, 2147483648
    %v726 = vmul.f32 %v723, 1.442695
    %v727 = vpow.pop %v726
    %v728 = vmul.f32 %v724, 1.442695
    %v729 = vpow.pop %v728
    %v730 = vmul.f32 %v725, 1.442695
    %v731 = vpow.pop %v730
    %v732 = vadd.f32 %v727, 1.0
    %v733 = vadd.f32 %v729, 1.0
    %v734 = vadd.f32 %v731, 1.0
    %v735 = vrcp.pop %v732
    %v736 = vmul.f32 1.0, %v735
    %v737 = vrcp.pop %v733
    %v738 = vmul.f32 1.0, %v737
    %v739 = vrcp.pop %v734
    %v740 = vmul.f32 1.0, %v739
    %v741 = vtanh.pop %v719
    %v742 = vmul.f32 %v738, 0.0
    %v743 = vmul.f32 %v736, %v741
    %v744 = vadd.f32 %v742, %v743
    %v745 = vtanh.pop %v744
    %v746 = vmul.f32 %v740, %v745
    %v747 = vpack.c.bf16 %v746, %v746
    %v748 = vld [vmem:[#allocation8] sm:$0xff]
    %v749 = vld [vmem:[#allocation8 + $0x8] sm:$0xff]
    %v750 = vld [vmem:[#allocation8 + $0x10] sm:$0xff]
    %v751 = vld [vmem:[#allocation8 + $0x18] sm:$0xff]
    %v752 = vld [vmem:[#allocation8 + $0x20] sm:$0xff]
    %v753 = vld [vmem:[#allocation8 + $0x28] sm:$0xff]
    %v754 = vld [vmem:[#allocation8 + $0x30] sm:$0xff]
    %v755 = vld [vmem:[#allocation8 + $0x38] sm:$0xff]
    %v756 = vld [vmem:[#allocation8 + $0x40] sm:$0xff]
    %v757 = vld [vmem:[#allocation8 + $0x48] sm:$0xff]
    %v758 = vld [vmem:[#allocation8 + $0x50] sm:$0xff]
    %v759 = vld [vmem:[#allocation8 + $0x58] sm:$0xff]
    %v760 = vld [vmem:[#allocation8 + $0x60] sm:$0xff]
    %v761 = vld [vmem:[#allocation8 + $0x68] sm:$0xff]
    %v762 = vld [vmem:[#allocation8 + $0x70] sm:$0xff]
    %v763 = vld [vmem:[#allocation8 + $0x78] sm:$0xff]
    %v764 = vld [vmem:[#allocation8 + $0x80] sm:$0xff]
    %v765 = vld [vmem:[#allocation8 + $0x88] sm:$0xff]
    %v766 = vld [vmem:[#allocation8 + $0x90] sm:$0xff]
    %v767 = vld [vmem:[#allocation8 + $0x98] sm:$0xff]
    %v768 = vld [vmem:[#allocation8 + $0xa0] sm:$0xff]
    %v769 = vld [vmem:[#allocation8 + $0xa8] sm:$0xff]
    %v770 = vld [vmem:[#allocation8 + $0xb0] sm:$0xff]
    %v771 = vld [vmem:[#allocation8 + $0xb8] sm:$0xff]
    %v772 = vld [vmem:[#allocation8 + $0xc0] sm:$0xff]
    %v773 = vld [vmem:[#allocation8 + $0xc8] sm:$0xff]
    %v774 = vld [vmem:[#allocation8 + $0xd0] sm:$0xff]
    %v775 = vld [vmem:[#allocation8 + $0xd8] sm:$0xff]
    %v776 = vld [vmem:[#allocation8 + $0xe0] sm:$0xff]
    %v777 = vld [vmem:[#allocation8 + $0xe8] sm:$0xff]
    %v778 = vld [vmem:[#allocation8 + $0xf0] sm:$0xff]
    %v779 = vld [vmem:[#allocation8 + $0xf8] sm:$0xff]
    %v780 = vld [vmem:[#allocation8 + $0x100] sm:$0xff]
    %v781 = vld [vmem:[#allocation8 + $0x108] sm:$0xff]
    %v782 = vld [vmem:[#allocation8 + $0x110] sm:$0xff]
    %v783 = vld [vmem:[#allocation8 + $0x118] sm:$0xff]
    %v784 = vld [vmem:[#allocation8 + $0x120] sm:$0xff]
    %v785 = vld [vmem:[#allocation8 + $0x128] sm:$0xff]
    %v786 = vld [vmem:[#allocation8 + $0x130] sm:$0xff]
    %v787 = vld [vmem:[#allocation8 + $0x138] sm:$0xff]
    %v788 = vld [vmem:[#allocation8 + $0x140] sm:$0xff]
    %v789 = vld [vmem:[#allocation8 + $0x148] sm:$0xff]
    %v790 = vld [vmem:[#allocation8 + $0x150] sm:$0xff]
    %v791 = vld [vmem:[#allocation8 + $0x158] sm:$0xff]
    %v792 = vld [vmem:[#allocation8 + $0x160] sm:$0xff]
    %v793 = vld [vmem:[#allocation8 + $0x168] sm:$0xff]
    %v794 = vld [vmem:[#allocation8 + $0x170] sm:$0xff]
    %v795 = vld [vmem:[#allocation8 + $0x178] sm:$0xff]
    %v796 = vld [vmem:[#allocation8 + $0x180] sm:$0xff]
    %v797 = vld [vmem:[#allocation8 + $0x188] sm:$0xff]
    %v798 = vld [vmem:[#allocation8 + $0x190] sm:$0xff]
    %v799 = vld [vmem:[#allocation8 + $0x198] sm:$0xff]
    %v800 = vld [vmem:[#allocation8 + $0x1a0] sm:$0xff]
    %v801 = vld [vmem:[#allocation8 + $0x1a8] sm:$0xff]
    %v802 = vld [vmem:[#allocation8 + $0x1b0] sm:$0xff]
    %v803 = vld [vmem:[#allocation8 + $0x1b8] sm:$0xff]
    %v804 = vld [vmem:[#allocation8 + $0x1c0] sm:$0xff]
    %v805 = vld [vmem:[#allocation8 + $0x1c8] sm:$0xff]
    %v806 = vld [vmem:[#allocation8 + $0x1d0] sm:$0xff]
    %v807 = vld [vmem:[#allocation8 + $0x1d8] sm:$0xff]
    %v808 = vld [vmem:[#allocation8 + $0x1e0] sm:$0xff]
    %v809 = vld [vmem:[#allocation8 + $0x1e8] sm:$0xff]
    %v810 = vld [vmem:[#allocation8 + $0x1f0] sm:$0xff]
    %v811 = vld [vmem:[#allocation8 + $0x1f8] sm:$0xff]
    %v876 = vunpack.c.l.b16 %v748
    %v877 = vunpack.c.h.b16 %v748
    %v878 = vunpack.c.l.b16 %v749
    %v879 = vunpack.c.h.b16 %v749
    %v880 = vunpack.c.l.b16 %v750
    %v881 = vunpack.c.h.b16 %v750
    %v882 = vunpack.c.l.b16 %v751
    %v883 = vunpack.c.h.b16 %v751
    %v884 = vunpack.c.l.b16 %v752
    %v885 = vunpack.c.h.b16 %v752
    %v886 = vunpack.c.l.b16 %v753
    %v887 = vunpack.c.h.b16 %v753
    %v888 = vunpack.c.l.b16 %v754
    %v889 = vunpack.c.h.b16 %v754
    %v890 = vunpack.c.l.b16 %v755
    %v891 = vunpack.c.h.b16 %v755
    %v892 = vunpack.c.l.b16 %v756
    %v893 = vunpack.c.h.b16 %v756
    %v894 = vunpack.c.l.b16 %v757
    %v895 = vunpack.c.h.b16 %v757
    %v896 = vunpack.c.l.b16 %v758
    %v897 = vunpack.c.h.b16 %v758
    %v898 = vunpack.c.l.b16 %v759
    %v899 = vunpack.c.h.b16 %v759
    %v900 = vunpack.c.l.b16 %v760
    %v901 = vunpack.c.h.b16 %v760
    %v902 = vunpack.c.l.b16 %v761
    %v903 = vunpack.c.h.b16 %v761
    %v904 = vunpack.c.l.b16 %v762
    %v905 = vunpack.c.h.b16 %v762
    %v906 = vunpack.c.l.b16 %v763
    %v907 = vunpack.c.h.b16 %v763
    %v908 = vunpack.c.l.b16 %v764
    %v909 = vunpack.c.h.b16 %v764
    %v910 = vunpack.c.l.b16 %v765
    %v911 = vunpack.c.h.b16 %v765
    %v912 = vunpack.c.l.b16 %v766
    %v913 = vunpack.c.h.b16 %v766
    %v914 = vunpack.c.l.b16 %v767
    %v915 = vunpack.c.h.b16 %v767
    %v916 = vunpack.c.l.b16 %v768
    %v917 = vunpack.c.h.b16 %v768
    %v918 = vunpack.c.l.b16 %v769
    %v919 = vunpack.c.h.b16 %v769
    %v920 = vunpack.c.l.b16 %v770
    %v921 = vunpack.c.h.b16 %v770
    %v922 = vunpack.c.l.b16 %v771
    %v923 = vunpack.c.h.b16 %v771
    %v924 = vunpack.c.l.b16 %v772
    %v925 = vunpack.c.h.b16 %v772
    %v926 = vunpack.c.l.b16 %v773
    %v927 = vunpack.c.h.b16 %v773
    %v928 = vunpack.c.l.b16 %v774
    %v929 = vunpack.c.h.b16 %v774
    %v930 = vunpack.c.l.b16 %v775
    %v931 = vunpack.c.h.b16 %v775
    %v932 = vunpack.c.l.b16 %v776
    %v933 = vunpack.c.h.b16 %v776
    %v934 = vunpack.c.l.b16 %v777
    %v935 = vunpack.c.h.b16 %v777
    %v936 = vunpack.c.l.b16 %v778
    %v937 = vunpack.c.h.b16 %v778
    %v938 = vunpack.c.l.b16 %v779
    %v939 = vunpack.c.h.b16 %v779
    %v940 = vunpack.c.l.b16 %v780
    %v941 = vunpack.c.h.b16 %v780
    %v942 = vunpack.c.l.b16 %v781
    %v943 = vunpack.c.h.b16 %v781
    %v944 = vunpack.c.l.b16 %v782
    %v945 = vunpack.c.h.b16 %v782
    %v946 = vunpack.c.l.b16 %v783
    %v947 = vunpack.c.h.b16 %v783
    %v948 = vunpack.c.l.b16 %v784
    %v949 = vunpack.c.h.b16 %v784
    %v950 = vunpack.c.l.b16 %v785
    %v951 = vunpack.c.h.b16 %v785
    %v952 = vunpack.c.l.b16 %v786
    %v953 = vunpack.c.h.b16 %v786
    %v954 = vunpack.c.l.b16 %v787
    %v955 = vunpack.c.h.b16 %v787
    %v956 = vunpack.c.l.b16 %v788
    %v957 = vunpack.c.h.b16 %v788
    %v958 = vunpack.c.l.b16 %v789
    %v959 = vunpack.c.h.b16 %v789
    %v960 = vunpack.c.l.b16 %v790
    %v961 = vunpack.c.h.b16 %v790
    %v962 = vunpack.c.l.b16 %v791
    %v963 = vunpack.c.h.b16 %v791
    %v964 = vunpack.c.l.b16 %v792
    %v965 = vunpack.c.h.b16 %v792
    %v966 = vunpack.c.l.b16 %v793
    %v967 = vunpack.c.h.b16 %v793
    %v968 = vunpack.c.l.b16 %v794
    %v969 = vunpack.c.h.b16 %v794
    %v970 = vunpack.c.l.b16 %v795
    %v971 = vunpack.c.h.b16 %v795
    %v972 = vunpack.c.l.b16 %v796
    %v973 = vunpack.c.h.b16 %v796
    %v974 = vunpack.c.l.b16 %v797
    %v975 = vunpack.c.h.b16 %v797
    %v976 = vunpack.c.l.b16 %v798
    %v977 = vunpack.c.h.b16 %v798
    %v978 = vunpack.c.l.b16 %v799
    %v979 = vunpack.c.h.b16 %v799
    %v980 = vunpack.c.l.b16 %v800
    %v981 = vunpack.c.h.b16 %v800
    %v982 = vunpack.c.l.b16 %v801
    %v983 = vunpack.c.h.b16 %v801
    %v984 = vunpack.c.l.b16 %v802
    %v985 = vunpack.c.h.b16 %v802
    %v986 = vunpack.c.l.b16 %v803
    %v987 = vunpack.c.h.b16 %v803
    %v988 = vunpack.c.l.b16 %v804
    %v989 = vunpack.c.h.b16 %v804
    %v990 = vunpack.c.l.b16 %v805
    %v991 = vunpack.c.h.b16 %v805
    %v992 = vunpack.c.l.b16 %v806
    %v993 = vunpack.c.h.b16 %v806
    %v994 = vunpack.c.l.b16 %v807
    %v995 = vunpack.c.h.b16 %v807
    %v996 = vunpack.c.l.b16 %v808
    %v997 = vunpack.c.h.b16 %v808
    %v998 = vunpack.c.l.b16 %v809
    %v999 = vunpack.c.h.b16 %v809
    %v1000 = vunpack.c.l.b16 %v810
    %v1001 = vunpack.c.h.b16 %v810
    %v1002 = vunpack.c.l.b16 %v811
    %v1003 = vunpack.c.h.b16 %v811
    %v1004 = vpack.c.b16 %v880, %v876
    %v1005 = vpack.c.b16 %v881, %v877
    %v1006 = vpack.c.b16 %v882, %v878
    %v1007 = vpack.c.b16 %v883, %v879
    %v1008 = vpack.c.b16 %v888, %v884
    %v1009 = vpack.c.b16 %v889, %v885
    %v1010 = vpack.c.b16 %v890, %v886
    %v1011 = vpack.c.b16 %v891, %v887
    %v1012 = vpack.c.b16 %v896, %v892
    %v1013 = vpack.c.b16 %v897, %v893
    %v1014 = vpack.c.b16 %v898, %v894
    %v1015 = vpack.c.b16 %v899, %v895
    %v1016 = vpack.c.b16 %v904, %v900
    %v1017 = vpack.c.b16 %v905, %v901
    %v1018 = vpack.c.b16 %v906, %v902
    %v1019 = vpack.c.b16 %v907, %v903
    %v1020 = vpack.c.b16 %v912, %v908
    %v1021 = vpack.c.b16 %v913, %v909
    %v1022 = vpack.c.b16 %v914, %v910
    %v1023 = vpack.c.b16 %v915, %v911
    %v1024 = vpack.c.b16 %v920, %v916
    %v1025 = vpack.c.b16 %v921, %v917
    %v1026 = vpack.c.b16 %v922, %v918
    %v1027 = vpack.c.b16 %v923, %v919
    %v1028 = vpack.c.b16 %v928, %v924
    %v1029 = vpack.c.b16 %v929, %v925
    %v1030 = vpack.c.b16 %v930, %v926
    %v1031 = vpack.c.b16 %v931, %v927
    %v1032 = vpack.c.b16 %v936, %v932
    %v1033 = vpack.c.b16 %v937, %v933
    %v1034 = vpack.c.b16 %v938, %v934
    %v1035 = vpack.c.b16 %v939, %v935
    %v1036 = vpack.c.b16 %v944, %v940
    %v1037 = vpack.c.b16 %v945, %v941
    %v1038 = vpack.c.b16 %v946, %v942
    %v1039 = vpack.c.b16 %v947, %v943
    %v1040 = vpack.c.b16 %v952, %v948
    %v1041 = vpack.c.b16 %v953, %v949
    %v1042 = vpack.c.b16 %v954, %v950
    %v1043 = vpack.c.b16 %v955, %v951
    %v1044 = vpack.c.b16 %v960, %v956
    %v1045 = vpack.c.b16 %v961, %v957
    %v1046 = vpack.c.b16 %v962, %v958
    %v1047 = vpack.c.b16 %v963, %v959
    %v1048 = vpack.c.b16 %v968, %v964
    %v1049 = vpack.c.b16 %v969, %v965
    %v1050 = vpack.c.b16 %v970, %v966
    %v1051 = vpack.c.b16 %v971, %v967
    %v1052 = vpack.c.b16 %v976, %v972
    %v1053 = vpack.c.b16 %v977, %v973
    %v1054 = vpack.c.b16 %v978, %v974
    %v1055 = vpack.c.b16 %v979, %v975
    %v1056 = vpack.c.b16 %v984, %v980
    %v1057 = vpack.c.b16 %v985, %v981
    %v1058 = vpack.c.b16 %v986, %v982
    %v1059 = vpack.c.b16 %v987, %v983
    %v1060 = vpack.c.b16 %v992, %v988
    %v1061 = vpack.c.b16 %v993, %v989
    %v1062 = vpack.c.b16 %v994, %v990
    %v1063 = vpack.c.b16 %v995, %v991
    %v1064 = vpack.c.b16 %v1000, %v996
    %v1065 = vpack.c.b16 %v1001, %v997
    %v1066 = vpack.c.b16 %v1002, %v998
    %v1067 = vpack.c.b16 %v1003, %v999
    %1132 = vmatprep.subr.bf16.mxu0 %v1033
    %1133 = vmatpush1.bf16.msra.mxu0 %v1032
    %1134 = vmatprep.subr.bf16.mxu0 %v1029
    %1135 = vmatpush1.bf16.msra.mxu0 %v1028
    %1136 = vmatprep.subr.bf16.mxu0 %v1025
    %1137 = vmatpush1.bf16.msra.mxu0 %v1024
    %1138 = vmatprep.subr.bf16.mxu0 %v1021
    %1139 = vmatpush1.bf16.msra.mxu0 %v1020
    %1140 = vmatprep.subr.bf16.mxu0 %v1017
    %1141 = vmatpush1.bf16.msra.mxu0 %v1016
    %1142 = vmatprep.subr.bf16.mxu0 %v1013
    %1143 = vmatpush1.bf16.msra.mxu0 %v1012
    %1144 = vmatprep.subr.bf16.mxu0 %v1009
    %1145 = vmatpush1.bf16.msra.mxu0 %v1008
    %1146 = vmatprep.subr.bf16.mxu0 %v1005
    %1147 = vmatpush1.bf16.msra.mxu0 %v1004
    %1148 = vmatprep.subr.bf16.mxu0 %v1065
    %1149 = vmatpush2.bf16.msra.mxu0 %v1064
    %1150 = vmatprep.subr.bf16.mxu0 %v1061
    %1151 = vmatpush2.bf16.msra.mxu0 %v1060
    %1152 = vmatprep.subr.bf16.mxu0 %v1057
    %1153 = vmatpush2.bf16.msra.mxu0 %v1056
    %1154 = vmatprep.subr.bf16.mxu0 %v1053
    %1155 = vmatpush2.bf16.msra.mxu0 %v1052
    %1156 = vmatprep.subr.bf16.mxu0 %v1049
    %1157 = vmatpush2.bf16.msra.mxu0 %v1048
    %1158 = vmatprep.subr.bf16.mxu0 %v1045
    %1159 = vmatpush2.bf16.msra.mxu0 %v1044
    %1160 = vmatprep.subr.bf16.mxu0 %v1041
    %1161 = vmatpush2.bf16.msra.mxu0 %v1040
    %1162 = vmatprep.subr.bf16.mxu0 %v1037
    %1163 = vmatpush2.bf16.msra.mxu0 %v1036
    %1164 = vmatprep.mubr.bf16.mxu0 %v256
    %1165 = vmatmul.mubr.bf16.gmra.mxu0 %v747
    %v1166 = vpop.f32.mrf.mxu0
    %v1167 = vadd.f32 %v193, %v1166
    %v1168 = vpop.f32.mrf.mxu0
    %v1169 = vadd.f32 %v197, %v1168
    %v1170 = vpop.f32.mrf.mxu0
    %v1171 = vpop.f32.mrf.mxu0
    %1172 = vdwg.mxu0
    %1173 = vmatprep.subr.bf16.mxu0 %v1035
    %1174 = vmatpush1.bf16.msra.mxu0 %v1034
    %1175 = vmatprep.subr.bf16.mxu0 %v1031
    %1176 = vmatpush1.bf16.msra.mxu0 %v1030
    %1177 = vmatprep.subr.bf16.mxu0 %v1027
    %1178 = vmatpush1.bf16.msra.mxu0 %v1026
    %1179 = vmatprep.subr.bf16.mxu0 %v1023
    %1180 = vmatpush1.bf16.msra.mxu0 %v1022
    %1181 = vmatprep.subr.bf16.mxu0 %v1019
    %1182 = vmatpush1.bf16.msra.mxu0 %v1018
    %1183 = vmatprep.subr.bf16.mxu0 %v1015
    %1184 = vmatpush1.bf16.msra.mxu0 %v1014
    %1185 = vmatprep.subr.bf16.mxu0 %v1011
    %1186 = vmatpush1.bf16.msra.mxu0 %v1010
    %1187 = vmatprep.subr.bf16.mxu0 %v1007
    %1188 = vmatpush1.bf16.msra.mxu0 %v1006
    %1189 = vmatprep.subr.bf16.mxu0 %v1067
    %1190 = vmatpush2.bf16.msra.mxu0 %v1066
    %1191 = vmatprep.subr.bf16.mxu0 %v1063
    %1192 = vmatpush2.bf16.msra.mxu0 %v1062
    %1193 = vmatprep.subr.bf16.mxu0 %v1059
    %1194 = vmatpush2.bf16.msra.mxu0 %v1058
    %1195 = vmatprep.subr.bf16.mxu0 %v1055
    %1196 = vmatpush2.bf16.msra.mxu0 %v1054
    %1197 = vmatprep.subr.bf16.mxu0 %v1051
    %1198 = vmatpush2.bf16.msra.mxu0 %v1050
    %1199 = vmatprep.subr.bf16.mxu0 %v1047
    %1200 = vmatpush2.bf16.msra.mxu0 %v1046
    %1201 = vmatprep.subr.bf16.mxu0 %v1043
    %1202 = vmatpush2.bf16.msra.mxu0 %v1042
    %1203 = vmatprep.subr.bf16.mxu0 %v1039
    %1204 = vmatpush2.bf16.msra.mxu0 %v1038
    %1205 = vmatprep.mubr.bf16.mxu0 %v256
    %1206 = vmatmul.mubr.bf16.gmra.mxu0 %v747
    %v1207 = vpop.f32.mrf.mxu0
    %v1208 = vadd.f32 %v201, %v1207
    %v1209 = vpop.f32.mrf.mxu0
    %v1210 = vadd.f32 %v205, %v1209
    %v1211 = vpop.f32.mrf.mxu0
    %v1212 = vpop.f32.mrf.mxu0
    %1213 = vdwg.mxu0
    %v1214 = vxor.u32 %v1167, 2147483648
    %v1215 = vxor.u32 %v1169, 2147483648
    %v1216 = vxor.u32 %v1208, 2147483648
    %v1217 = vmul.f32 %v1214, 1.442695
    %v1218 = vpow.pop %v1217
    %v1219 = vmul.f32 %v1215, 1.442695
    %v1220 = vpow.pop %v1219
    %v1221 = vmul.f32 %v1216, 1.442695
    %v1222 = vpow.pop %v1221
    %v1223 = vadd.f32 %v1218, 1.0
    %v1224 = vadd.f32 %v1220, 1.0
    %v1225 = vadd.f32 %v1222, 1.0
    %v1226 = vrcp.pop %v1223
    %v1227 = vmul.f32 1.0, %v1226
    %v1228 = vrcp.pop %v1224
    %v1229 = vmul.f32 1.0, %v1228
    %v1230 = vrcp.pop %v1225
    %v1231 = vmul.f32 1.0, %v1230
    %v1232 = vtanh.pop %v1210
    %v1233 = vmul.f32 %v1229, 0.0
    %v1234 = vmul.f32 %v1227, %v1232
    %v1235 = vadd.f32 %v1233, %v1234
    %v1236 = vtanh.pop %v1235
    %v1237 = vmul.f32 %v1231, %v1236
    %v1238 = vld [vmem:[%s0 + $0x8] sm:$0xff]
    %v1239 = vpack.c.bf16 %v1238, %v1238
    %1240 = vmatprep.subr.bf16.mxu0 %v542
    %1241 = vmatpush1.bf16.msra.mxu0 %v541
    %1242 = vmatprep.subr.bf16.mxu0 %v538
    %1243 = vmatpush1.bf16.msra.mxu0 %v537
    %1244 = vmatprep.subr.bf16.mxu0 %v534
    %1245 = vmatpush1.bf16.msra.mxu0 %v533
    %1246 = vmatprep.subr.bf16.mxu0 %v530
    %1247 = vmatpush1.bf16.msra.mxu0 %v529
    %1248 = vmatprep.subr.bf16.mxu0 %v526
    %1249 = vmatpush1.bf16.msra.mxu0 %v525
    %1250 = vmatprep.subr.bf16.mxu0 %v522
    %1251 = vmatpush1.bf16.msra.mxu0 %v521
    %1252 = vmatprep.subr.bf16.mxu0 %v518
    %1253 = vmatpush1.bf16.msra.mxu0 %v517
    %1254 = vmatprep.subr.bf16.mxu0 %v514
    %1255 = vmatpush1.bf16.msra.mxu0 %v513
    %1256 = vmatprep.subr.bf16.mxu0 %v574
    %1257 = vmatpush2.bf16.msra.mxu0 %v573
    %1258 = vmatprep.subr.bf16.mxu0 %v570
    %1259 = vmatpush2.bf16.msra.mxu0 %v569
    %1260 = vmatprep.subr.bf16.mxu0 %v566
    %1261 = vmatpush2.bf16.msra.mxu0 %v565
    %1262 = vmatprep.subr.bf16.mxu0 %v562
    %1263 = vmatpush2.bf16.msra.mxu0 %v561
    %1264 = vmatprep.subr.bf16.mxu0 %v558
    %1265 = vmatpush2.bf16.msra.mxu0 %v557
    %1266 = vmatprep.subr.bf16.mxu0 %v554
    %1267 = vmatpush2.bf16.msra.mxu0 %v553
    %1268 = vmatprep.subr.bf16.mxu0 %v550
    %1269 = vmatpush2.bf16.msra.mxu0 %v549
    %1270 = vmatprep.subr.bf16.mxu0 %v546
    %1271 = vmatpush2.bf16.msra.mxu0 %v545
    %1272 = vmatprep.mubr.bf16.mxu0 %v747
    %1273 = vmatmul.mubr.bf16.gmra.mxu0 %v1239
    %v1274 = vpop.f32.mrf.mxu0
    %v1275 = vadd.f32 %v171, %v1274
    %v1276 = vpop.f32.mrf.mxu0
    %v1277 = vadd.f32 %v175, %v1276
    %v1278 = vpop.f32.mrf.mxu0
    %v1279 = vpop.f32.mrf.mxu0
    %1280 = vdwg.mxu0
    %1281 = vmatprep.subr.bf16.mxu0 %v544
    %1282 = vmatpush1.bf16.msra.mxu0 %v543
    %1283 = vmatprep.subr.bf16.mxu0 %v540
    %1284 = vmatpush1.bf16.msra.mxu0 %v539
    %1285 = vmatprep.subr.bf16.mxu0 %v536
    %1286 = vmatpush1.bf16.msra.mxu0 %v535
    %1287 = vmatprep.subr.bf16.mxu0 %v532
    %1288 = vmatpush1.bf16.msra.mxu0 %v531
    %1289 = vmatprep.subr.bf16.mxu0 %v528
    %1290 = vmatpush1.bf16.msra.mxu0 %v527
    %1291 = vmatprep.subr.bf16.mxu0 %v524
    %1292 = vmatpush1.bf16.msra.mxu0 %v523
    %1293 = vmatprep.subr.bf16.mxu0 %v520
    %1294 = vmatpush1.bf16.msra.mxu0 %v519
    %1295 = vmatprep.subr.bf16.mxu0 %v516
    %1296 = vmatpush1.bf16.msra.mxu0 %v515
    %1297 = vmatprep.subr.bf16.mxu0 %v576
    %1298 = vmatpush2.bf16.msra.mxu0 %v575
    %1299 = vmatprep.subr.bf16.mxu0 %v572
    %1300 = vmatpush2.bf16.msra.mxu0 %v571
    %1301 = vmatprep.subr.bf16.mxu0 %v568
    %1302 = vmatpush2.bf16.msra.mxu0 %v567
    %1303 = vmatprep.subr.bf16.mxu0 %v564
    %1304 = vmatpush2.bf16.msra.mxu0 %v563
    %1305 = vmatprep.subr.bf16.mxu0 %v560
    %1306 = vmatpush2.bf16.msra.mxu0 %v559
    %1307 = vmatprep.subr.bf16.mxu0 %v556
    %1308 = vmatpush2.bf16.msra.mxu0 %v555
    %1309 = vmatprep.subr.bf16.mxu0 %v552
    %1310 = vmatpush2.bf16.msra.mxu0 %v551
    %1311 = vmatprep.subr.bf16.mxu0 %v548
    %1312 = vmatpush2.bf16.msra.mxu0 %v547
    %1313 = vmatprep.mubr.bf16.mxu0 %v747
    %1314 = vmatmul.mubr.bf16.gmra.mxu0 %v1239
    %v1315 = vpop.f32.mrf.mxu0
    %v1316 = vadd.f32 %v179, %v1315
    %v1317 = vpop.f32.mrf.mxu0
    %v1318 = vadd.f32 %v183, %v1317
    %v1319 = vpop.f32.mrf.mxu0
    %v1320 = vpop.f32.mrf.mxu0
    %1321 = vdwg.mxu0
    %v1322 = vxor.u32 %v1275, 2147483648
    %v1323 = vxor.u32 %v1277, 2147483648
    %v1324 = vxor.u32 %v1316, 2147483648
    %v1325 = vmul.f32 %v1322, 1.442695
    %v1326 = vpow.pop %v1325
    %v1327 = vmul.f32 %v1323, 1.442695
    %v1328 = vpow.pop %v1327
    %v1329 = vmul.f32 %v1324, 1.442695
    %v1330 = vpow.pop %v1329
    %v1331 = vadd.f32 %v1326, 1.0
    %v1332 = vadd.f32 %v1328, 1.0
    %v1333 = vadd.f32 %v1330, 1.0
    %v1334 = vrcp.pop %v1331
    %v1335 = vmul.f32 1.0, %v1334
    %v1336 = vrcp.pop %v1332
    %v1337 = vmul.f32 1.0, %v1336
    %v1338 = vrcp.pop %v1333
    %v1339 = vmul.f32 1.0, %v1338
    %v1340 = vtanh.pop %v1318
    %v1341 = vmul.f32 %v1337, %v744
    %v1342 = vmul.f32 %v1335, %v1340
    %v1343 = vadd.f32 %v1341, %v1342
    %v1344 = vtanh.pop %v1343
    %v1345 = vmul.f32 %v1339, %v1344
    %v1346 = vpack.c.bf16 %v1345, %v1345
    %v1347 = vpack.c.bf16 %v1237, %v1237
    %1348 = vmatprep.subr.bf16.mxu0 %v1033
    %1349 = vmatpush1.bf16.msra.mxu0 %v1032
    %1350 = vmatprep.subr.bf16.mxu0 %v1029
    %1351 = vmatpush1.bf16.msra.mxu0 %v1028
    %1352 = vmatprep.subr.bf16.mxu0 %v1025
    %1353 = vmatpush1.bf16.msra.mxu0 %v1024
    %1354 = vmatprep.subr.bf16.mxu0 %v1021
    %1355 = vmatpush1.bf16.msra.mxu0 %v1020
    %1356 = vmatprep.subr.bf16.mxu0 %v1017
    %1357 = vmatpush1.bf16.msra.mxu0 %v1016
    %1358 = vmatprep.subr.bf16.mxu0 %v1013
    %1359 = vmatpush1.bf16.msra.mxu0 %v1012
    %1360 = vmatprep.subr.bf16.mxu0 %v1009
    %1361 = vmatpush1.bf16.msra.mxu0 %v1008
    %1362 = vmatprep.subr.bf16.mxu0 %v1005
    %1363 = vmatpush1.bf16.msra.mxu0 %v1004
    %1364 = vmatprep.subr.bf16.mxu0 %v1065
    %1365 = vmatpush2.bf16.msra.mxu0 %v1064
    %1366 = vmatprep.subr.bf16.mxu0 %v1061
    %1367 = vmatpush2.bf16.msra.mxu0 %v1060
    %1368 = vmatprep.subr.bf16.mxu0 %v1057
    %1369 = vmatpush2.bf16.msra.mxu0 %v1056
    %1370 = vmatprep.subr.bf16.mxu0 %v1053
    %1371 = vmatpush2.bf16.msra.mxu0 %v1052
    %1372 = vmatprep.subr.bf16.mxu0 %v1049
    %1373 = vmatpush2.bf16.msra.mxu0 %v1048
    %1374 = vmatprep.subr.bf16.mxu0 %v1045
    %1375 = vmatpush2.bf16.msra.mxu0 %v1044
    %1376 = vmatprep.subr.bf16.mxu0 %v1041
    %1377 = vmatpush2.bf16.msra.mxu0 %v1040
    %1378 = vmatprep.subr.bf16.mxu0 %v1037
    %1379 = vmatpush2.bf16.msra.mxu0 %v1036
    %1380 = vmatprep.mubr.bf16.mxu0 %v1347
    %1381 = vmatmul.mubr.bf16.gmra.mxu0 %v1346
    %v1382 = vpop.f32.mrf.mxu0
    %v1383 = vadd.f32 %v193, %v1382
    %v1384 = vpop.f32.mrf.mxu0
    %v1385 = vadd.f32 %v197, %v1384
    %v1386 = vpop.f32.mrf.mxu0
    %v1387 = vpop.f32.mrf.mxu0
    %1388 = vdwg.mxu0
    %1389 = vmatprep.subr.bf16.mxu0 %v1035
    %1390 = vmatpush1.bf16.msra.mxu0 %v1034
    %1391 = vmatprep.subr.bf16.mxu0 %v1031
    %1392 = vmatpush1.bf16.msra.mxu0 %v1030
    %1393 = vmatprep.subr.bf16.mxu0 %v1027
    %1394 = vmatpush1.bf16.msra.mxu0 %v1026
    %1395 = vmatprep.subr.bf16.mxu0 %v1023
    %1396 = vmatpush1.bf16.msra.mxu0 %v1022
    %1397 = vmatprep.subr.bf16.mxu0 %v1019
    %1398 = vmatpush1.bf16.msra.mxu0 %v1018
    %1399 = vmatprep.subr.bf16.mxu0 %v1015
    %1400 = vmatpush1.bf16.msra.mxu0 %v1014
    %1401 = vmatprep.subr.bf16.mxu0 %v1011
    %1402 = vmatpush1.bf16.msra.mxu0 %v1010
    %1403 = vmatprep.subr.bf16.mxu0 %v1007
    %1404 = vmatpush1.bf16.msra.mxu0 %v1006
    %1405 = vmatprep.subr.bf16.mxu0 %v1067
    %1406 = vmatpush2.bf16.msra.mxu0 %v1066
    %1407 = vmatprep.subr.bf16.mxu0 %v1063
    %1408 = vmatpush2.bf16.msra.mxu0 %v1062
    %1409 = vmatprep.subr.bf16.mxu0 %v1059
    %1410 = vmatpush2.bf16.msra.mxu0 %v1058
    %1411 = vmatprep.subr.bf16.mxu0 %v1055
    %1412 = vmatpush2.bf16.msra.mxu0 %v1054
    %1413 = vmatprep.subr.bf16.mxu0 %v1051
    %1414 = vmatpush2.bf16.msra.mxu0 %v1050
    %1415 = vmatprep.subr.bf16.mxu0 %v1047
    %1416 = vmatpush2.bf16.msra.mxu0 %v1046
    %1417 = vmatprep.subr.bf16.mxu0 %v1043
    %1418 = vmatpush2.bf16.msra.mxu0 %v1042
    %1419 = vmatprep.subr.bf16.mxu0 %v1039
    %1420 = vmatpush2.bf16.msra.mxu0 %v1038
    %1421 = vmatprep.mubr.bf16.mxu0 %v1347
    %1422 = vmatmul.mubr.bf16.gmra.mxu0 %v1346
    %v1423 = vpop.f32.mrf.mxu0
    %v1424 = vadd.f32 %v201, %v1423
    %v1425 = vpop.f32.mrf.mxu0
    %v1426 = vadd.f32 %v205, %v1425
    %v1427 = vpop.f32.mrf.mxu0
    %v1428 = vpop.f32.mrf.mxu0
    %1429 = vdwg.mxu0
    %v1430 = vxor.u32 %v1383, 2147483648
    %v1431 = vxor.u32 %v1385, 2147483648
    %v1432 = vxor.u32 %v1424, 2147483648
    %v1433 = vmul.f32 %v1430, 1.442695
    %v1434 = vpow.pop %v1433
    %v1435 = vmul.f32 %v1431, 1.442695
    %v1436 = vpow.pop %v1435
    %v1437 = vmul.f32 %v1432, 1.442695
    %v1438 = vpow.pop %v1437
    %v1439 = vadd.f32 %v1434, 1.0
    %v1440 = vadd.f32 %v1436, 1.0
    %v1441 = vadd.f32 %v1438, 1.0
    %v1442 = vrcp.pop %v1439
    %v1443 = vmul.f32 1.0, %v1442
    %v1444 = vrcp.pop %v1440
    %v1445 = vmul.f32 1.0, %v1444
    %v1446 = vrcp.pop %v1441
    %v1447 = vmul.f32 1.0, %v1446
    %v1448 = vtanh.pop %v1426
    %v1449 = vmul.f32 %v1445, %v1235
    %v1450 = vmul.f32 %v1443, %v1448
    %v1451 = vadd.f32 %v1449, %v1450
    %v1452 = vtanh.pop %v1451
    %v1453 = vmul.f32 %v1447, %v1452
    %v1454 = vld [vmem:[%s0 + $0x10] sm:$0xff]
    %v1455 = vpack.c.bf16 %v1454, %v1454
    %1456 = vmatprep.subr.bf16.mxu0 %v542
    %1457 = vmatpush1.bf16.msra.mxu0 %v541
    %1458 = vmatprep.subr.bf16.mxu0 %v538
    %1459 = vmatpush1.bf16.msra.mxu0 %v537
    %1460 = vmatprep.subr.bf16.mxu0 %v534
    %1461 = vmatpush1.bf16.msra.mxu0 %v533
    %1462 = vmatprep.subr.bf16.mxu0 %v530
    %1463 = vmatpush1.bf16.msra.mxu0 %v529
    %1464 = vmatprep.subr.bf16.mxu0 %v526
    %1465 = vmatpush1.bf16.msra.mxu0 %v525
    %1466 = vmatprep.subr.bf16.mxu0 %v522
    %1467 = vmatpush1.bf16.msra.mxu0 %v521
    %1468 = vmatprep.subr.bf16.mxu0 %v518
    %1469 = vmatpush1.bf16.msra.mxu0 %v517
    %1470 = vmatprep.subr.bf16.mxu0 %v514
    %1471 = vmatpush1.bf16.msra.mxu0 %v513
    %1472 = vmatprep.subr.bf16.mxu0 %v574
    %1473 = vmatpush2.bf16.msra.mxu0 %v573
    %1474 = vmatprep.subr.bf16.mxu0 %v570
    %1475 = vmatpush2.bf16.msra.mxu0 %v569
    %1476 = vmatprep.subr.bf16.mxu0 %v566
    %1477 = vmatpush2.bf16.msra.mxu0 %v565
    %1478 = vmatprep.subr.bf16.mxu0 %v562
    %1479 = vmatpush2.bf16.msra.mxu0 %v561
    %1480 = vmatprep.subr.bf16.mxu0 %v558
    %1481 = vmatpush2.bf16.msra.mxu0 %v557
    %1482 = vmatprep.subr.bf16.mxu0 %v554
    %1483 = vmatpush2.bf16.msra.mxu0 %v553
    %1484 = vmatprep.subr.bf16.mxu0 %v550
    %1485 = vmatpush2.bf16.msra.mxu0 %v549
    %1486 = vmatprep.subr.bf16.mxu0 %v546
    %1487 = vmatpush2.bf16.msra.mxu0 %v545
    %1488 = vmatprep.mubr.bf16.mxu0 %v1346
    %1489 = vmatmul.mubr.bf16.gmra.mxu0 %v1455
    %v1490 = vpop.f32.mrf.mxu0
    %v1491 = vadd.f32 %v171, %v1490
    %v1492 = vpop.f32.mrf.mxu0
    %v1493 = vadd.f32 %v175, %v1492
    %v1494 = vpop.f32.mrf.mxu0
    %v1495 = vpop.f32.mrf.mxu0
    %1496 = vdwg.mxu0
    %1497 = vmatprep.subr.bf16.mxu0 %v544
    %1498 = vmatpush1.bf16.msra.mxu0 %v543
    %1499 = vmatprep.subr.bf16.mxu0 %v540
    %1500 = vmatpush1.bf16.msra.mxu0 %v539
    %1501 = vmatprep.subr.bf16.mxu0 %v536
    %1502 = vmatpush1.bf16.msra.mxu0 %v535
    %1503 = vmatprep.subr.bf16.mxu0 %v532
    %1504 = vmatpush1.bf16.msra.mxu0 %v531
    %1505 = vmatprep.subr.bf16.mxu0 %v528
    %1506 = vmatpush1.bf16.msra.mxu0 %v527
    %1507 = vmatprep.subr.bf16.mxu0 %v524
    %1508 = vmatpush1.bf16.msra.mxu0 %v523
    %1509 = vmatprep.subr.bf16.mxu0 %v520
    %1510 = vmatpush1.bf16.msra.mxu0 %v519
    %1511 = vmatprep.subr.bf16.mxu0 %v516
    %1512 = vmatpush1.bf16.msra.mxu0 %v515
    %1513 = vmatprep.subr.bf16.mxu0 %v576
    %1514 = vmatpush2.bf16.msra.mxu0 %v575
    %1515 = vmatprep.subr.bf16.mxu0 %v572
    %1516 = vmatpush2.bf16.msra.mxu0 %v571
    %1517 = vmatprep.subr.bf16.mxu0 %v568
    %1518 = vmatpush2.bf16.msra.mxu0 %v567
    %1519 = vmatprep.subr.bf16.mxu0 %v564
    %1520 = vmatpush2.bf16.msra.mxu0 %v563
    %1521 = vmatprep.subr.bf16.mxu0 %v560
    %1522 = vmatpush2.bf16.msra.mxu0 %v559
    %1523 = vmatprep.subr.bf16.mxu0 %v556
    %1524 = vmatpush2.bf16.msra.mxu0 %v555
    %1525 = vmatprep.subr.bf16.mxu0 %v552
    %1526 = vmatpush2.bf16.msra.mxu0 %v551
    %1527 = vmatprep.subr.bf16.mxu0 %v548
    %1528 = vmatpush2.bf16.msra.mxu0 %v547
    %1529 = vmatprep.mubr.bf16.mxu0 %v1346
    %1530 = vmatmul.mubr.bf16.gmra.mxu0 %v1455
    %v1531 = vpop.f32.mrf.mxu0
    %v1532 = vadd.f32 %v179, %v1531
    %v1533 = vpop.f32.mrf.mxu0
    %v1534 = vadd.f32 %v183, %v1533
    %v1535 = vpop.f32.mrf.mxu0
    %v1536 = vpop.f32.mrf.mxu0
    %1537 = vdwg.mxu0
    %v1538 = vxor.u32 %v1491, 2147483648
    %v1539 = vxor.u32 %v1493, 2147483648
    %v1540 = vxor.u32 %v1532, 2147483648
    %v1541 = vmul.f32 %v1538, 1.442695
    %v1542 = vpow.pop %v1541
    %v1543 = vmul.f32 %v1539, 1.442695
    %v1544 = vpow.pop %v1543
    %v1545 = vmul.f32 %v1540, 1.442695
    %v1546 = vpow.pop %v1545
    %v1547 = vadd.f32 %v1542, 1.0
    %v1548 = vadd.f32 %v1544, 1.0
    %v1549 = vadd.f32 %v1546, 1.0
    %v1550 = vrcp.pop %v1547
    %v1551 = vmul.f32 1.0, %v1550
    %v1552 = vrcp.pop %v1548
    %v1553 = vmul.f32 1.0, %v1552
    %v1554 = vrcp.pop %v1549
    %v1555 = vmul.f32 1.0, %v1554
    %v1556 = vtanh.pop %v1534
    %v1557 = vmul.f32 %v1553, %v1343
    %v1558 = vmul.f32 %v1551, %v1556
    %v1559 = vadd.f32 %v1557, %v1558
    %v1560 = vtanh.pop %v1559
    %v1561 = vmul.f32 %v1555, %v1560
    %v1562 = vpack.c.bf16 %v1561, %v1561
    %v1563 = vpack.c.bf16 %v1453, %v1453
    %1564 = vmatprep.subr.bf16.mxu0 %v1033
    %1565 = vmatpush1.bf16.msra.mxu0 %v1032
    %1566 = vmatprep.subr.bf16.mxu0 %v1029
    %1567 = vmatpush1.bf16.msra.mxu0 %v1028
    %1568 = vmatprep.subr.bf16.mxu0 %v1025
    %1569 = vmatpush1.bf16.msra.mxu0 %v1024
    %1570 = vmatprep.subr.bf16.mxu0 %v1021
    %1571 = vmatpush1.bf16.msra.mxu0 %v1020
    %1572 = vmatprep.subr.bf16.mxu0 %v1017
    %1573 = vmatpush1.bf16.msra.mxu0 %v1016
    %1574 = vmatprep.subr.bf16.mxu0 %v1013
    %1575 = vmatpush1.bf16.msra.mxu0 %v1012
    %1576 = vmatprep.subr.bf16.mxu0 %v1009
    %1577 = vmatpush1.bf16.msra.mxu0 %v1008
    %1578 = vmatprep.subr.bf16.mxu0 %v1005
    %1579 = vmatpush1.bf16.msra.mxu0 %v1004
    %1580 = vmatprep.subr.bf16.mxu0 %v1065
    %1581 = vmatpush2.bf16.msra.mxu0 %v1064
    %1582 = vmatprep.subr.bf16.mxu0 %v1061
    %1583 = vmatpush2.bf16.msra.mxu0 %v1060
    %1584 = vmatprep.subr.bf16.mxu0 %v1057
    %1585 = vmatpush2.bf16.msra.mxu0 %v1056
    %1586 = vmatprep.subr.bf16.mxu0 %v1053
    %1587 = vmatpush2.bf16.msra.mxu0 %v1052
    %1588 = vmatprep.subr.bf16.mxu0 %v1049
    %1589 = vmatpush2.bf16.msra.mxu0 %v1048
    %1590 = vmatprep.subr.bf16.mxu0 %v1045
    %1591 = vmatpush2.bf16.msra.mxu0 %v1044
    %1592 = vmatprep.subr.bf16.mxu0 %v1041
    %1593 = vmatpush2.bf16.msra.mxu0 %v1040
    %1594 = vmatprep.subr.bf16.mxu0 %v1037
    %1595 = vmatpush2.bf16.msra.mxu0 %v1036
    %1596 = vmatprep.mubr.bf16.mxu0 %v1563
    %1597 = vmatmul.mubr.bf16.gmra.mxu0 %v1562
    %v1598 = vpop.f32.mrf.mxu0
    %v1599 = vadd.f32 %v193, %v1598
    %v1600 = vpop.f32.mrf.mxu0
    %v1601 = vadd.f32 %v197, %v1600
    %v1602 = vpop.f32.mrf.mxu0
    %v1603 = vpop.f32.mrf.mxu0
    %1604 = vdwg.mxu0
    %1605 = vmatprep.subr.bf16.mxu0 %v1035
    %1606 = vmatpush1.bf16.msra.mxu0 %v1034
    %1607 = vmatprep.subr.bf16.mxu0 %v1031
    %1608 = vmatpush1.bf16.msra.mxu0 %v1030
    %1609 = vmatprep.subr.bf16.mxu0 %v1027
    %1610 = vmatpush1.bf16.msra.mxu0 %v1026
    %1611 = vmatprep.subr.bf16.mxu0 %v1023
    %1612 = vmatpush1.bf16.msra.mxu0 %v1022
    %1613 = vmatprep.subr.bf16.mxu0 %v1019
    %1614 = vmatpush1.bf16.msra.mxu0 %v1018
    %1615 = vmatprep.subr.bf16.mxu0 %v1015
    %1616 = vmatpush1.bf16.msra.mxu0 %v1014
    %1617 = vmatprep.subr.bf16.mxu0 %v1011
    %1618 = vmatpush1.bf16.msra.mxu0 %v1010
    %1619 = vmatprep.subr.bf16.mxu0 %v1007
    %1620 = vmatpush1.bf16.msra.mxu0 %v1006
    %1621 = vmatprep.subr.bf16.mxu0 %v1067
    %1622 = vmatpush2.bf16.msra.mxu0 %v1066
    %1623 = vmatprep.subr.bf16.mxu0 %v1063
    %1624 = vmatpush2.bf16.msra.mxu0 %v1062
    %1625 = vmatprep.subr.bf16.mxu0 %v1059
    %1626 = vmatpush2.bf16.msra.mxu0 %v1058
    %1627 = vmatprep.subr.bf16.mxu0 %v1055
    %1628 = vmatpush2.bf16.msra.mxu0 %v1054
    %1629 = vmatprep.subr.bf16.mxu0 %v1051
    %1630 = vmatpush2.bf16.msra.mxu0 %v1050
    %1631 = vmatprep.subr.bf16.mxu0 %v1047
    %1632 = vmatpush2.bf16.msra.mxu0 %v1046
    %1633 = vmatprep.subr.bf16.mxu0 %v1043
    %1634 = vmatpush2.bf16.msra.mxu0 %v1042
    %1635 = vmatprep.subr.bf16.mxu0 %v1039
    %1636 = vmatpush2.bf16.msra.mxu0 %v1038
    %1637 = vmatprep.mubr.bf16.mxu0 %v1563
    %1638 = vmatmul.mubr.bf16.gmra.mxu0 %v1562
    %v1639 = vpop.f32.mrf.mxu0
    %v1640 = vadd.f32 %v201, %v1639
    %v1641 = vpop.f32.mrf.mxu0
    %v1642 = vadd.f32 %v205, %v1641
    %v1643 = vpop.f32.mrf.mxu0
    %v1644 = vpop.f32.mrf.mxu0
    %1645 = vdwg.mxu0
    %v1646 = vxor.u32 %v1599, 2147483648
    %v1647 = vxor.u32 %v1601, 2147483648
    %v1648 = vxor.u32 %v1640, 2147483648
    %v1649 = vmul.f32 %v1646, 1.442695
    %v1650 = vpow.pop %v1649
    %v1651 = vmul.f32 %v1647, 1.442695
    %v1652 = vpow.pop %v1651
    %v1653 = vmul.f32 %v1648, 1.442695
    %v1654 = vpow.pop %v1653
    %v1655 = vadd.f32 %v1650, 1.0
    %v1656 = vadd.f32 %v1652, 1.0
    %v1657 = vadd.f32 %v1654, 1.0
    %v1658 = vrcp.pop %v1655
    %v1659 = vmul.f32 1.0, %v1658
    %v1660 = vrcp.pop %v1656
    %v1661 = vmul.f32 1.0, %v1660
    %v1662 = vrcp.pop %v1657
    %v1663 = vmul.f32 1.0, %v1662
    %v1664 = vtanh.pop %v1642
    %v1665 = vmul.f32 %v1661, %v1451
    %v1666 = vmul.f32 %v1659, %v1664
    %v1667 = vadd.f32 %v1665, %v1666
    %v1668 = vtanh.pop %v1667
    %v1669 = vmul.f32 %v1663, %v1668
    %v1670 = vld [vmem:[%s0 + $0x18] sm:$0xff]
    %v1671 = vpack.c.bf16 %v1670, %v1670
    %1672 = vmatprep.subr.bf16.mxu0 %v542
    %1673 = vmatpush1.bf16.msra.mxu0 %v541
    %1674 = vmatprep.subr.bf16.mxu0 %v538
    %1675 = vmatpush1.bf16.msra.mxu0 %v537
    %1676 = vmatprep.subr.bf16.mxu0 %v534
    %1677 = vmatpush1.bf16.msra.mxu0 %v533
    %1678 = vmatprep.subr.bf16.mxu0 %v530
    %1679 = vmatpush1.bf16.msra.mxu0 %v529
    %1680 = vmatprep.subr.bf16.mxu0 %v526
    %1681 = vmatpush1.bf16.msra.mxu0 %v525
    %1682 = vmatprep.subr.bf16.mxu0 %v522
    %1683 = vmatpush1.bf16.msra.mxu0 %v521
    %1684 = vmatprep.subr.bf16.mxu0 %v518
    %1685 = vmatpush1.bf16.msra.mxu0 %v517
    %1686 = vmatprep.subr.bf16.mxu0 %v514
    %1687 = vmatpush1.bf16.msra.mxu0 %v513
    %1688 = vmatprep.subr.bf16.mxu0 %v574
    %1689 = vmatpush2.bf16.msra.mxu0 %v573
    %1690 = vmatprep.subr.bf16.mxu0 %v570
    %1691 = vmatpush2.bf16.msra.mxu0 %v569
    %1692 = vmatprep.subr.bf16.mxu0 %v566
    %1693 = vmatpush2.bf16.msra.mxu0 %v565
    %1694 = vmatprep.subr.bf16.mxu0 %v562
    %1695 = vmatpush2.bf16.msra.mxu0 %v561
    %1696 = vmatprep.subr.bf16.mxu0 %v558
    %1697 = vmatpush2.bf16.msra.mxu0 %v557
    %1698 = vmatprep.subr.bf16.mxu0 %v554
    %1699 = vmatpush2.bf16.msra.mxu0 %v553
    %1700 = vmatprep.subr.bf16.mxu0 %v550
    %1701 = vmatpush2.bf16.msra.mxu0 %v549
    %1702 = vmatprep.subr.bf16.mxu0 %v546
    %1703 = vmatpush2.bf16.msra.mxu0 %v545
    %1704 = vmatprep.mubr.bf16.mxu0 %v1562
    %1705 = vmatmul.mubr.bf16.gmra.mxu0 %v1671
    %v1706 = vpop.f32.mrf.mxu0
    %v1707 = vadd.f32 %v171, %v1706
    %v1708 = vpop.f32.mrf.mxu0
    %v1709 = vadd.f32 %v175, %v1708
    %v1710 = vpop.f32.mrf.mxu0
    %v1711 = vpop.f32.mrf.mxu0
    %1712 = vdwg.mxu0
    %1713 = vmatprep.subr.bf16.mxu0 %v544
    %1714 = vmatpush1.bf16.msra.mxu0 %v543
    %1715 = vmatprep.subr.bf16.mxu0 %v540
    %1716 = vmatpush1.bf16.msra.mxu0 %v539
    %1717 = vmatprep.subr.bf16.mxu0 %v536
    %1718 = vmatpush1.bf16.msra.mxu0 %v535
    %1719 = vmatprep.subr.bf16.mxu0 %v532
    %1720 = vmatpush1.bf16.msra.mxu0 %v531
    %1721 = vmatprep.subr.bf16.mxu0 %v528
    %1722 = vmatpush1.bf16.msra.mxu0 %v527
    %1723 = vmatprep.subr.bf16.mxu0 %v524
    %1724 = vmatpush1.bf16.msra.mxu0 %v523
    %1725 = vmatprep.subr.bf16.mxu0 %v520
    %1726 = vmatpush1.bf16.msra.mxu0 %v519
    %1727 = vmatprep.subr.bf16.mxu0 %v516
    %1728 = vmatpush1.bf16.msra.mxu0 %v515
    %1729 = vmatprep.subr.bf16.mxu0 %v576
    %1730 = vmatpush2.bf16.msra.mxu0 %v575
    %1731 = vmatprep.subr.bf16.mxu0 %v572
    %1732 = vmatpush2.bf16.msra.mxu0 %v571
    %1733 = vmatprep.subr.bf16.mxu0 %v568
    %1734 = vmatpush2.bf16.msra.mxu0 %v567
    %1735 = vmatprep.subr.bf16.mxu0 %v564
    %1736 = vmatpush2.bf16.msra.mxu0 %v563
    %1737 = vmatprep.subr.bf16.mxu0 %v560
    %1738 = vmatpush2.bf16.msra.mxu0 %v559
    %1739 = vmatprep.subr.bf16.mxu0 %v556
    %1740 = vmatpush2.bf16.msra.mxu0 %v555
    %1741 = vmatprep.subr.bf16.mxu0 %v552
    %1742 = vmatpush2.bf16.msra.mxu0 %v551
    %1743 = vmatprep.subr.bf16.mxu0 %v548
    %1744 = vmatpush2.bf16.msra.mxu0 %v547
    %1745 = vmatprep.mubr.bf16.mxu0 %v1562
    %1746 = vmatmul.mubr.bf16.gmra.mxu0 %v1671
    %v1747 = vpop.f32.mrf.mxu0
    %v1748 = vadd.f32 %v179, %v1747
    %v1749 = vpop.f32.mrf.mxu0
    %v1750 = vadd.f32 %v183, %v1749
    %v1751 = vpop.f32.mrf.mxu0
    %v1752 = vpop.f32.mrf.mxu0
    %1753 = vdwg.mxu0
    %v1754 = vxor.u32 %v1707, 2147483648
    %v1755 = vxor.u32 %v1709, 2147483648
    %v1756 = vxor.u32 %v1748, 2147483648
    %v1757 = vmul.f32 %v1754, 1.442695
    %v1758 = vpow.pop %v1757
    %v1759 = vmul.f32 %v1755, 1.442695
    %v1760 = vpow.pop %v1759
    %v1761 = vmul.f32 %v1756, 1.442695
    %v1762 = vpow.pop %v1761
    %v1763 = vadd.f32 %v1758, 1.0
    %v1764 = vadd.f32 %v1760, 1.0
    %v1765 = vadd.f32 %v1762, 1.0
    %v1766 = vrcp.pop %v1763
    %v1767 = vmul.f32 1.0, %v1766
    %v1768 = vrcp.pop %v1764
    %v1769 = vmul.f32 1.0, %v1768
    %v1770 = vrcp.pop %v1765
    %v1771 = vmul.f32 1.0, %v1770
    %v1772 = vtanh.pop %v1750
    %v1773 = vmul.f32 %v1769, %v1559
    %v1774 = vmul.f32 %v1767, %v1772
    %v1775 = vadd.f32 %v1773, %v1774
    %v1776 = vtanh.pop %v1775
    %v1777 = vmul.f32 %v1771, %v1776
    %v1778 = vpack.c.bf16 %v1777, %v1777
    %v1779 = vpack.c.bf16 %v1669, %v1669
    %1780 = vmatprep.subr.bf16.mxu0 %v1033
    %1781 = vmatpush1.bf16.msra.mxu0 %v1032
    %1782 = vmatprep.subr.bf16.mxu0 %v1029
    %1783 = vmatpush1.bf16.msra.mxu0 %v1028
    %1784 = vmatprep.subr.bf16.mxu0 %v1025
    %1785 = vmatpush1.bf16.msra.mxu0 %v1024
    %1786 = vmatprep.subr.bf16.mxu0 %v1021
    %1787 = vmatpush1.bf16.msra.mxu0 %v1020
    %1788 = vmatprep.subr.bf16.mxu0 %v1017
    %1789 = vmatpush1.bf16.msra.mxu0 %v1016
    %1790 = vmatprep.subr.bf16.mxu0 %v1013
    %1791 = vmatpush1.bf16.msra.mxu0 %v1012
    %1792 = vmatprep.subr.bf16.mxu0 %v1009
    %1793 = vmatpush1.bf16.msra.mxu0 %v1008
    %1794 = vmatprep.subr.bf16.mxu0 %v1005
    %1795 = vmatpush1.bf16.msra.mxu0 %v1004
    %1796 = vmatprep.subr.bf16.mxu0 %v1065
    %1797 = vmatpush2.bf16.msra.mxu0 %v1064
    %1798 = vmatprep.subr.bf16.mxu0 %v1061
    %1799 = vmatpush2.bf16.msra.mxu0 %v1060
    %1800 = vmatprep.subr.bf16.mxu0 %v1057
    %1801 = vmatpush2.bf16.msra.mxu0 %v1056
    %1802 = vmatprep.subr.bf16.mxu0 %v1053
    %1803 = vmatpush2.bf16.msra.mxu0 %v1052
    %1804 = vmatprep.subr.bf16.mxu0 %v1049
    %1805 = vmatpush2.bf16.msra.mxu0 %v1048
    %1806 = vmatprep.subr.bf16.mxu0 %v1045
    %1807 = vmatpush2.bf16.msra.mxu0 %v1044
    %1808 = vmatprep.subr.bf16.mxu0 %v1041
    %1809 = vmatpush2.bf16.msra.mxu0 %v1040
    %1810 = vmatprep.subr.bf16.mxu0 %v1037
    %1811 = vmatpush2.bf16.msra.mxu0 %v1036
    %1812 = vmatprep.mubr.bf16.mxu0 %v1779
    %1813 = vmatmul.mubr.bf16.gmra.mxu0 %v1778
    %v1814 = vpop.f32.mrf.mxu0
    %v1815 = vadd.f32 %v193, %v1814
    %v1816 = vpop.f32.mrf.mxu0
    %v1817 = vadd.f32 %v197, %v1816
    %v1818 = vpop.f32.mrf.mxu0
    %v1819 = vpop.f32.mrf.mxu0
    %1820 = vdwg.mxu0
    %1821 = vmatprep.subr.bf16.mxu0 %v1035
    %1822 = vmatpush1.bf16.msra.mxu0 %v1034
    %1823 = vmatprep.subr.bf16.mxu0 %v1031
    %1824 = vmatpush1.bf16.msra.mxu0 %v1030
    %1825 = vmatprep.subr.bf16.mxu0 %v1027
    %1826 = vmatpush1.bf16.msra.mxu0 %v1026
    %1827 = vmatprep.subr.bf16.mxu0 %v1023
    %1828 = vmatpush1.bf16.msra.mxu0 %v1022
    %1829 = vmatprep.subr.bf16.mxu0 %v1019
    %1830 = vmatpush1.bf16.msra.mxu0 %v1018
    %1831 = vmatprep.subr.bf16.mxu0 %v1015
    %1832 = vmatpush1.bf16.msra.mxu0 %v1014
    %1833 = vmatprep.subr.bf16.mxu0 %v1011
    %1834 = vmatpush1.bf16.msra.mxu0 %v1010
    %1835 = vmatprep.subr.bf16.mxu0 %v1007
    %1836 = vmatpush1.bf16.msra.mxu0 %v1006
    %1837 = vmatprep.subr.bf16.mxu0 %v1067
    %1838 = vmatpush2.bf16.msra.mxu0 %v1066
    %1839 = vmatprep.subr.bf16.mxu0 %v1063
    %1840 = vmatpush2.bf16.msra.mxu0 %v1062
    %1841 = vmatprep.subr.bf16.mxu0 %v1059
    %1842 = vmatpush2.bf16.msra.mxu0 %v1058
    %1843 = vmatprep.subr.bf16.mxu0 %v1055
    %1844 = vmatpush2.bf16.msra.mxu0 %v1054
    %1845 = vmatprep.subr.bf16.mxu0 %v1051
    %1846 = vmatpush2.bf16.msra.mxu0 %v1050
    %1847 = vmatprep.subr.bf16.mxu0 %v1047
    %1848 = vmatpush2.bf16.msra.mxu0 %v1046
    %1849 = vmatprep.subr.bf16.mxu0 %v1043
    %1850 = vmatpush2.bf16.msra.mxu0 %v1042
    %1851 = vmatprep.subr.bf16.mxu0 %v1039
    %1852 = vmatpush2.bf16.msra.mxu0 %v1038
    %1853 = vmatprep.mubr.bf16.mxu0 %v1779
    %1854 = vmatmul.mubr.bf16.gmra.mxu0 %v1778
    %v1855 = vpop.f32.mrf.mxu0
    %v1856 = vadd.f32 %v201, %v1855
    %v1857 = vpop.f32.mrf.mxu0
    %v1858 = vadd.f32 %v205, %v1857
    %v1859 = vpop.f32.mrf.mxu0
    %v1860 = vpop.f32.mrf.mxu0
    %1861 = vdwg.mxu0
    %v1862 = vxor.u32 %v1815, 2147483648
    %v1863 = vxor.u32 %v1817, 2147483648
    %v1864 = vxor.u32 %v1856, 2147483648
    %v1865 = vmul.f32 %v1862, 1.442695
    %v1866 = vpow.pop %v1865
    %v1867 = vmul.f32 %v1863, 1.442695
    %v1868 = vpow.pop %v1867
    %v1869 = vmul.f32 %v1864, 1.442695
    %v1870 = vpow.pop %v1869
    %v1871 = vadd.f32 %v1866, 1.0
    %v1872 = vadd.f32 %v1868, 1.0
    %v1873 = vadd.f32 %v1870, 1.0
    %v1874 = vrcp.pop %v1871
    %v1875 = vmul.f32 1.0, %v1874
    %v1876 = vrcp.pop %v1872
    %v1877 = vmul.f32 1.0, %v1876
    %v1878 = vrcp.pop %v1873
    %v1879 = vmul.f32 1.0, %v1878
    %v1880 = vtanh.pop %v1858
    %v1881 = vmul.f32 %v1877, %v1667
    %v1882 = vmul.f32 %v1875, %v1880
    %v1883 = vadd.f32 %v1881, %v1882
    %v1884 = vtanh.pop %v1883
    %v1885 = vmul.f32 %v1879, %v1884
    %v1886 = vld [vmem:[%s0 + $0x20] sm:$0xff]
    %v1887 = vpack.c.bf16 %v1886, %v1886
    %1888 = vmatprep.subr.bf16.mxu0 %v542
    %1889 = vmatpush1.bf16.msra.mxu0 %v541
    %1890 = vmatprep.subr.bf16.mxu0 %v538
    %1891 = vmatpush1.bf16.msra.mxu0 %v537
    %1892 = vmatprep.subr.bf16.mxu0 %v534
    %1893 = vmatpush1.bf16.msra.mxu0 %v533
    %1894 = vmatprep.subr.bf16.mxu0 %v530
    %1895 = vmatpush1.bf16.msra.mxu0 %v529
    %1896 = vmatprep.subr.bf16.mxu0 %v526
    %1897 = vmatpush1.bf16.msra.mxu0 %v525
    %1898 = vmatprep.subr.bf16.mxu0 %v522
    %1899 = vmatpush1.bf16.msra.mxu0 %v521
    %1900 = vmatprep.subr.bf16.mxu0 %v518
    %1901 = vmatpush1.bf16.msra.mxu0 %v517
    %1902 = vmatprep.subr.bf16.mxu0 %v514
    %1903 = vmatpush1.bf16.msra.mxu0 %v513
    %1904 = vmatprep.subr.bf16.mxu0 %v574
    %1905 = vmatpush2.bf16.msra.mxu0 %v573
    %1906 = vmatprep.subr.bf16.mxu0 %v570
    %1907 = vmatpush2.bf16.msra.mxu0 %v569
    %1908 = vmatprep.subr.bf16.mxu0 %v566
    %1909 = vmatpush2.bf16.msra.mxu0 %v565
    %1910 = vmatprep.subr.bf16.mxu0 %v562
    %1911 = vmatpush2.bf16.msra.mxu0 %v561
    %1912 = vmatprep.subr.bf16.mxu0 %v558
    %1913 = vmatpush2.bf16.msra.mxu0 %v557
    %1914 = vmatprep.subr.bf16.mxu0 %v554
    %1915 = vmatpush2.bf16.msra.mxu0 %v553
    %1916 = vmatprep.subr.bf16.mxu0 %v550
    %1917 = vmatpush2.bf16.msra.mxu0 %v549
    %1918 = vmatprep.subr.bf16.mxu0 %v546
    %1919 = vmatpush2.bf16.msra.mxu0 %v545
    %1920 = vmatprep.mubr.bf16.mxu0 %v1778
    %1921 = vmatmul.mubr.bf16.gmra.mxu0 %v1887
    %v1922 = vpop.f32.mrf.mxu0
    %v1923 = vadd.f32 %v171, %v1922
    %v1924 = vpop.f32.mrf.mxu0
    %v1925 = vadd.f32 %v175, %v1924
    %v1926 = vpop.f32.mrf.mxu0
    %v1927 = vpop.f32.mrf.mxu0
    %1928 = vdwg.mxu0
    %1929 = vmatprep.subr.bf16.mxu0 %v544
    %1930 = vmatpush1.bf16.msra.mxu0 %v543
    %1931 = vmatprep.subr.bf16.mxu0 %v540
    %1932 = vmatpush1.bf16.msra.mxu0 %v539
    %1933 = vmatprep.subr.bf16.mxu0 %v536
    %1934 = vmatpush1.bf16.msra.mxu0 %v535
    %1935 = vmatprep.subr.bf16.mxu0 %v532
    %1936 = vmatpush1.bf16.msra.mxu0 %v531
    %1937 = vmatprep.subr.bf16.mxu0 %v528
    %1938 = vmatpush1.bf16.msra.mxu0 %v527
    %1939 = vmatprep.subr.bf16.mxu0 %v524
    %1940 = vmatpush1.bf16.msra.mxu0 %v523
    %1941 = vmatprep.subr.bf16.mxu0 %v520
    %1942 = vmatpush1.bf16.msra.mxu0 %v519
    %1943 = vmatprep.subr.bf16.mxu0 %v516
    %1944 = vmatpush1.bf16.msra.mxu0 %v515
    %1945 = vmatprep.subr.bf16.mxu0 %v576
    %1946 = vmatpush2.bf16.msra.mxu0 %v575
    %1947 = vmatprep.subr.bf16.mxu0 %v572
    %1948 = vmatpush2.bf16.msra.mxu0 %v571
    %1949 = vmatprep.subr.bf16.mxu0 %v568
    %1950 = vmatpush2.bf16.msra.mxu0 %v567
    %1951 = vmatprep.subr.bf16.mxu0 %v564
    %1952 = vmatpush2.bf16.msra.mxu0 %v563
    %1953 = vmatprep.subr.bf16.mxu0 %v560
    %1954 = vmatpush2.bf16.msra.mxu0 %v559
    %1955 = vmatprep.subr.bf16.mxu0 %v556
    %1956 = vmatpush2.bf16.msra.mxu0 %v555
    %1957 = vmatprep.subr.bf16.mxu0 %v552
    %1958 = vmatpush2.bf16.msra.mxu0 %v551
    %1959 = vmatprep.subr.bf16.mxu0 %v548
    %1960 = vmatpush2.bf16.msra.mxu0 %v547
    %1961 = vmatprep.mubr.bf16.mxu0 %v1778
    %1962 = vmatmul.mubr.bf16.gmra.mxu0 %v1887
    %v1963 = vpop.f32.mrf.mxu0
    %v1964 = vadd.f32 %v179, %v1963
    %v1965 = vpop.f32.mrf.mxu0
    %v1966 = vadd.f32 %v183, %v1965
    %v1967 = vpop.f32.mrf.mxu0
    %v1968 = vpop.f32.mrf.mxu0
    %1969 = vdwg.mxu0
    %v1970 = vxor.u32 %v1923, 2147483648
    %v1971 = vxor.u32 %v1925, 2147483648
    %v1972 = vxor.u32 %v1964, 2147483648
    %v1973 = vmul.f32 %v1970, 1.442695
    %v1974 = vpow.pop %v1973
    %v1975 = vmul.f32 %v1971, 1.442695
    %v1976 = vpow.pop %v1975
    %v1977 = vmul.f32 %v1972, 1.442695
    %v1978 = vpow.pop %v1977
    %v1979 = vadd.f32 %v1974, 1.0
    %v1980 = vadd.f32 %v1976, 1.0
    %v1981 = vadd.f32 %v1978, 1.0
    %v1982 = vrcp.pop %v1979
    %v1983 = vmul.f32 1.0, %v1982
    %v1984 = vrcp.pop %v1980
    %v1985 = vmul.f32 1.0, %v1984
    %v1986 = vrcp.pop %v1981
    %v1987 = vmul.f32 1.0, %v1986
    %v1988 = vtanh.pop %v1966
    %v1989 = vmul.f32 %v1985, %v1775
    %v1990 = vmul.f32 %v1983, %v1988
    %v1991 = vadd.f32 %v1989, %v1990
    %v1992 = vtanh.pop %v1991
    %v1993 = vmul.f32 %v1987, %v1992
    %v1994 = vpack.c.bf16 %v1993, %v1993
    %v1995 = vpack.c.bf16 %v1885, %v1885
    %1996 = vmatprep.subr.bf16.mxu0 %v1033
    %1997 = vmatpush1.bf16.msra.mxu0 %v1032
    %1998 = vmatprep.subr.bf16.mxu0 %v1029
    %1999 = vmatpush1.bf16.msra.mxu0 %v1028
    %2000 = vmatprep.subr.bf16.mxu0 %v1025
    %2001 = vmatpush1.bf16.msra.mxu0 %v1024
    %2002 = vmatprep.subr.bf16.mxu0 %v1021
    %2003 = vmatpush1.bf16.msra.mxu0 %v1020
    %2004 = vmatprep.subr.bf16.mxu0 %v1017
    %2005 = vmatpush1.bf16.msra.mxu0 %v1016
    %2006 = vmatprep.subr.bf16.mxu0 %v1013
    %2007 = vmatpush1.bf16.msra.mxu0 %v1012
    %2008 = vmatprep.subr.bf16.mxu0 %v1009
    %2009 = vmatpush1.bf16.msra.mxu0 %v1008
    %2010 = vmatprep.subr.bf16.mxu0 %v1005
    %2011 = vmatpush1.bf16.msra.mxu0 %v1004
    %2012 = vmatprep.subr.bf16.mxu0 %v1065
    %2013 = vmatpush2.bf16.msra.mxu0 %v1064
    %2014 = vmatprep.subr.bf16.mxu0 %v1061
    %2015 = vmatpush2.bf16.msra.mxu0 %v1060
    %2016 = vmatprep.subr.bf16.mxu0 %v1057
    %2017 = vmatpush2.bf16.msra.mxu0 %v1056
    %2018 = vmatprep.subr.bf16.mxu0 %v1053
    %2019 = vmatpush2.bf16.msra.mxu0 %v1052
    %2020 = vmatprep.subr.bf16.mxu0 %v1049
    %2021 = vmatpush2.bf16.msra.mxu0 %v1048
    %2022 = vmatprep.subr.bf16.mxu0 %v1045
    %2023 = vmatpush2.bf16.msra.mxu0 %v1044
    %2024 = vmatprep.subr.bf16.mxu0 %v1041
    %2025 = vmatpush2.bf16.msra.mxu0 %v1040
    %2026 = vmatprep.subr.bf16.mxu0 %v1037
    %2027 = vmatpush2.bf16.msra.mxu0 %v1036
    %2028 = vmatprep.mubr.bf16.mxu0 %v1995
    %2029 = vmatmul.mubr.bf16.gmra.mxu0 %v1994
    %v2030 = vpop.f32.mrf.mxu0
    %v2031 = vadd.f32 %v193, %v2030
    %v2032 = vpop.f32.mrf.mxu0
    %v2033 = vadd.f32 %v197, %v2032
    %v2034 = vpop.f32.mrf.mxu0
    %v2035 = vpop.f32.mrf.mxu0
    %2036 = vdwg.mxu0
    %2037 = vmatprep.subr.bf16.mxu0 %v1035
    %2038 = vmatpush1.bf16.msra.mxu0 %v1034
    %2039 = vmatprep.subr.bf16.mxu0 %v1031
    %2040 = vmatpush1.bf16.msra.mxu0 %v1030
    %2041 = vmatprep.subr.bf16.mxu0 %v1027
    %2042 = vmatpush1.bf16.msra.mxu0 %v1026
    %2043 = vmatprep.subr.bf16.mxu0 %v1023
    %2044 = vmatpush1.bf16.msra.mxu0 %v1022
    %2045 = vmatprep.subr.bf16.mxu0 %v1019
    %2046 = vmatpush1.bf16.msra.mxu0 %v1018
    %2047 = vmatprep.subr.bf16.mxu0 %v1015
    %2048 = vmatpush1.bf16.msra.mxu0 %v1014
    %2049 = vmatprep.subr.bf16.mxu0 %v1011
    %2050 = vmatpush1.bf16.msra.mxu0 %v1010
    %2051 = vmatprep.subr.bf16.mxu0 %v1007
    %2052 = vmatpush1.bf16.msra.mxu0 %v1006
    %2053 = vmatprep.subr.bf16.mxu0 %v1067
    %2054 = vmatpush2.bf16.msra.mxu0 %v1066
    %2055 = vmatprep.subr.bf16.mxu0 %v1063
    %2056 = vmatpush2.bf16.msra.mxu0 %v1062
    %2057 = vmatprep.subr.bf16.mxu0 %v1059
    %2058 = vmatpush2.bf16.msra.mxu0 %v1058
    %2059 = vmatprep.subr.bf16.mxu0 %v1055
    %2060 = vmatpush2.bf16.msra.mxu0 %v1054
    %2061 = vmatprep.subr.bf16.mxu0 %v1051
    %2062 = vmatpush2.bf16.msra.mxu0 %v1050
    %2063 = vmatprep.subr.bf16.mxu0 %v1047
    %2064 = vmatpush2.bf16.msra.mxu0 %v1046
    %2065 = vmatprep.subr.bf16.mxu0 %v1043
    %2066 = vmatpush2.bf16.msra.mxu0 %v1042
    %2067 = vmatprep.subr.bf16.mxu0 %v1039
    %2068 = vmatpush2.bf16.msra.mxu0 %v1038
    %2069 = vmatprep.mubr.bf16.mxu0 %v1995
    %2070 = vmatmul.mubr.bf16.gmra.mxu0 %v1994
    %v2071 = vpop.f32.mrf.mxu0
    %v2072 = vadd.f32 %v201, %v2071
    %v2073 = vpop.f32.mrf.mxu0
    %v2074 = vadd.f32 %v205, %v2073
    %v2075 = vpop.f32.mrf.mxu0
    %v2076 = vpop.f32.mrf.mxu0
    %2077 = vdwg.mxu0
    %v2078 = vxor.u32 %v2031, 2147483648
    %v2079 = vxor.u32 %v2033, 2147483648
    %v2080 = vxor.u32 %v2072, 2147483648
    %v2081 = vmul.f32 %v2078, 1.442695
    %v2082 = vpow.pop %v2081
    %v2083 = vmul.f32 %v2079, 1.442695
    %v2084 = vpow.pop %v2083
    %v2085 = vmul.f32 %v2080, 1.442695
    %v2086 = vpow.pop %v2085
    %v2087 = vadd.f32 %v2082, 1.0
    %v2088 = vadd.f32 %v2084, 1.0
    %v2089 = vadd.f32 %v2086, 1.0
    %v2090 = vrcp.pop %v2087
    %v2091 = vmul.f32 1.0, %v2090
    %v2092 = vrcp.pop %v2088
    %v2093 = vmul.f32 1.0, %v2092
    %v2094 = vrcp.pop %v2089
    %v2095 = vmul.f32 1.0, %v2094
    %v2096 = vtanh.pop %v2074
    %v2097 = vmul.f32 %v2093, %v1883
    %v2098 = vmul.f32 %v2091, %v2096
    %v2099 = vadd.f32 %v2097, %v2098
    %v2100 = vtanh.pop %v2099
    %v2101 = vmul.f32 %v2095, %v2100
    %v2102 = vld [vmem:[%s0 + $0x28] sm:$0xff]
    %v2103 = vpack.c.bf16 %v2102, %v2102
    %2104 = vmatprep.subr.bf16.mxu0 %v542
    %2105 = vmatpush1.bf16.msra.mxu0 %v541
    %2106 = vmatprep.subr.bf16.mxu0 %v538
    %2107 = vmatpush1.bf16.msra.mxu0 %v537
    %2108 = vmatprep.subr.bf16.mxu0 %v534
    %2109 = vmatpush1.bf16.msra.mxu0 %v533
    %2110 = vmatprep.subr.bf16.mxu0 %v530
    %2111 = vmatpush1.bf16.msra.mxu0 %v529
    %2112 = vmatprep.subr.bf16.mxu0 %v526
    %2113 = vmatpush1.bf16.msra.mxu0 %v525
    %2114 = vmatprep.subr.bf16.mxu0 %v522
    %2115 = vmatpush1.bf16.msra.mxu0 %v521
    %2116 = vmatprep.subr.bf16.mxu0 %v518
    %2117 = vmatpush1.bf16.msra.mxu0 %v517
    %2118 = vmatprep.subr.bf16.mxu0 %v514
    %2119 = vmatpush1.bf16.msra.mxu0 %v513
    %2120 = vmatprep.subr.bf16.mxu0 %v574
    %2121 = vmatpush2.bf16.msra.mxu0 %v573
    %2122 = vmatprep.subr.bf16.mxu0 %v570
    %2123 = vmatpush2.bf16.msra.mxu0 %v569
    %2124 = vmatprep.subr.bf16.mxu0 %v566
    %2125 = vmatpush2.bf16.msra.mxu0 %v565
    %2126 = vmatprep.subr.bf16.mxu0 %v562
    %2127 = vmatpush2.bf16.msra.mxu0 %v561
    %2128 = vmatprep.subr.bf16.mxu0 %v558
    %2129 = vmatpush2.bf16.msra.mxu0 %v557
    %2130 = vmatprep.subr.bf16.mxu0 %v554
    %2131 = vmatpush2.bf16.msra.mxu0 %v553
    %2132 = vmatprep.subr.bf16.mxu0 %v550
    %2133 = vmatpush2.bf16.msra.mxu0 %v549
    %2134 = vmatprep.subr.bf16.mxu0 %v546
    %2135 = vmatpush2.bf16.msra.mxu0 %v545
    %2136 = vmatprep.mubr.bf16.mxu0 %v1994
    %2137 = vmatmul.mubr.bf16.gmra.mxu0 %v2103
    %v2138 = vpop.f32.mrf.mxu0
    %v2139 = vadd.f32 %v171, %v2138
    %v2140 = vpop.f32.mrf.mxu0
    %v2141 = vadd.f32 %v175, %v2140
    %v2142 = vpop.f32.mrf.mxu0
    %v2143 = vpop.f32.mrf.mxu0
    %2144 = vdwg.mxu0
    %2145 = vmatprep.subr.bf16.mxu0 %v544
    %2146 = vmatpush1.bf16.msra.mxu0 %v543
    %2147 = vmatprep.subr.bf16.mxu0 %v540
    %2148 = vmatpush1.bf16.msra.mxu0 %v539
    %2149 = vmatprep.subr.bf16.mxu0 %v536
    %2150 = vmatpush1.bf16.msra.mxu0 %v535
    %2151 = vmatprep.subr.bf16.mxu0 %v532
    %2152 = vmatpush1.bf16.msra.mxu0 %v531
    %2153 = vmatprep.subr.bf16.mxu0 %v528
    %2154 = vmatpush1.bf16.msra.mxu0 %v527
    %2155 = vmatprep.subr.bf16.mxu0 %v524
    %2156 = vmatpush1.bf16.msra.mxu0 %v523
    %2157 = vmatprep.subr.bf16.mxu0 %v520
    %2158 = vmatpush1.bf16.msra.mxu0 %v519
    %2159 = vmatprep.subr.bf16.mxu0 %v516
    %2160 = vmatpush1.bf16.msra.mxu0 %v515
    %2161 = vmatprep.subr.bf16.mxu0 %v576
    %2162 = vmatpush2.bf16.msra.mxu0 %v575
    %2163 = vmatprep.subr.bf16.mxu0 %v572
    %2164 = vmatpush2.bf16.msra.mxu0 %v571
    %2165 = vmatprep.subr.bf16.mxu0 %v568
    %2166 = vmatpush2.bf16.msra.mxu0 %v567
    %2167 = vmatprep.subr.bf16.mxu0 %v564
    %2168 = vmatpush2.bf16.msra.mxu0 %v563
    %2169 = vmatprep.subr.bf16.mxu0 %v560
    %2170 = vmatpush2.bf16.msra.mxu0 %v559
    %2171 = vmatprep.subr.bf16.mxu0 %v556
    %2172 = vmatpush2.bf16.msra.mxu0 %v555
    %2173 = vmatprep.subr.bf16.mxu0 %v552
    %2174 = vmatpush2.bf16.msra.mxu0 %v551
    %2175 = vmatprep.subr.bf16.mxu0 %v548
    %2176 = vmatpush2.bf16.msra.mxu0 %v547
    %2177 = vmatprep.mubr.bf16.mxu0 %v1994
    %2178 = vmatmul.mubr.bf16.gmra.mxu0 %v2103
    %v2179 = vpop.f32.mrf.mxu0
    %v2180 = vadd.f32 %v179, %v2179
    %v2181 = vpop.f32.mrf.mxu0
    %v2182 = vadd.f32 %v183, %v2181
    %v2183 = vpop.f32.mrf.mxu0
    %v2184 = vpop.f32.mrf.mxu0
    %2185 = vdwg.mxu0
    %v2186 = vxor.u32 %v2139, 2147483648
    %v2187 = vxor.u32 %v2141, 2147483648
    %v2188 = vxor.u32 %v2180, 2147483648
    %v2189 = vmul.f32 %v2186, 1.442695
    %v2190 = vpow.pop %v2189
    %v2191 = vmul.f32 %v2187, 1.442695
    %v2192 = vpow.pop %v2191
    %v2193 = vmul.f32 %v2188, 1.442695
    %v2194 = vpow.pop %v2193
    %v2195 = vadd.f32 %v2190, 1.0
    %v2196 = vadd.f32 %v2192, 1.0
    %v2197 = vadd.f32 %v2194, 1.0
    %v2198 = vrcp.pop %v2195
    %v2199 = vmul.f32 1.0, %v2198
    %v2200 = vrcp.pop %v2196
    %v2201 = vmul.f32 1.0, %v2200
    %v2202 = vrcp.pop %v2197
    %v2203 = vmul.f32 1.0, %v2202
    %v2204 = vtanh.pop %v2182
    %v2205 = vmul.f32 %v2201, %v1991
    %v2206 = vmul.f32 %v2199, %v2204
    %v2207 = vadd.f32 %v2205, %v2206
    %v2208 = vtanh.pop %v2207
    %v2209 = vmul.f32 %v2203, %v2208
    %v2210 = vpack.c.bf16 %v2209, %v2209
    %v2211 = vpack.c.bf16 %v2101, %v2101
    %2212 = vmatprep.subr.bf16.mxu0 %v1033
    %2213 = vmatpush1.bf16.msra.mxu0 %v1032
    %2214 = vmatprep.subr.bf16.mxu0 %v1029
    %2215 = vmatpush1.bf16.msra.mxu0 %v1028
    %2216 = vmatprep.subr.bf16.mxu0 %v1025
    %2217 = vmatpush1.bf16.msra.mxu0 %v1024
    %2218 = vmatprep.subr.bf16.mxu0 %v1021
    %2219 = vmatpush1.bf16.msra.mxu0 %v1020
    %2220 = vmatprep.subr.bf16.mxu0 %v1017
    %2221 = vmatpush1.bf16.msra.mxu0 %v1016
    %2222 = vmatprep.subr.bf16.mxu0 %v1013
    %2223 = vmatpush1.bf16.msra.mxu0 %v1012
    %2224 = vmatprep.subr.bf16.mxu0 %v1009
    %2225 = vmatpush1.bf16.msra.mxu0 %v1008
    %2226 = vmatprep.subr.bf16.mxu0 %v1005
    %2227 = vmatpush1.bf16.msra.mxu0 %v1004
    %2228 = vmatprep.subr.bf16.mxu0 %v1065
    %2229 = vmatpush2.bf16.msra.mxu0 %v1064
    %2230 = vmatprep.subr.bf16.mxu0 %v1061
    %2231 = vmatpush2.bf16.msra.mxu0 %v1060
    %2232 = vmatprep.subr.bf16.mxu0 %v1057
    %2233 = vmatpush2.bf16.msra.mxu0 %v1056
    %2234 = vmatprep.subr.bf16.mxu0 %v1053
    %2235 = vmatpush2.bf16.msra.mxu0 %v1052
    %2236 = vmatprep.subr.bf16.mxu0 %v1049
    %2237 = vmatpush2.bf16.msra.mxu0 %v1048
    %2238 = vmatprep.subr.bf16.mxu0 %v1045
    %2239 = vmatpush2.bf16.msra.mxu0 %v1044
    %2240 = vmatprep.subr.bf16.mxu0 %v1041
    %2241 = vmatpush2.bf16.msra.mxu0 %v1040
    %2242 = vmatprep.subr.bf16.mxu0 %v1037
    %2243 = vmatpush2.bf16.msra.mxu0 %v1036
    %2244 = vmatprep.mubr.bf16.mxu0 %v2211
    %2245 = vmatmul.mubr.bf16.gmra.mxu0 %v2210
    %v2246 = vpop.f32.mrf.mxu0
    %v2247 = vadd.f32 %v193, %v2246
    %v2248 = vpop.f32.mrf.mxu0
    %v2249 = vadd.f32 %v197, %v2248
    %v2250 = vpop.f32.mrf.mxu0
    %v2251 = vpop.f32.mrf.mxu0
    %2252 = vdwg.mxu0
    %2253 = vmatprep.subr.bf16.mxu0 %v1035
    %2254 = vmatpush1.bf16.msra.mxu0 %v1034
    %2255 = vmatprep.subr.bf16.mxu0 %v1031
    %2256 = vmatpush1.bf16.msra.mxu0 %v1030
    %2257 = vmatprep.subr.bf16.mxu0 %v1027
    %2258 = vmatpush1.bf16.msra.mxu0 %v1026
    %2259 = vmatprep.subr.bf16.mxu0 %v1023
    %2260 = vmatpush1.bf16.msra.mxu0 %v1022
    %2261 = vmatprep.subr.bf16.mxu0 %v1019
    %2262 = vmatpush1.bf16.msra.mxu0 %v1018
    %2263 = vmatprep.subr.bf16.mxu0 %v1015
    %2264 = vmatpush1.bf16.msra.mxu0 %v1014
    %2265 = vmatprep.subr.bf16.mxu0 %v1011
    %2266 = vmatpush1.bf16.msra.mxu0 %v1010
    %2267 = vmatprep.subr.bf16.mxu0 %v1007
    %2268 = vmatpush1.bf16.msra.mxu0 %v1006
    %2269 = vmatprep.subr.bf16.mxu0 %v1067
    %2270 = vmatpush2.bf16.msra.mxu0 %v1066
    %2271 = vmatprep.subr.bf16.mxu0 %v1063
    %2272 = vmatpush2.bf16.msra.mxu0 %v1062
    %2273 = vmatprep.subr.bf16.mxu0 %v1059
    %2274 = vmatpush2.bf16.msra.mxu0 %v1058
    %2275 = vmatprep.subr.bf16.mxu0 %v1055
    %2276 = vmatpush2.bf16.msra.mxu0 %v1054
    %2277 = vmatprep.subr.bf16.mxu0 %v1051
    %2278 = vmatpush2.bf16.msra.mxu0 %v1050
    %2279 = vmatprep.subr.bf16.mxu0 %v1047
    %2280 = vmatpush2.bf16.msra.mxu0 %v1046
    %2281 = vmatprep.subr.bf16.mxu0 %v1043
    %2282 = vmatpush2.bf16.msra.mxu0 %v1042
    %2283 = vmatprep.subr.bf16.mxu0 %v1039
    %2284 = vmatpush2.bf16.msra.mxu0 %v1038
    %2285 = vmatprep.mubr.bf16.mxu0 %v2211
    %2286 = vmatmul.mubr.bf16.gmra.mxu0 %v2210
    %v2287 = vpop.f32.mrf.mxu0
    %v2288 = vadd.f32 %v201, %v2287
    %v2289 = vpop.f32.mrf.mxu0
    %v2290 = vadd.f32 %v205, %v2289
    %v2291 = vpop.f32.mrf.mxu0
    %v2292 = vpop.f32.mrf.mxu0
    %2293 = vdwg.mxu0
    %v2294 = vxor.u32 %v2247, 2147483648
    %v2295 = vxor.u32 %v2249, 2147483648
    %v2296 = vxor.u32 %v2288, 2147483648
    %v2297 = vmul.f32 %v2294, 1.442695
    %v2298 = vpow.pop %v2297
    %v2299 = vmul.f32 %v2295, 1.442695
    %v2300 = vpow.pop %v2299
    %v2301 = vmul.f32 %v2296, 1.442695
    %v2302 = vpow.pop %v2301
    %v2303 = vadd.f32 %v2298, 1.0
    %v2304 = vadd.f32 %v2300, 1.0
    %v2305 = vadd.f32 %v2302, 1.0
    %v2306 = vrcp.pop %v2303
    %v2307 = vmul.f32 1.0, %v2306
    %v2308 = vrcp.pop %v2304
    %v2309 = vmul.f32 1.0, %v2308
    %v2310 = vrcp.pop %v2305
    %v2311 = vmul.f32 1.0, %v2310
    %v2312 = vtanh.pop %v2290
    %v2313 = vmul.f32 %v2309, %v2099
    %v2314 = vmul.f32 %v2307, %v2312
    %v2315 = vadd.f32 %v2313, %v2314
    %v2316 = vtanh.pop %v2315
    %v2317 = vmul.f32 %v2311, %v2316
    %v2318 = vld [vmem:[#allocation10] sm:$0xff]
    %v2319 = vld [vmem:[#allocation10 + $0x8] sm:$0xff]
    %v2320 = vld [vmem:[#allocation10 + $0x10] sm:$0xff]
    %v2321 = vld [vmem:[#allocation10 + $0x18] sm:$0xff]
    %v2322 = vld [vmem:[#allocation10 + $0x20] sm:$0xff]
    %v2323 = vld [vmem:[#allocation10 + $0x28] sm:$0xff]
    %v2324 = vld [vmem:[#allocation10 + $0x30] sm:$0xff]
    %v2325 = vld [vmem:[#allocation10 + $0x38] sm:$0xff]
    %v2326 = vld [vmem:[#allocation10 + $0x40] sm:$0xff]
    %v2327 = vld [vmem:[#allocation10 + $0x48] sm:$0xff]
    %v2328 = vld [vmem:[#allocation10 + $0x50] sm:$0xff]
    %v2329 = vld [vmem:[#allocation10 + $0x58] sm:$0xff]
    %v2330 = vld [vmem:[#allocation10 + $0x60] sm:$0xff]
    %v2331 = vld [vmem:[#allocation10 + $0x68] sm:$0xff]
    %v2332 = vld [vmem:[#allocation10 + $0x70] sm:$0xff]
    %v2333 = vld [vmem:[#allocation10 + $0x78] sm:$0xff]
    %v2334 = vld [vmem:[#allocation10 + $0x80] sm:$0xff]
    %v2335 = vld [vmem:[#allocation10 + $0x88] sm:$0xff]
    %v2336 = vld [vmem:[#allocation10 + $0x90] sm:$0xff]
    %v2337 = vld [vmem:[#allocation10 + $0x98] sm:$0xff]
    %v2338 = vld [vmem:[#allocation10 + $0xa0] sm:$0xff]
    %v2339 = vld [vmem:[#allocation10 + $0xa8] sm:$0xff]
    %v2340 = vld [vmem:[#allocation10 + $0xb0] sm:$0xff]
    %v2341 = vld [vmem:[#allocation10 + $0xb8] sm:$0xff]
    %v2342 = vld [vmem:[#allocation10 + $0xc0] sm:$0xff]
    %v2343 = vld [vmem:[#allocation10 + $0xc8] sm:$0xff]
    %v2344 = vld [vmem:[#allocation10 + $0xd0] sm:$0xff]
    %v2345 = vld [vmem:[#allocation10 + $0xd8] sm:$0xff]
    %v2346 = vld [vmem:[#allocation10 + $0xe0] sm:$0xff]
    %v2347 = vld [vmem:[#allocation10 + $0xe8] sm:$0xff]
    %v2348 = vld [vmem:[#allocation10 + $0xf0] sm:$0xff]
    %v2349 = vld [vmem:[#allocation10 + $0xf8] sm:$0xff]
    %v2350 = vld [vmem:[%s7] sm:$0x3]
    %v2352 = vlaneseq
    %v2353 = vshrl.u32 %v2352, 7
    %v2354 = vsub.s32 0, %v2353
    %v2355 = vrot.slane %v2350, %v2354
    %v2356 = vlaneseq
    %v2357 = vshrl.u32 %v2356, 7
    %v2358 = vsub.s32 1, %v2357
    %v2359 = vrot.slane %v2350, %v2358
    %2362 = vmatprep.subr.mxu0 %v2349
    %2363 = vmatpush1.msra.mxu0 %v2348
    %2364 = vmatprep.subr.mxu0 %v2347
    %2365 = vmatpush1.msra.mxu0 %v2346
    %2366 = vmatprep.subr.mxu0 %v2345
    %2367 = vmatpush1.msra.mxu0 %v2344
    %2368 = vmatprep.subr.mxu0 %v2343
    %2369 = vmatpush1.msra.mxu0 %v2342
    %2370 = vmatprep.subr.mxu0 %v2341
    %2371 = vmatpush1.msra.mxu0 %v2340
    %2372 = vmatprep.subr.mxu0 %v2339
    %2373 = vmatpush1.msra.mxu0 %v2338
    %2374 = vmatprep.subr.mxu0 %v2337
    %2375 = vmatpush1.msra.mxu0 %v2336
    %2376 = vmatprep.subr.mxu0 %v2335
    %2377 = vmatpush1.msra.mxu0 %v2334
    %2378 = vmatprep.subr.mxu0 %v2333
    %2379 = vmatpush1.msra.mxu0 %v2332
    %2380 = vmatprep.subr.mxu0 %v2331
    %2381 = vmatpush1.msra.mxu0 %v2330
    %2382 = vmatprep.subr.mxu0 %v2329
    %2383 = vmatpush1.msra.mxu0 %v2328
    %2384 = vmatprep.subr.mxu0 %v2327
    %2385 = vmatpush1.msra.mxu0 %v2326
    %2386 = vmatprep.subr.mxu0 %v2325
    %2387 = vmatpush1.msra.mxu0 %v2324
    %2388 = vmatprep.subr.mxu0 %v2323
    %2389 = vmatpush1.msra.mxu0 %v2322
    %2390 = vmatprep.subr.mxu0 %v2321
    %2391 = vmatpush1.msra.mxu0 %v2320
    %2392 = vmatprep.subr.mxu0 %v2319
    %2393 = vmatpush1.msra.mxu0 %v2318
    %2394 = vmatprep.subr.mxu0 0.0
    %2395 = vmatpush2.msra.mxu0 0.0
    %2396 = vmatprep.subr.mxu0 0.0
    %2397 = vmatpush2.msra.mxu0 0.0
    %2398 = vmatprep.subr.mxu0 0.0
    %2399 = vmatpush2.msra.mxu0 0.0
    %2400 = vmatprep.subr.mxu0 0.0
    %2401 = vmatpush2.msra.mxu0 0.0
    %2402 = vmatprep.subr.mxu0 0.0
    %2403 = vmatpush2.msra.mxu0 0.0
    %2404 = vmatprep.subr.mxu0 0.0
    %2405 = vmatpush2.msra.mxu0 0.0
    %2406 = vmatprep.subr.mxu0 0.0
    %2407 = vmatpush2.msra.mxu0 0.0
    %2408 = vmatprep.subr.mxu0 0.0
    %2409 = vmatpush2.msra.mxu0 0.0
    %2410 = vmatprep.subr.mxu0 0.0
    %2411 = vmatpush2.msra.mxu0 0.0
    %2412 = vmatprep.subr.mxu0 0.0
    %2413 = vmatpush2.msra.mxu0 0.0
    %2414 = vmatprep.subr.mxu0 0.0
    %2415 = vmatpush2.msra.mxu0 0.0
    %2416 = vmatprep.subr.mxu0 0.0
    %2417 = vmatpush2.msra.mxu0 0.0
    %2418 = vmatprep.subr.mxu0 0.0
    %2419 = vmatpush2.msra.mxu0 0.0
    %2420 = vmatprep.subr.mxu0 0.0
    %2421 = vmatpush2.msra.mxu0 0.0
    %2422 = vmatprep.subr.mxu0 0.0
    %2423 = vmatpush2.msra.mxu0 0.0
    %2424 = vmatprep.subr.mxu0 0.0
    %2425 = vmatpush2.msra.mxu0 0.0
    %2426 = vmatprep.mubr.f32.mxu0 0.0
    %2427 = vmatmul.mubr.f32.gmra.mxu0 %v2209
    %v2428 = vpop.f32.mrf.mxu0
    %v2429 = vadd.f32 %v2355, %v2428
    %v2430 = vpop.f32.mrf.mxu0
    %v2431 = vadd.f32 %v2359, %v2430
    %2432 = vmatprep.mubr.f32.mxu0 0.0
    %2433 = vmatmul.mubr.f32.gmra.mxu0 %v2317
    %v2434 = vpop.f32.mrf.mxu0
    %v2435 = vadd.f32 %v2355, %v2434
    %v2436 = vpop.f32.mrf.mxu0
    %v2437 = vadd.f32 %v2359, %v2436
    %2438 = vdwg.mxu0
    %2439 = vst [vmem:[%s15] sm:$0xff] %v2429
    %2440 = vst [vmem:[%s15 + $0x8] sm:$0xff] %v2431
    %2441 = vst [vmem:[%s15 + $0x10] sm:$0xff] %v2435
    %2442 = vst [vmem:[%s15 + $0x18] sm:$0xff] %v2437
    %v2443 = vld [vmem:[%s1] sm:$0xff]
    %v2444 = vld [vmem:[%s1 + $0x8] sm:$0xff]
    %v2445 = vmul.f32 %v2431, 0.5
    %v2446 = vmul.f32 %v2437, 0.5
    %v2447 = vmul.f32 %v2445, 1.442695
    %v2448 = vpow.pop %v2447
    %v2449 = vmul.f32 %v2446, 1.442695
    %v2450 = vpow.pop %v2449
    %v2451 = vmul.f32 %v2443, %v2448
    %v2452 = vmul.f32 %v2444, %v2450
    %v2453 = vadd.f32 %v2429, %v2451
    %v2454 = vadd.f32 %v2435, %v2452
    %s2455 = smul.u32 4, 32
    %s2456 = smul.u32 %s2455, 4
    %s2457 = sshll.u32 %s2456, 4
    %2458 = dma.done [#allocation5], %s2457
    %s2459 = sshll.u32 %s2456, 4
    %2460 = dma.done %s96, %s2459
    %v2461 = vld [vmem:[#allocation2 + $0x100] sm:$0xff]
    %v2462 = vld [vmem:[#allocation2 + $0x108] sm:$0xff]
    %v2463 = vld [vmem:[#allocation2 + $0x110] sm:$0xff]
    %v2464 = vld [vmem:[#allocation2 + $0x118] sm:$0xff]
    %v2465 = vld [vmem:[#allocation2 + $0x120] sm:$0xff]
    %v2466 = vld [vmem:[#allocation2 + $0x128] sm:$0xff]
    %v2467 = vld [vmem:[#allocation2 + $0x130] sm:$0xff]
    %v2468 = vld [vmem:[#allocation2 + $0x138] sm:$0xff]
    %v2469 = vld [vmem:[#allocation2 + $0x140] sm:$0xff]
    %v2470 = vld [vmem:[#allocation2 + $0x148] sm:$0xff]
    %v2471 = vld [vmem:[#allocation2 + $0x150] sm:$0xff]
    %v2472 = vld [vmem:[#allocation2 + $0x158] sm:$0xff]
    %v2473 = vld [vmem:[#allocation2 + $0x160] sm:$0xff]
    %v2474 = vld [vmem:[#allocation2 + $0x168] sm:$0xff]
    %v2475 = vld [vmem:[#allocation2 + $0x170] sm:$0xff]
    %v2476 = vld [vmem:[#allocation2 + $0x178] sm:$0xff]
    %v2477 = vld [vmem:[#allocation2 + $0x180] sm:$0xff]
    %v2478 = vld [vmem:[#allocation2 + $0x188] sm:$0xff]
    %v2479 = vld [vmem:[#allocation2 + $0x190] sm:$0xff]
    %v2480 = vld [vmem:[#allocation2 + $0x198] sm:$0xff]
    %v2481 = vld [vmem:[#allocation2 + $0x1a0] sm:$0xff]
    %v2482 = vld [vmem:[#allocation2 + $0x1a8] sm:$0xff]
    %v2483 = vld [vmem:[#allocation2 + $0x1b0] sm:$0xff]
    %v2484 = vld [vmem:[#allocation2 + $0x1b8] sm:$0xff]
    %v2485 = vld [vmem:[#allocation2 + $0x1c0] sm:$0xff]
    %v2486 = vld [vmem:[#allocation2 + $0x1c8] sm:$0xff]
    %v2487 = vld [vmem:[#allocation2 + $0x1d0] sm:$0xff]
    %v2488 = vld [vmem:[#allocation2 + $0x1d8] sm:$0xff]
    %v2489 = vld [vmem:[#allocation2 + $0x1e0] sm:$0xff]
    %v2490 = vld [vmem:[#allocation2 + $0x1e8] sm:$0xff]
    %v2491 = vld [vmem:[#allocation2 + $0x1f0] sm:$0xff]
    %v2492 = vld [vmem:[#allocation2 + $0x1f8] sm:$0xff]
    %v2493 = vpack.c.bf16 %v2453, %v2453
    %v2526 = vunpack.c.l.b16 %v2461
    %v2527 = vunpack.c.h.b16 %v2461
    %v2528 = vunpack.c.l.b16 %v2462
    %v2529 = vunpack.c.h.b16 %v2462
    %v2530 = vunpack.c.l.b16 %v2463
    %v2531 = vunpack.c.h.b16 %v2463
    %v2532 = vunpack.c.l.b16 %v2464
    %v2533 = vunpack.c.h.b16 %v2464
    %v2534 = vunpack.c.l.b16 %v2465
    %v2535 = vunpack.c.h.b16 %v2465
    %v2536 = vunpack.c.l.b16 %v2466
    %v2537 = vunpack.c.h.b16 %v2466
    %v2538 = vunpack.c.l.b16 %v2467
    %v2539 = vunpack.c.h.b16 %v2467
    %v2540 = vunpack.c.l.b16 %v2468
    %v2541 = vunpack.c.h.b16 %v2468
    %v2542 = vunpack.c.l.b16 %v2469
    %v2543 = vunpack.c.h.b16 %v2469
    %v2544 = vunpack.c.l.b16 %v2470
    %v2545 = vunpack.c.h.b16 %v2470
    %v2546 = vunpack.c.l.b16 %v2471
    %v2547 = vunpack.c.h.b16 %v2471
    %v2548 = vunpack.c.l.b16 %v2472
    %v2549 = vunpack.c.h.b16 %v2472
    %v2550 = vunpack.c.l.b16 %v2473
    %v2551 = vunpack.c.h.b16 %v2473
    %v2552 = vunpack.c.l.b16 %v2474
    %v2553 = vunpack.c.h.b16 %v2474
    %v2554 = vunpack.c.l.b16 %v2475
    %v2555 = vunpack.c.h.b16 %v2475
    %v2556 = vunpack.c.l.b16 %v2476
    %v2557 = vunpack.c.h.b16 %v2476
    %v2558 = vunpack.c.l.b16 %v2477
    %v2559 = vunpack.c.h.b16 %v2477
    %v2560 = vunpack.c.l.b16 %v2478
    %v2561 = vunpack.c.h.b16 %v2478
    %v2562 = vunpack.c.l.b16 %v2479
    %v2563 = vunpack.c.h.b16 %v2479
    %v2564 = vunpack.c.l.b16 %v2480
    %v2565 = vunpack.c.h.b16 %v2480
    %v2566 = vunpack.c.l.b16 %v2481
    %v2567 = vunpack.c.h.b16 %v2481
    %v2568 = vunpack.c.l.b16 %v2482
    %v2569 = vunpack.c.h.b16 %v2482
    %v2570 = vunpack.c.l.b16 %v2483
    %v2571 = vunpack.c.h.b16 %v2483
    %v2572 = vunpack.c.l.b16 %v2484
    %v2573 = vunpack.c.h.b16 %v2484
    %v2574 = vunpack.c.l.b16 %v2485
    %v2575 = vunpack.c.h.b16 %v2485
    %v2576 = vunpack.c.l.b16 %v2486
    %v2577 = vunpack.c.h.b16 %v2486
    %v2578 = vunpack.c.l.b16 %v2487
    %v2579 = vunpack.c.h.b16 %v2487
    %v2580 = vunpack.c.l.b16 %v2488
    %v2581 = vunpack.c.h.b16 %v2488
    %v2582 = vunpack.c.l.b16 %v2489
    %v2583 = vunpack.c.h.b16 %v2489
    %v2584 = vunpack.c.l.b16 %v2490
    %v2585 = vunpack.c.h.b16 %v2490
    %v2586 = vunpack.c.l.b16 %v2491
    %v2587 = vunpack.c.h.b16 %v2491
    %v2588 = vunpack.c.l.b16 %v2492
    %v2589 = vunpack.c.h.b16 %v2492
    %v2590 = vpack.c.b16 %v2530, %v2526
    %v2591 = vpack.c.b16 %v2531, %v2527
    %v2592 = vpack.c.b16 %v2532, %v2528
    %v2593 = vpack.c.b16 %v2533, %v2529
    %v2594 = vpack.c.b16 %v2538, %v2534
    %v2595 = vpack.c.b16 %v2539, %v2535
    %v2596 = vpack.c.b16 %v2540, %v2536
    %v2597 = vpack.c.b16 %v2541, %v2537
    %v2598 = vpack.c.b16 %v2546, %v2542
    %v2599 = vpack.c.b16 %v2547, %v2543
    %v2600 = vpack.c.b16 %v2548, %v2544
    %v2601 = vpack.c.b16 %v2549, %v2545
    %v2602 = vpack.c.b16 %v2554, %v2550
    %v2603 = vpack.c.b16 %v2555, %v2551
    %v2604 = vpack.c.b16 %v2556, %v2552
    %v2605 = vpack.c.b16 %v2557, %v2553
    %v2606 = vpack.c.b16 %v2562, %v2558
    %v2607 = vpack.c.b16 %v2563, %v2559
    %v2608 = vpack.c.b16 %v2564, %v2560
    %v2609 = vpack.c.b16 %v2565, %v2561
    %v2610 = vpack.c.b16 %v2570, %v2566
    %v2611 = vpack.c.b16 %v2571, %v2567
    %v2612 = vpack.c.b16 %v2572, %v2568
    %v2613 = vpack.c.b16 %v2573, %v2569
    %v2614 = vpack.c.b16 %v2578, %v2574
    %v2615 = vpack.c.b16 %v2579, %v2575
    %v2616 = vpack.c.b16 %v2580, %v2576
    %v2617 = vpack.c.b16 %v2581, %v2577
    %v2618 = vpack.c.b16 %v2586, %v2582
    %v2619 = vpack.c.b16 %v2587, %v2583
    %v2620 = vpack.c.b16 %v2588, %v2584
    %v2621 = vpack.c.b16 %v2589, %v2585
    %2654 = vmatprep.subr.bf16.mxu0 %v2619
    %2655 = vmatpush1.bf16.msra.mxu0 %v2618
    %2656 = vmatprep.subr.bf16.mxu0 %v2615
    %2657 = vmatpush1.bf16.msra.mxu0 %v2614
    %2658 = vmatprep.subr.bf16.mxu0 %v2611
    %2659 = vmatpush1.bf16.msra.mxu0 %v2610
    %2660 = vmatprep.subr.bf16.mxu0 %v2607
    %2661 = vmatpush1.bf16.msra.mxu0 %v2606
    %2662 = vmatprep.subr.bf16.mxu0 %v2603
    %2663 = vmatpush1.bf16.msra.mxu0 %v2602
    %2664 = vmatprep.subr.bf16.mxu0 %v2599
    %2665 = vmatpush1.bf16.msra.mxu0 %v2598
    %2666 = vmatprep.subr.bf16.mxu0 %v2595
    %2667 = vmatpush1.bf16.msra.mxu0 %v2594
    %2668 = vmatprep.subr.bf16.mxu0 %v2591
    %2669 = vmatpush1.bf16.msra.mxu0 %v2590
    %2670 = vmatprep.subr.bf16.mxu0 0
    %2671 = vmatpush2.bf16.msra.mxu0 0
    %2672 = vmatprep.subr.bf16.mxu0 0
    %2673 = vmatpush2.bf16.msra.mxu0 0
    %2674 = vmatprep.subr.bf16.mxu0 0
    %2675 = vmatpush2.bf16.msra.mxu0 0
    %2676 = vmatprep.subr.bf16.mxu0 0
    %2677 = vmatpush2.bf16.msra.mxu0 0
    %2678 = vmatprep.subr.bf16.mxu0 0
    %2679 = vmatpush2.bf16.msra.mxu0 0
    %2680 = vmatprep.subr.bf16.mxu0 0
    %2681 = vmatpush2.bf16.msra.mxu0 0
    %2682 = vmatprep.subr.bf16.mxu0 0
    %2683 = vmatpush2.bf16.msra.mxu0 0
    %2684 = vmatprep.subr.bf16.mxu0 0
    %2685 = vmatpush2.bf16.msra.mxu0 0
    %2686 = vmatprep.mubr.bf16.mxu0 0
    %2687 = vmatmul.mubr.bf16.gmra.mxu0 %v2493
    %v2688 = vpop.f32.mrf.mxu0
    %v2689 = vadd.f32 %v215, %v2688
    %v2690 = vpop.f32.mrf.mxu0
    %v2691 = vadd.f32 %v219, %v2690
    %v2692 = vpop.f32.mrf.mxu0
    %v2693 = vpop.f32.mrf.mxu0
    %2694 = vdwg.mxu0
    %2695 = vmatprep.subr.bf16.mxu0 %v2621
    %2696 = vmatpush1.bf16.msra.mxu0 %v2620
    %2697 = vmatprep.subr.bf16.mxu0 %v2617
    %2698 = vmatpush1.bf16.msra.mxu0 %v2616
    %2699 = vmatprep.subr.bf16.mxu0 %v2613
    %2700 = vmatpush1.bf16.msra.mxu0 %v2612
    %2701 = vmatprep.subr.bf16.mxu0 %v2609
    %2702 = vmatpush1.bf16.msra.mxu0 %v2608
    %2703 = vmatprep.subr.bf16.mxu0 %v2605
    %2704 = vmatpush1.bf16.msra.mxu0 %v2604
    %2705 = vmatprep.subr.bf16.mxu0 %v2601
    %2706 = vmatpush1.bf16.msra.mxu0 %v2600
    %2707 = vmatprep.subr.bf16.mxu0 %v2597
    %2708 = vmatpush1.bf16.msra.mxu0 %v2596
    %2709 = vmatprep.subr.bf16.mxu0 %v2593
    %2710 = vmatpush1.bf16.msra.mxu0 %v2592
    %2711 = vmatprep.subr.bf16.mxu0 0
    %2712 = vmatpush2.bf16.msra.mxu0 0
    %2713 = vmatprep.subr.bf16.mxu0 0
    %2714 = vmatpush2.bf16.msra.mxu0 0
    %2715 = vmatprep.subr.bf16.mxu0 0
    %2716 = vmatpush2.bf16.msra.mxu0 0
    %2717 = vmatprep.subr.bf16.mxu0 0
    %2718 = vmatpush2.bf16.msra.mxu0 0
    %2719 = vmatprep.subr.bf16.mxu0 0
    %2720 = vmatpush2.bf16.msra.mxu0 0
    %2721 = vmatprep.subr.bf16.mxu0 0
    %2722 = vmatpush2.bf16.msra.mxu0 0
    %2723 = vmatprep.subr.bf16.mxu0 0
    %2724 = vmatpush2.bf16.msra.mxu0 0
    %2725 = vmatprep.subr.bf16.mxu0 0
    %2726 = vmatpush2.bf16.msra.mxu0 0
    %2727 = vmatprep.mubr.bf16.mxu0 0
    %2728 = vmatmul.mubr.bf16.gmra.mxu0 %v2493
    %v2729 = vpop.f32.mrf.mxu0
    %v2730 = vadd.f32 %v223, %v2729
    %v2731 = vpop.f32.mrf.mxu0
    %v2732 = vadd.f32 %v227, %v2731
    %v2733 = vpop.f32.mrf.mxu0
    %v2734 = vpop.f32.mrf.mxu0
    %2735 = vdwg.mxu0
    %v2736 = vxor.u32 %v2689, 2147483648
    %v2737 = vxor.u32 %v2691, 2147483648
    %v2738 = vxor.u32 %v2730, 2147483648
    %v2739 = vmul.f32 %v2736, 1.442695
    %v2740 = vpow.pop %v2739
    %v2741 = vmul.f32 %v2737, 1.442695
    %v2742 = vpow.pop %v2741
    %v2743 = vmul.f32 %v2738, 1.442695
    %v2744 = vpow.pop %v2743
    %v2745 = vadd.f32 %v2740, 1.0
    %v2746 = vadd.f32 %v2742, 1.0
    %v2747 = vadd.f32 %v2744, 1.0
    %v2748 = vrcp.pop %v2745
    %v2749 = vmul.f32 1.0, %v2748
    %v2750 = vrcp.pop %v2746
    %v2751 = vmul.f32 1.0, %v2750
    %v2752 = vrcp.pop %v2747
    %v2753 = vmul.f32 1.0, %v2752
    %v2754 = vtanh.pop %v2732
    %v2755 = vmul.f32 %v2751, %v2207
    %v2756 = vmul.f32 %v2749, %v2754
    %v2757 = vadd.f32 %v2755, %v2756
    %v2758 = vtanh.pop %v2757
    %v2759 = vmul.f32 %v2753, %v2758
    %v2760 = vpack.c.bf16 %v2759, %v2759
    %v2761 = vpack.c.bf16 %v2454, %v2454
    %v2762 = vld [vmem:[#allocation3] sm:$0xff]
    %v2763 = vld [vmem:[#allocation3 + $0x8] sm:$0xff]
    %v2764 = vld [vmem:[#allocation3 + $0x10] sm:$0xff]
    %v2765 = vld [vmem:[#allocation3 + $0x18] sm:$0xff]
    %v2766 = vld [vmem:[#allocation3 + $0x20] sm:$0xff]
    %v2767 = vld [vmem:[#allocation3 + $0x28] sm:$0xff]
    %v2768 = vld [vmem:[#allocation3 + $0x30] sm:$0xff]
    %v2769 = vld [vmem:[#allocation3 + $0x38] sm:$0xff]
    %v2770 = vld [vmem:[#allocation3 + $0x40] sm:$0xff]
    %v2771 = vld [vmem:[#allocation3 + $0x48] sm:$0xff]
    %v2772 = vld [vmem:[#allocation3 + $0x50] sm:$0xff]
    %v2773 = vld [vmem:[#allocation3 + $0x58] sm:$0xff]
    %v2774 = vld [vmem:[#allocation3 + $0x60] sm:$0xff]
    %v2775 = vld [vmem:[#allocation3 + $0x68] sm:$0xff]
    %v2776 = vld [vmem:[#allocation3 + $0x70] sm:$0xff]
    %v2777 = vld [vmem:[#allocation3 + $0x78] sm:$0xff]
    %v2778 = vld [vmem:[#allocation3 + $0x80] sm:$0xff]
    %v2779 = vld [vmem:[#allocation3 + $0x88] sm:$0xff]
    %v2780 = vld [vmem:[#allocation3 + $0x90] sm:$0xff]
    %v2781 = vld [vmem:[#allocation3 + $0x98] sm:$0xff]
    %v2782 = vld [vmem:[#allocation3 + $0xa0] sm:$0xff]
    %v2783 = vld [vmem:[#allocation3 + $0xa8] sm:$0xff]
    %v2784 = vld [vmem:[#allocation3 + $0xb0] sm:$0xff]
    %v2785 = vld [vmem:[#allocation3 + $0xb8] sm:$0xff]
    %v2786 = vld [vmem:[#allocation3 + $0xc0] sm:$0xff]
    %v2787 = vld [vmem:[#allocation3 + $0xc8] sm:$0xff]
    %v2788 = vld [vmem:[#allocation3 + $0xd0] sm:$0xff]
    %v2789 = vld [vmem:[#allocation3 + $0xd8] sm:$0xff]
    %v2790 = vld [vmem:[#allocation3 + $0xe0] sm:$0xff]
    %v2791 = vld [vmem:[#allocation3 + $0xe8] sm:$0xff]
    %v2792 = vld [vmem:[#allocation3 + $0xf0] sm:$0xff]
    %v2793 = vld [vmem:[#allocation3 + $0xf8] sm:$0xff]
    %v2794 = vld [vmem:[#allocation3 + $0x100] sm:$0xff]
    %v2795 = vld [vmem:[#allocation3 + $0x108] sm:$0xff]
    %v2796 = vld [vmem:[#allocation3 + $0x110] sm:$0xff]
    %v2797 = vld [vmem:[#allocation3 + $0x118] sm:$0xff]
    %v2798 = vld [vmem:[#allocation3 + $0x120] sm:$0xff]
    %v2799 = vld [vmem:[#allocation3 + $0x128] sm:$0xff]
    %v2800 = vld [vmem:[#allocation3 + $0x130] sm:$0xff]
    %v2801 = vld [vmem:[#allocation3 + $0x138] sm:$0xff]
    %v2802 = vld [vmem:[#allocation3 + $0x140] sm:$0xff]
    %v2803 = vld [vmem:[#allocation3 + $0x148] sm:$0xff]
    %v2804 = vld [vmem:[#allocation3 + $0x150] sm:$0xff]
    %v2805 = vld [vmem:[#allocation3 + $0x158] sm:$0xff]
    %v2806 = vld [vmem:[#allocation3 + $0x160] sm:$0xff]
    %v2807 = vld [vmem:[#allocation3 + $0x168] sm:$0xff]
    %v2808 = vld [vmem:[#allocation3 + $0x170] sm:$0xff]
    %v2809 = vld [vmem:[#allocation3 + $0x178] sm:$0xff]
    %v2810 = vld [vmem:[#allocation3 + $0x180] sm:$0xff]
    %v2811 = vld [vmem:[#allocation3 + $0x188] sm:$0xff]
    %v2812 = vld [vmem:[#allocation3 + $0x190] sm:$0xff]
    %v2813 = vld [vmem:[#allocation3 + $0x198] sm:$0xff]
    %v2814 = vld [vmem:[#allocation3 + $0x1a0] sm:$0xff]
    %v2815 = vld [vmem:[#allocation3 + $0x1a8] sm:$0xff]
    %v2816 = vld [vmem:[#allocation3 + $0x1b0] sm:$0xff]
    %v2817 = vld [vmem:[#allocation3 + $0x1b8] sm:$0xff]
    %v2818 = vld [vmem:[#allocation3 + $0x1c0] sm:$0xff]
    %v2819 = vld [vmem:[#allocation3 + $0x1c8] sm:$0xff]
    %v2820 = vld [vmem:[#allocation3 + $0x1d0] sm:$0xff]
    %v2821 = vld [vmem:[#allocation3 + $0x1d8] sm:$0xff]
    %v2822 = vld [vmem:[#allocation3 + $0x1e0] sm:$0xff]
    %v2823 = vld [vmem:[#allocation3 + $0x1e8] sm:$0xff]
    %v2824 = vld [vmem:[#allocation3 + $0x1f0] sm:$0xff]
    %v2825 = vld [vmem:[#allocation3 + $0x1f8] sm:$0xff]
    %v2890 = vunpack.c.l.b16 %v2762
    %v2891 = vunpack.c.h.b16 %v2762
    %v2892 = vunpack.c.l.b16 %v2763
    %v2893 = vunpack.c.h.b16 %v2763
    %v2894 = vunpack.c.l.b16 %v2764
    %v2895 = vunpack.c.h.b16 %v2764
    %v2896 = vunpack.c.l.b16 %v2765
    %v2897 = vunpack.c.h.b16 %v2765
    %v2898 = vunpack.c.l.b16 %v2766
    %v2899 = vunpack.c.h.b16 %v2766
    %v2900 = vunpack.c.l.b16 %v2767
    %v2901 = vunpack.c.h.b16 %v2767
    %v2902 = vunpack.c.l.b16 %v2768
    %v2903 = vunpack.c.h.b16 %v2768
    %v2904 = vunpack.c.l.b16 %v2769
    %v2905 = vunpack.c.h.b16 %v2769
    %v2906 = vunpack.c.l.b16 %v2770
    %v2907 = vunpack.c.h.b16 %v2770
    %v2908 = vunpack.c.l.b16 %v2771
    %v2909 = vunpack.c.h.b16 %v2771
    %v2910 = vunpack.c.l.b16 %v2772
    %v2911 = vunpack.c.h.b16 %v2772
    %v2912 = vunpack.c.l.b16 %v2773
    %v2913 = vunpack.c.h.b16 %v2773
    %v2914 = vunpack.c.l.b16 %v2774
    %v2915 = vunpack.c.h.b16 %v2774
    %v2916 = vunpack.c.l.b16 %v2775
    %v2917 = vunpack.c.h.b16 %v2775
    %v2918 = vunpack.c.l.b16 %v2776
    %v2919 = vunpack.c.h.b16 %v2776
    %v2920 = vunpack.c.l.b16 %v2777
    %v2921 = vunpack.c.h.b16 %v2777
    %v2922 = vunpack.c.l.b16 %v2778
    %v2923 = vunpack.c.h.b16 %v2778
    %v2924 = vunpack.c.l.b16 %v2779
    %v2925 = vunpack.c.h.b16 %v2779
    %v2926 = vunpack.c.l.b16 %v2780
    %v2927 = vunpack.c.h.b16 %v2780
    %v2928 = vunpack.c.l.b16 %v2781
    %v2929 = vunpack.c.h.b16 %v2781
    %v2930 = vunpack.c.l.b16 %v2782
    %v2931 = vunpack.c.h.b16 %v2782
    %v2932 = vunpack.c.l.b16 %v2783
    %v2933 = vunpack.c.h.b16 %v2783
    %v2934 = vunpack.c.l.b16 %v2784
    %v2935 = vunpack.c.h.b16 %v2784
    %v2936 = vunpack.c.l.b16 %v2785
    %v2937 = vunpack.c.h.b16 %v2785
    %v2938 = vunpack.c.l.b16 %v2786
    %v2939 = vunpack.c.h.b16 %v2786
    %v2940 = vunpack.c.l.b16 %v2787
    %v2941 = vunpack.c.h.b16 %v2787
    %v2942 = vunpack.c.l.b16 %v2788
    %v2943 = vunpack.c.h.b16 %v2788
    %v2944 = vunpack.c.l.b16 %v2789
    %v2945 = vunpack.c.h.b16 %v2789
    %v2946 = vunpack.c.l.b16 %v2790
    %v2947 = vunpack.c.h.b16 %v2790
    %v2948 = vunpack.c.l.b16 %v2791
    %v2949 = vunpack.c.h.b16 %v2791
    %v2950 = vunpack.c.l.b16 %v2792
    %v2951 = vunpack.c.h.b16 %v2792
    %v2952 = vunpack.c.l.b16 %v2793
    %v2953 = vunpack.c.h.b16 %v2793
    %v2954 = vunpack.c.l.b16 %v2794
    %v2955 = vunpack.c.h.b16 %v2794
    %v2956 = vunpack.c.l.b16 %v2795
    %v2957 = vunpack.c.h.b16 %v2795
    %v2958 = vunpack.c.l.b16 %v2796
    %v2959 = vunpack.c.h.b16 %v2796
    %v2960 = vunpack.c.l.b16 %v2797
    %v2961 = vunpack.c.h.b16 %v2797
    %v2962 = vunpack.c.l.b16 %v2798
    %v2963 = vunpack.c.h.b16 %v2798
    %v2964 = vunpack.c.l.b16 %v2799
    %v2965 = vunpack.c.h.b16 %v2799
    %v2966 = vunpack.c.l.b16 %v2800
    %v2967 = vunpack.c.h.b16 %v2800
    %v2968 = vunpack.c.l.b16 %v2801
    %v2969 = vunpack.c.h.b16 %v2801
    %v2970 = vunpack.c.l.b16 %v2802
    %v2971 = vunpack.c.h.b16 %v2802
    %v2972 = vunpack.c.l.b16 %v2803
    %v2973 = vunpack.c.h.b16 %v2803
    %v2974 = vunpack.c.l.b16 %v2804
    %v2975 = vunpack.c.h.b16 %v2804
    %v2976 = vunpack.c.l.b16 %v2805
    %v2977 = vunpack.c.h.b16 %v2805
    %v2978 = vunpack.c.l.b16 %v2806
    %v2979 = vunpack.c.h.b16 %v2806
    %v2980 = vunpack.c.l.b16 %v2807
    %v2981 = vunpack.c.h.b16 %v2807
    %v2982 = vunpack.c.l.b16 %v2808
    %v2983 = vunpack.c.h.b16 %v2808
    %v2984 = vunpack.c.l.b16 %v2809
    %v2985 = vunpack.c.h.b16 %v2809
    %v2986 = vunpack.c.l.b16 %v2810
    %v2987 = vunpack.c.h.b16 %v2810
    %v2988 = vunpack.c.l.b16 %v2811
    %v2989 = vunpack.c.h.b16 %v2811
    %v2990 = vunpack.c.l.b16 %v2812
    %v2991 = vunpack.c.h.b16 %v2812
    %v2992 = vunpack.c.l.b16 %v2813
    %v2993 = vunpack.c.h.b16 %v2813
    %v2994 = vunpack.c.l.b16 %v2814
    %v2995 = vunpack.c.h.b16 %v2814
    %v2996 = vunpack.c.l.b16 %v2815
    %v2997 = vunpack.c.h.b16 %v2815
    %v2998 = vunpack.c.l.b16 %v2816
    %v2999 = vunpack.c.h.b16 %v2816
    %v3000 = vunpack.c.l.b16 %v2817
    %v3001 = vunpack.c.h.b16 %v2817
    %v3002 = vunpack.c.l.b16 %v2818
    %v3003 = vunpack.c.h.b16 %v2818
    %v3004 = vunpack.c.l.b16 %v2819
    %v3005 = vunpack.c.h.b16 %v2819
    %v3006 = vunpack.c.l.b16 %v2820
    %v3007 = vunpack.c.h.b16 %v2820
    %v3008 = vunpack.c.l.b16 %v2821
    %v3009 = vunpack.c.h.b16 %v2821
    %v3010 = vunpack.c.l.b16 %v2822
    %v3011 = vunpack.c.h.b16 %v2822
    %v3012 = vunpack.c.l.b16 %v2823
    %v3013 = vunpack.c.h.b16 %v2823
    %v3014 = vunpack.c.l.b16 %v2824
    %v3015 = vunpack.c.h.b16 %v2824
    %v3016 = vunpack.c.l.b16 %v2825
    %v3017 = vunpack.c.h.b16 %v2825
    %v3018 = vpack.c.b16 %v2894, %v2890
    %v3019 = vpack.c.b16 %v2895, %v2891
    %v3020 = vpack.c.b16 %v2896, %v2892
    %v3021 = vpack.c.b16 %v2897, %v2893
    %v3022 = vpack.c.b16 %v2902, %v2898
    %v3023 = vpack.c.b16 %v2903, %v2899
    %v3024 = vpack.c.b16 %v2904, %v2900
    %v3025 = vpack.c.b16 %v2905, %v2901
    %v3026 = vpack.c.b16 %v2910, %v2906
    %v3027 = vpack.c.b16 %v2911, %v2907
    %v3028 = vpack.c.b16 %v2912, %v2908
    %v3029 = vpack.c.b16 %v2913, %v2909
    %v3030 = vpack.c.b16 %v2918, %v2914
    %v3031 = vpack.c.b16 %v2919, %v2915
    %v3032 = vpack.c.b16 %v2920, %v2916
    %v3033 = vpack.c.b16 %v2921, %v2917
    %v3034 = vpack.c.b16 %v2926, %v2922
    %v3035 = vpack.c.b16 %v2927, %v2923
    %v3036 = vpack.c.b16 %v2928, %v2924
    %v3037 = vpack.c.b16 %v2929, %v2925
    %v3038 = vpack.c.b16 %v2934, %v2930
    %v3039 = vpack.c.b16 %v2935, %v2931
    %v3040 = vpack.c.b16 %v2936, %v2932
    %v3041 = vpack.c.b16 %v2937, %v2933
    %v3042 = vpack.c.b16 %v2942, %v2938
    %v3043 = vpack.c.b16 %v2943, %v2939
    %v3044 = vpack.c.b16 %v2944, %v2940
    %v3045 = vpack.c.b16 %v2945, %v2941
    %v3046 = vpack.c.b16 %v2950, %v2946
    %v3047 = vpack.c.b16 %v2951, %v2947
    %v3048 = vpack.c.b16 %v2952, %v2948
    %v3049 = vpack.c.b16 %v2953, %v2949
    %v3050 = vpack.c.b16 %v2958, %v2954
    %v3051 = vpack.c.b16 %v2959, %v2955
    %v3052 = vpack.c.b16 %v2960, %v2956
    %v3053 = vpack.c.b16 %v2961, %v2957
    %v3054 = vpack.c.b16 %v2966, %v2962
    %v3055 = vpack.c.b16 %v2967, %v2963
    %v3056 = vpack.c.b16 %v2968, %v2964
    %v3057 = vpack.c.b16 %v2969, %v2965
    %v3058 = vpack.c.b16 %v2974, %v2970
    %v3059 = vpack.c.b16 %v2975, %v2971
    %v3060 = vpack.c.b16 %v2976, %v2972
    %v3061 = vpack.c.b16 %v2977, %v2973
    %v3062 = vpack.c.b16 %v2982, %v2978
    %v3063 = vpack.c.b16 %v2983, %v2979
    %v3064 = vpack.c.b16 %v2984, %v2980
    %v3065 = vpack.c.b16 %v2985, %v2981
    %v3066 = vpack.c.b16 %v2990, %v2986
    %v3067 = vpack.c.b16 %v2991, %v2987
    %v3068 = vpack.c.b16 %v2992, %v2988
    %v3069 = vpack.c.b16 %v2993, %v2989
    %v3070 = vpack.c.b16 %v2998, %v2994
    %v3071 = vpack.c.b16 %v2999, %v2995
    %v3072 = vpack.c.b16 %v3000, %v2996
    %v3073 = vpack.c.b16 %v3001, %v2997
    %v3074 = vpack.c.b16 %v3006, %v3002
    %v3075 = vpack.c.b16 %v3007, %v3003
    %v3076 = vpack.c.b16 %v3008, %v3004
    %v3077 = vpack.c.b16 %v3009, %v3005
    %v3078 = vpack.c.b16 %v3014, %v3010
    %v3079 = vpack.c.b16 %v3015, %v3011
    %v3080 = vpack.c.b16 %v3016, %v3012
    %v3081 = vpack.c.b16 %v3017, %v3013
    %3146 = vmatprep.subr.bf16.mxu0 %v3047
    %3147 = vmatpush1.bf16.msra.mxu0 %v3046
    %3148 = vmatprep.subr.bf16.mxu0 %v3043
    %3149 = vmatpush1.bf16.msra.mxu0 %v3042
    %3150 = vmatprep.subr.bf16.mxu0 %v3039
    %3151 = vmatpush1.bf16.msra.mxu0 %v3038
    %3152 = vmatprep.subr.bf16.mxu0 %v3035
    %3153 = vmatpush1.bf16.msra.mxu0 %v3034
    %3154 = vmatprep.subr.bf16.mxu0 %v3031
    %3155 = vmatpush1.bf16.msra.mxu0 %v3030
    %3156 = vmatprep.subr.bf16.mxu0 %v3027
    %3157 = vmatpush1.bf16.msra.mxu0 %v3026
    %3158 = vmatprep.subr.bf16.mxu0 %v3023
    %3159 = vmatpush1.bf16.msra.mxu0 %v3022
    %3160 = vmatprep.subr.bf16.mxu0 %v3019
    %3161 = vmatpush1.bf16.msra.mxu0 %v3018
    %3162 = vmatprep.subr.bf16.mxu0 %v3079
    %3163 = vmatpush2.bf16.msra.mxu0 %v3078
    %3164 = vmatprep.subr.bf16.mxu0 %v3075
    %3165 = vmatpush2.bf16.msra.mxu0 %v3074
    %3166 = vmatprep.subr.bf16.mxu0 %v3071
    %3167 = vmatpush2.bf16.msra.mxu0 %v3070
    %3168 = vmatprep.subr.bf16.mxu0 %v3067
    %3169 = vmatpush2.bf16.msra.mxu0 %v3066
    %3170 = vmatprep.subr.bf16.mxu0 %v3063
    %3171 = vmatpush2.bf16.msra.mxu0 %v3062
    %3172 = vmatprep.subr.bf16.mxu0 %v3059
    %3173 = vmatpush2.bf16.msra.mxu0 %v3058
    %3174 = vmatprep.subr.bf16.mxu0 %v3055
    %3175 = vmatpush2.bf16.msra.mxu0 %v3054
    %3176 = vmatprep.subr.bf16.mxu0 %v3051
    %3177 = vmatpush2.bf16.msra.mxu0 %v3050
    %3178 = vmatprep.mubr.bf16.mxu0 %v2761
    %3179 = vmatmul.mubr.bf16.gmra.mxu0 %v2760
    %v3180 = vpop.f32.mrf.mxu0
    %v3181 = vadd.f32 %v237, %v3180
    %v3182 = vpop.f32.mrf.mxu0
    %v3183 = vadd.f32 %v241, %v3182
    %v3184 = vpop.f32.mrf.mxu0
    %v3185 = vpop.f32.mrf.mxu0
    %3186 = vdwg.mxu0
    %3187 = vmatprep.subr.bf16.mxu0 %v3049
    %3188 = vmatpush1.bf16.msra.mxu0 %v3048
    %3189 = vmatprep.subr.bf16.mxu0 %v3045
    %3190 = vmatpush1.bf16.msra.mxu0 %v3044
    %3191 = vmatprep.subr.bf16.mxu0 %v3041
    %3192 = vmatpush1.bf16.msra.mxu0 %v3040
    %3193 = vmatprep.subr.bf16.mxu0 %v3037
    %3194 = vmatpush1.bf16.msra.mxu0 %v3036
    %3195 = vmatprep.subr.bf16.mxu0 %v3033
    %3196 = vmatpush1.bf16.msra.mxu0 %v3032
    %3197 = vmatprep.subr.bf16.mxu0 %v3029
    %3198 = vmatpush1.bf16.msra.mxu0 %v3028
    %3199 = vmatprep.subr.bf16.mxu0 %v3025
    %3200 = vmatpush1.bf16.msra.mxu0 %v3024
    %3201 = vmatprep.subr.bf16.mxu0 %v3021
    %3202 = vmatpush1.bf16.msra.mxu0 %v3020
    %3203 = vmatprep.subr.bf16.mxu0 %v3081
    %3204 = vmatpush2.bf16.msra.mxu0 %v3080
    %3205 = vmatprep.subr.bf16.mxu0 %v3077
    %3206 = vmatpush2.bf16.msra.mxu0 %v3076
    %3207 = vmatprep.subr.bf16.mxu0 %v3073
    %3208 = vmatpush2.bf16.msra.mxu0 %v3072
    %3209 = vmatprep.subr.bf16.mxu0 %v3069
    %3210 = vmatpush2.bf16.msra.mxu0 %v3068
    %3211 = vmatprep.subr.bf16.mxu0 %v3065
    %3212 = vmatpush2.bf16.msra.mxu0 %v3064
    %3213 = vmatprep.subr.bf16.mxu0 %v3061
    %3214 = vmatpush2.bf16.msra.mxu0 %v3060
    %3215 = vmatprep.subr.bf16.mxu0 %v3057
    %3216 = vmatpush2.bf16.msra.mxu0 %v3056
    %3217 = vmatprep.subr.bf16.mxu0 %v3053
    %3218 = vmatpush2.bf16.msra.mxu0 %v3052
    %3219 = vmatprep.mubr.bf16.mxu0 %v2761
    %3220 = vmatmul.mubr.bf16.gmra.mxu0 %v2760
    %v3221 = vpop.f32.mrf.mxu0
    %v3222 = vadd.f32 %v245, %v3221
    %v3223 = vpop.f32.mrf.mxu0
    %v3224 = vadd.f32 %v249, %v3223
    %v3225 = vpop.f32.mrf.mxu0
    %v3226 = vpop.f32.mrf.mxu0
    %3227 = vdwg.mxu0
    %v3228 = vxor.u32 %v3181, 2147483648
    %v3229 = vxor.u32 %v3183, 2147483648
    %v3230 = vxor.u32 %v3222, 2147483648
    %v3231 = vmul.f32 %v3228, 1.442695
    %v3232 = vpow.pop %v3231
    %v3233 = vmul.f32 %v3229, 1.442695
    %v3234 = vpow.pop %v3233
    %v3235 = vmul.f32 %v3230, 1.442695
    %v3236 = vpow.pop %v3235
    %v3237 = vadd.f32 %v3232, 1.0
    %v3238 = vadd.f32 %v3234, 1.0
    %v3239 = vadd.f32 %v3236, 1.0
    %v3240 = vrcp.pop %v3237
    %v3241 = vmul.f32 1.0, %v3240
    %v3242 = vrcp.pop %v3238
    %v3243 = vmul.f32 1.0, %v3242
    %v3244 = vrcp.pop %v3239
    %v3245 = vmul.f32 1.0, %v3244
    %v3246 = vtanh.pop %v3224
    %v3247 = vmul.f32 %v3243, %v2315
    %v3248 = vmul.f32 %v3241, %v3246
    %v3249 = vadd.f32 %v3247, %v3248
    %v3250 = vtanh.pop %v3249
    %v3251 = vmul.f32 %v3245, %v3250
    %v3252 = vpack.c.bf16 %v3251, %v3251
    %v3253 = vld [vmem:[#allocation2] sm:$0xff]
    %v3254 = vld [vmem:[#allocation2 + $0x8] sm:$0xff]
    %v3255 = vld [vmem:[#allocation2 + $0x10] sm:$0xff]
    %v3256 = vld [vmem:[#allocation2 + $0x18] sm:$0xff]
    %v3257 = vld [vmem:[#allocation2 + $0x20] sm:$0xff]
    %v3258 = vld [vmem:[#allocation2 + $0x28] sm:$0xff]
    %v3259 = vld [vmem:[#allocation2 + $0x30] sm:$0xff]
    %v3260 = vld [vmem:[#allocation2 + $0x38] sm:$0xff]
    %v3261 = vld [vmem:[#allocation2 + $0x40] sm:$0xff]
    %v3262 = vld [vmem:[#allocation2 + $0x48] sm:$0xff]
    %v3263 = vld [vmem:[#allocation2 + $0x50] sm:$0xff]
    %v3264 = vld [vmem:[#allocation2 + $0x58] sm:$0xff]
    %v3265 = vld [vmem:[#allocation2 + $0x60] sm:$0xff]
    %v3266 = vld [vmem:[#allocation2 + $0x68] sm:$0xff]
    %v3267 = vld [vmem:[#allocation2 + $0x70] sm:$0xff]
    %v3268 = vld [vmem:[#allocation2 + $0x78] sm:$0xff]
    %v3269 = vld [vmem:[#allocation2 + $0x80] sm:$0xff]
    %v3270 = vld [vmem:[#allocation2 + $0x88] sm:$0xff]
    %v3271 = vld [vmem:[#allocation2 + $0x90] sm:$0xff]
    %v3272 = vld [vmem:[#allocation2 + $0x98] sm:$0xff]
    %v3273 = vld [vmem:[#allocation2 + $0xa0] sm:$0xff]
    %v3274 = vld [vmem:[#allocation2 + $0xa8] sm:$0xff]
    %v3275 = vld [vmem:[#allocation2 + $0xb0] sm:$0xff]
    %v3276 = vld [vmem:[#allocation2 + $0xb8] sm:$0xff]
    %v3277 = vld [vmem:[#allocation2 + $0xc0] sm:$0xff]
    %v3278 = vld [vmem:[#allocation2 + $0xc8] sm:$0xff]
    %v3279 = vld [vmem:[#allocation2 + $0xd0] sm:$0xff]
    %v3280 = vld [vmem:[#allocation2 + $0xd8] sm:$0xff]
    %v3281 = vld [vmem:[#allocation2 + $0xe0] sm:$0xff]
    %v3282 = vld [vmem:[#allocation2 + $0xe8] sm:$0xff]
    %v3283 = vld [vmem:[#allocation2 + $0xf0] sm:$0xff]
    %v3284 = vld [vmem:[#allocation2 + $0xf8] sm:$0xff]
    %v3317 = vunpack.c.l.b16 %v3253
    %v3318 = vunpack.c.h.b16 %v3253
    %v3319 = vunpack.c.l.b16 %v3254
    %v3320 = vunpack.c.h.b16 %v3254
    %v3321 = vunpack.c.l.b16 %v3255
    %v3322 = vunpack.c.h.b16 %v3255
    %v3323 = vunpack.c.l.b16 %v3256
    %v3324 = vunpack.c.h.b16 %v3256
    %v3325 = vunpack.c.l.b16 %v3257
    %v3326 = vunpack.c.h.b16 %v3257
    %v3327 = vunpack.c.l.b16 %v3258
    %v3328 = vunpack.c.h.b16 %v3258
    %v3329 = vunpack.c.l.b16 %v3259
    %v3330 = vunpack.c.h.b16 %v3259
    %v3331 = vunpack.c.l.b16 %v3260
    %v3332 = vunpack.c.h.b16 %v3260
    %v3333 = vunpack.c.l.b16 %v3261
    %v3334 = vunpack.c.h.b16 %v3261
    %v3335 = vunpack.c.l.b16 %v3262
    %v3336 = vunpack.c.h.b16 %v3262
    %v3337 = vunpack.c.l.b16 %v3263
    %v3338 = vunpack.c.h.b16 %v3263
    %v3339 = vunpack.c.l.b16 %v3264
    %v3340 = vunpack.c.h.b16 %v3264
    %v3341 = vunpack.c.l.b16 %v3265
    %v3342 = vunpack.c.h.b16 %v3265
    %v3343 = vunpack.c.l.b16 %v3266
    %v3344 = vunpack.c.h.b16 %v3266
    %v3345 = vunpack.c.l.b16 %v3267
    %v3346 = vunpack.c.h.b16 %v3267
    %v3347 = vunpack.c.l.b16 %v3268
    %v3348 = vunpack.c.h.b16 %v3268
    %v3349 = vunpack.c.l.b16 %v3269
    %v3350 = vunpack.c.h.b16 %v3269
    %v3351 = vunpack.c.l.b16 %v3270
    %v3352 = vunpack.c.h.b16 %v3270
    %v3353 = vunpack.c.l.b16 %v3271
    %v3354 = vunpack.c.h.b16 %v3271
    %v3355 = vunpack.c.l.b16 %v3272
    %v3356 = vunpack.c.h.b16 %v3272
    %v3357 = vunpack.c.l.b16 %v3273
    %v3358 = vunpack.c.h.b16 %v3273
    %v3359 = vunpack.c.l.b16 %v3274
    %v3360 = vunpack.c.h.b16 %v3274
    %v3361 = vunpack.c.l.b16 %v3275
    %v3362 = vunpack.c.h.b16 %v3275
    %v3363 = vunpack.c.l.b16 %v3276
    %v3364 = vunpack.c.h.b16 %v3276
    %v3365 = vunpack.c.l.b16 %v3277
    %v3366 = vunpack.c.h.b16 %v3277
    %v3367 = vunpack.c.l.b16 %v3278
    %v3368 = vunpack.c.h.b16 %v3278
    %v3369 = vunpack.c.l.b16 %v3279
    %v3370 = vunpack.c.h.b16 %v3279
    %v3371 = vunpack.c.l.b16 %v3280
    %v3372 = vunpack.c.h.b16 %v3280
    %v3373 = vunpack.c.l.b16 %v3281
    %v3374 = vunpack.c.h.b16 %v3281
    %v3375 = vunpack.c.l.b16 %v3282
    %v3376 = vunpack.c.h.b16 %v3282
    %v3377 = vunpack.c.l.b16 %v3283
    %v3378 = vunpack.c.h.b16 %v3283
    %v3379 = vunpack.c.l.b16 %v3284
    %v3380 = vunpack.c.h.b16 %v3284
    %v3381 = vpack.c.b16 %v3321, %v3317
    %v3382 = vpack.c.b16 %v3322, %v3318
    %v3383 = vpack.c.b16 %v3323, %v3319
    %v3384 = vpack.c.b16 %v3324, %v3320
    %v3385 = vpack.c.b16 %v3329, %v3325
    %v3386 = vpack.c.b16 %v3330, %v3326
    %v3387 = vpack.c.b16 %v3331, %v3327
    %v3388 = vpack.c.b16 %v3332, %v3328
    %v3389 = vpack.c.b16 %v3337, %v3333
    %v3390 = vpack.c.b16 %v3338, %v3334
    %v3391 = vpack.c.b16 %v3339, %v3335
    %v3392 = vpack.c.b16 %v3340, %v3336
    %v3393 = vpack.c.b16 %v3345, %v3341
    %v3394 = vpack.c.b16 %v3346, %v3342
    %v3395 = vpack.c.b16 %v3347, %v3343
    %v3396 = vpack.c.b16 %v3348, %v3344
    %v3397 = vpack.c.b16 %v3353, %v3349
    %v3398 = vpack.c.b16 %v3354, %v3350
    %v3399 = vpack.c.b16 %v3355, %v3351
    %v3400 = vpack.c.b16 %v3356, %v3352
    %v3401 = vpack.c.b16 %v3361, %v3357
    %v3402 = vpack.c.b16 %v3362, %v3358
    %v3403 = vpack.c.b16 %v3363, %v3359
    %v3404 = vpack.c.b16 %v3364, %v3360
    %v3405 = vpack.c.b16 %v3369, %v3365
    %v3406 = vpack.c.b16 %v3370, %v3366
    %v3407 = vpack.c.b16 %v3371, %v3367
    %v3408 = vpack.c.b16 %v3372, %v3368
    %v3409 = vpack.c.b16 %v3377, %v3373
    %v3410 = vpack.c.b16 %v3378, %v3374
    %v3411 = vpack.c.b16 %v3379, %v3375
    %v3412 = vpack.c.b16 %v3380, %v3376
    %3445 = vmatprep.subr.bf16.mxu0 %v3410
    %3446 = vmatpush1.bf16.msra.mxu0 %v3409
    %3447 = vmatprep.subr.bf16.mxu0 %v3406
    %3448 = vmatpush1.bf16.msra.mxu0 %v3405
    %3449 = vmatprep.subr.bf16.mxu0 %v3402
    %3450 = vmatpush1.bf16.msra.mxu0 %v3401
    %3451 = vmatprep.subr.bf16.mxu0 %v3398
    %3452 = vmatpush1.bf16.msra.mxu0 %v3397
    %3453 = vmatprep.subr.bf16.mxu0 %v3394
    %3454 = vmatpush1.bf16.msra.mxu0 %v3393
    %3455 = vmatprep.subr.bf16.mxu0 %v3390
    %3456 = vmatpush1.bf16.msra.mxu0 %v3389
    %3457 = vmatprep.subr.bf16.mxu0 %v3386
    %3458 = vmatpush1.bf16.msra.mxu0 %v3385
    %3459 = vmatprep.subr.bf16.mxu0 %v3382
    %3460 = vmatpush1.bf16.msra.mxu0 %v3381
    %3461 = vmatprep.subr.bf16.mxu0 %v2619
    %3462 = vmatpush2.bf16.msra.mxu0 %v2618
    %3463 = vmatprep.subr.bf16.mxu0 %v2615
    %3464 = vmatpush2.bf16.msra.mxu0 %v2614
    %3465 = vmatprep.subr.bf16.mxu0 %v2611
    %3466 = vmatpush2.bf16.msra.mxu0 %v2610
    %3467 = vmatprep.subr.bf16.mxu0 %v2607
    %3468 = vmatpush2.bf16.msra.mxu0 %v2606
    %3469 = vmatprep.subr.bf16.mxu0 %v2603
    %3470 = vmatpush2.bf16.msra.mxu0 %v2602
    %3471 = vmatprep.subr.bf16.mxu0 %v2599
    %3472 = vmatpush2.bf16.msra.mxu0 %v2598
    %3473 = vmatprep.subr.bf16.mxu0 %v2595
    %3474 = vmatpush2.bf16.msra.mxu0 %v2594
    %3475 = vmatprep.subr.bf16.mxu0 %v2591
    %3476 = vmatpush2.bf16.msra.mxu0 %v2590
    %3477 = vmatprep.mubr.bf16.mxu0 %v2760
    %3478 = vmatmul.mubr.bf16.gmra.mxu0 %v3252
    %v3479 = vpop.f32.mrf.mxu0
    %v3480 = vadd.f32 %v215, %v3479
    %v3481 = vpop.f32.mrf.mxu0
    %v3482 = vadd.f32 %v219, %v3481
    %v3483 = vpop.f32.mrf.mxu0
    %v3484 = vpop.f32.mrf.mxu0
    %3485 = vdwg.mxu0
    %3486 = vmatprep.subr.bf16.mxu0 %v3412
    %3487 = vmatpush1.bf16.msra.mxu0 %v3411
    %3488 = vmatprep.subr.bf16.mxu0 %v3408
    %3489 = vmatpush1.bf16.msra.mxu0 %v3407
    %3490 = vmatprep.subr.bf16.mxu0 %v3404
    %3491 = vmatpush1.bf16.msra.mxu0 %v3403
    %3492 = vmatprep.subr.bf16.mxu0 %v3400
    %3493 = vmatpush1.bf16.msra.mxu0 %v3399
    %3494 = vmatprep.subr.bf16.mxu0 %v3396
    %3495 = vmatpush1.bf16.msra.mxu0 %v3395
    %3496 = vmatprep.subr.bf16.mxu0 %v3392
    %3497 = vmatpush1.bf16.msra.mxu0 %v3391
    %3498 = vmatprep.subr.bf16.mxu0 %v3388
    %3499 = vmatpush1.bf16.msra.mxu0 %v3387
    %3500 = vmatprep.subr.bf16.mxu0 %v3384
    %3501 = vmatpush1.bf16.msra.mxu0 %v3383
    %3502 = vmatprep.subr.bf16.mxu0 %v2621
    %3503 = vmatpush2.bf16.msra.mxu0 %v2620
    %3504 = vmatprep.subr.bf16.mxu0 %v2617
    %3505 = vmatpush2.bf16.msra.mxu0 %v2616
    %3506 = vmatprep.subr.bf16.mxu0 %v2613
    %3507 = vmatpush2.bf16.msra.mxu0 %v2612
    %3508 = vmatprep.subr.bf16.mxu0 %v2609
    %3509 = vmatpush2.bf16.msra.mxu0 %v2608
    %3510 = vmatprep.subr.bf16.mxu0 %v2605
    %3511 = vmatpush2.bf16.msra.mxu0 %v2604
    %3512 = vmatprep.subr.bf16.mxu0 %v2601
    %3513 = vmatpush2.bf16.msra.mxu0 %v2600
    %3514 = vmatprep.subr.bf16.mxu0 %v2597
    %3515 = vmatpush2.bf16.msra.mxu0 %v2596
    %3516 = vmatprep.subr.bf16.mxu0 %v2593
    %3517 = vmatpush2.bf16.msra.mxu0 %v2592
    %3518 = vmatprep.mubr.bf16.mxu0 %v2760
    %3519 = vmatmul.mubr.bf16.gmra.mxu0 %v3252
    %v3520 = vpop.f32.mrf.mxu0
    %v3521 = vadd.f32 %v223, %v3520
    %v3522 = vpop.f32.mrf.mxu0
    %v3523 = vadd.f32 %v227, %v3522
    %v3524 = vpop.f32.mrf.mxu0
    %v3525 = vpop.f32.mrf.mxu0
    %3526 = vdwg.mxu0
    %v3527 = vxor.u32 %v3480, 2147483648
    %v3528 = vxor.u32 %v3482, 2147483648
    %v3529 = vxor.u32 %v3521, 2147483648
    %v3530 = vmul.f32 %v3527, 1.442695
    %v3531 = vpow.pop %v3530
    %v3532 = vmul.f32 %v3528, 1.442695
    %v3533 = vpow.pop %v3532
    %v3534 = vmul.f32 %v3529, 1.442695
    %v3535 = vpow.pop %v3534
    %v3536 = vadd.f32 %v3531, 1.0
    %v3537 = vadd.f32 %v3533, 1.0
    %v3538 = vadd.f32 %v3535, 1.0
    %v3539 = vrcp.pop %v3536
    %v3540 = vmul.f32 1.0, %v3539
    %v3541 = vrcp.pop %v3537
    %v3542 = vmul.f32 1.0, %v3541
    %v3543 = vrcp.pop %v3538
    %v3544 = vmul.f32 1.0, %v3543
    %v3545 = vtanh.pop %v3523
    %v3546 = vmul.f32 %v3542, %v2757
    %v3547 = vmul.f32 %v3540, %v3545
    %v3548 = vadd.f32 %v3546, %v3547
    %v3549 = vtanh.pop %v3548
    %v3550 = vmul.f32 %v3544, %v3549
    %v3551 = vpack.c.bf16 %v3550, %v3550
    %3552 = vmatprep.subr.bf16.mxu0 %v3047
    %3553 = vmatpush1.bf16.msra.mxu0 %v3046
    %3554 = vmatprep.subr.bf16.mxu0 %v3043
    %3555 = vmatpush1.bf16.msra.mxu0 %v3042
    %3556 = vmatprep.subr.bf16.mxu0 %v3039
    %3557 = vmatpush1.bf16.msra.mxu0 %v3038
    %3558 = vmatprep.subr.bf16.mxu0 %v3035
    %3559 = vmatpush1.bf16.msra.mxu0 %v3034
    %3560 = vmatprep.subr.bf16.mxu0 %v3031
    %3561 = vmatpush1.bf16.msra.mxu0 %v3030
    %3562 = vmatprep.subr.bf16.mxu0 %v3027
    %3563 = vmatpush1.bf16.msra.mxu0 %v3026
    %3564 = vmatprep.subr.bf16.mxu0 %v3023
    %3565 = vmatpush1.bf16.msra.mxu0 %v3022
    %3566 = vmatprep.subr.bf16.mxu0 %v3019
    %3567 = vmatpush1.bf16.msra.mxu0 %v3018
    %3568 = vmatprep.subr.bf16.mxu0 %v3079
    %3569 = vmatpush2.bf16.msra.mxu0 %v3078
    %3570 = vmatprep.subr.bf16.mxu0 %v3075
    %3571 = vmatpush2.bf16.msra.mxu0 %v3074
    %3572 = vmatprep.subr.bf16.mxu0 %v3071
    %3573 = vmatpush2.bf16.msra.mxu0 %v3070
    %3574 = vmatprep.subr.bf16.mxu0 %v3067
    %3575 = vmatpush2.bf16.msra.mxu0 %v3066
    %3576 = vmatprep.subr.bf16.mxu0 %v3063
    %3577 = vmatpush2.bf16.msra.mxu0 %v3062
    %3578 = vmatprep.subr.bf16.mxu0 %v3059
    %3579 = vmatpush2.bf16.msra.mxu0 %v3058
    %3580 = vmatprep.subr.bf16.mxu0 %v3055
    %3581 = vmatpush2.bf16.msra.mxu0 %v3054
    %3582 = vmatprep.subr.bf16.mxu0 %v3051
    %3583 = vmatpush2.bf16.msra.mxu0 %v3050
    %3584 = vmatprep.mubr.bf16.mxu0 %v3252
    %3585 = vmatmul.mubr.bf16.gmra.mxu0 %v3551
    %v3586 = vpop.f32.mrf.mxu0
    %v3587 = vadd.f32 %v237, %v3586
    %v3588 = vpop.f32.mrf.mxu0
    %v3589 = vadd.f32 %v241, %v3588
    %v3590 = vpop.f32.mrf.mxu0
    %v3591 = vpop.f32.mrf.mxu0
    %3592 = vdwg.mxu0
    %3593 = vmatprep.subr.bf16.mxu0 %v3049
    %3594 = vmatpush1.bf16.msra.mxu0 %v3048
    %3595 = vmatprep.subr.bf16.mxu0 %v3045
    %3596 = vmatpush1.bf16.msra.mxu0 %v3044
    %3597 = vmatprep.subr.bf16.mxu0 %v3041
    %3598 = vmatpush1.bf16.msra.mxu0 %v3040
    %3599 = vmatprep.subr.bf16.mxu0 %v3037
    %3600 = vmatpush1.bf16.msra.mxu0 %v3036
    %3601 = vmatprep.subr.bf16.mxu0 %v3033
    %3602 = vmatpush1.bf16.msra.mxu0 %v3032
    %3603 = vmatprep.subr.bf16.mxu0 %v3029
    %3604 = vmatpush1.bf16.msra.mxu0 %v3028
    %3605 = vmatprep.subr.bf16.mxu0 %v3025
    %3606 = vmatpush1.bf16.msra.mxu0 %v3024
    %3607 = vmatprep.subr.bf16.mxu0 %v3021
    %3608 = vmatpush1.bf16.msra.mxu0 %v3020
    %3609 = vmatprep.subr.bf16.mxu0 %v3081
    %3610 = vmatpush2.bf16.msra.mxu0 %v3080
    %3611 = vmatprep.subr.bf16.mxu0 %v3077
    %3612 = vmatpush2.bf16.msra.mxu0 %v3076
    %3613 = vmatprep.subr.bf16.mxu0 %v3073
    %3614 = vmatpush2.bf16.msra.mxu0 %v3072
    %3615 = vmatprep.subr.bf16.mxu0 %v3069
    %3616 = vmatpush2.bf16.msra.mxu0 %v3068
    %3617 = vmatprep.subr.bf16.mxu0 %v3065
    %3618 = vmatpush2.bf16.msra.mxu0 %v3064
    %3619 = vmatprep.subr.bf16.mxu0 %v3061
    %3620 = vmatpush2.bf16.msra.mxu0 %v3060
    %3621 = vmatprep.subr.bf16.mxu0 %v3057
    %3622 = vmatpush2.bf16.msra.mxu0 %v3056
    %3623 = vmatprep.subr.bf16.mxu0 %v3053
    %3624 = vmatpush2.bf16.msra.mxu0 %v3052
    %3625 = vmatprep.mubr.bf16.mxu0 %v3252
    %3626 = vmatmul.mubr.bf16.gmra.mxu0 %v3551
    %v3627 = vpop.f32.mrf.mxu0
    %v3628 = vadd.f32 %v245, %v3627
    %v3629 = vpop.f32.mrf.mxu0
    %v3630 = vadd.f32 %v249, %v3629
    %v3631 = vpop.f32.mrf.mxu0
    %v3632 = vpop.f32.mrf.mxu0
    %3633 = vdwg.mxu0
    %v3634 = vxor.u32 %v3587, 2147483648
    %v3635 = vxor.u32 %v3589, 2147483648
    %v3636 = vxor.u32 %v3628, 2147483648
    %v3637 = vmul.f32 %v3634, 1.442695
    %v3638 = vpow.pop %v3637
    %v3639 = vmul.f32 %v3635, 1.442695
    %v3640 = vpow.pop %v3639
    %v3641 = vmul.f32 %v3636, 1.442695
    %v3642 = vpow.pop %v3641
    %v3643 = vadd.f32 %v3638, 1.0
    %v3644 = vadd.f32 %v3640, 1.0
    %v3645 = vadd.f32 %v3642, 1.0
    %v3646 = vrcp.pop %v3643
    %v3647 = vmul.f32 1.0, %v3646
    %v3648 = vrcp.pop %v3644
    %v3649 = vmul.f32 1.0, %v3648
    %v3650 = vrcp.pop %v3645
    %v3651 = vmul.f32 1.0, %v3650
    %v3652 = vtanh.pop %v3630
    %v3653 = vmul.f32 %v3649, %v3249
    %v3654 = vmul.f32 %v3647, %v3652
    %v3655 = vadd.f32 %v3653, %v3654
    %v3656 = vtanh.pop %v3655
    %v3657 = vmul.f32 %v3651, %v3656
    %v3658 = vpack.c.bf16 %v3657, %v3657
    %3659 = vmatprep.subr.bf16.mxu0 %v3410
    %3660 = vmatpush1.bf16.msra.mxu0 %v3409
    %3661 = vmatprep.subr.bf16.mxu0 %v3406
    %3662 = vmatpush1.bf16.msra.mxu0 %v3405
    %3663 = vmatprep.subr.bf16.mxu0 %v3402
    %3664 = vmatpush1.bf16.msra.mxu0 %v3401
    %3665 = vmatprep.subr.bf16.mxu0 %v3398
    %3666 = vmatpush1.bf16.msra.mxu0 %v3397
    %3667 = vmatprep.subr.bf16.mxu0 %v3394
    %3668 = vmatpush1.bf16.msra.mxu0 %v3393
    %3669 = vmatprep.subr.bf16.mxu0 %v3390
    %3670 = vmatpush1.bf16.msra.mxu0 %v3389
    %3671 = vmatprep.subr.bf16.mxu0 %v3386
    %3672 = vmatpush1.bf16.msra.mxu0 %v3385
    %3673 = vmatprep.subr.bf16.mxu0 %v3382
    %3674 = vmatpush1.bf16.msra.mxu0 %v3381
    %3675 = vmatprep.subr.bf16.mxu0 %v2619
    %3676 = vmatpush2.bf16.msra.mxu0 %v2618
    %3677 = vmatprep.subr.bf16.mxu0 %v2615
    %3678 = vmatpush2.bf16.msra.mxu0 %v2614
    %3679 = vmatprep.subr.bf16.mxu0 %v2611
    %3680 = vmatpush2.bf16.msra.mxu0 %v2610
    %3681 = vmatprep.subr.bf16.mxu0 %v2607
    %3682 = vmatpush2.bf16.msra.mxu0 %v2606
    %3683 = vmatprep.subr.bf16.mxu0 %v2603
    %3684 = vmatpush2.bf16.msra.mxu0 %v2602
    %3685 = vmatprep.subr.bf16.mxu0 %v2599
    %3686 = vmatpush2.bf16.msra.mxu0 %v2598
    %3687 = vmatprep.subr.bf16.mxu0 %v2595
    %3688 = vmatpush2.bf16.msra.mxu0 %v2594
    %3689 = vmatprep.subr.bf16.mxu0 %v2591
    %3690 = vmatpush2.bf16.msra.mxu0 %v2590
    %3691 = vmatprep.mubr.bf16.mxu0 %v3551
    %3692 = vmatmul.mubr.bf16.gmra.mxu0 %v3658
    %v3693 = vpop.f32.mrf.mxu0
    %v3694 = vadd.f32 %v215, %v3693
    %v3695 = vpop.f32.mrf.mxu0
    %v3696 = vadd.f32 %v219, %v3695
    %v3697 = vpop.f32.mrf.mxu0
    %v3698 = vpop.f32.mrf.mxu0
    %3699 = vdwg.mxu0
    %3700 = vmatprep.subr.bf16.mxu0 %v3412
    %3701 = vmatpush1.bf16.msra.mxu0 %v3411
    %3702 = vmatprep.subr.bf16.mxu0 %v3408
    %3703 = vmatpush1.bf16.msra.mxu0 %v3407
    %3704 = vmatprep.subr.bf16.mxu0 %v3404
    %3705 = vmatpush1.bf16.msra.mxu0 %v3403
    %3706 = vmatprep.subr.bf16.mxu0 %v3400
    %3707 = vmatpush1.bf16.msra.mxu0 %v3399
    %3708 = vmatprep.subr.bf16.mxu0 %v3396
    %3709 = vmatpush1.bf16.msra.mxu0 %v3395
    %3710 = vmatprep.subr.bf16.mxu0 %v3392
    %3711 = vmatpush1.bf16.msra.mxu0 %v3391
    %3712 = vmatprep.subr.bf16.mxu0 %v3388
    %3713 = vmatpush1.bf16.msra.mxu0 %v3387
    %3714 = vmatprep.subr.bf16.mxu0 %v3384
    %3715 = vmatpush1.bf16.msra.mxu0 %v3383
    %3716 = vmatprep.subr.bf16.mxu0 %v2621
    %3717 = vmatpush2.bf16.msra.mxu0 %v2620
    %3718 = vmatprep.subr.bf16.mxu0 %v2617
    %3719 = vmatpush2.bf16.msra.mxu0 %v2616
    %3720 = vmatprep.subr.bf16.mxu0 %v2613
    %3721 = vmatpush2.bf16.msra.mxu0 %v2612
    %3722 = vmatprep.subr.bf16.mxu0 %v2609
    %3723 = vmatpush2.bf16.msra.mxu0 %v2608
    %3724 = vmatprep.subr.bf16.mxu0 %v2605
    %3725 = vmatpush2.bf16.msra.mxu0 %v2604
    %3726 = vmatprep.subr.bf16.mxu0 %v2601
    %3727 = vmatpush2.bf16.msra.mxu0 %v2600
    %3728 = vmatprep.subr.bf16.mxu0 %v2597
    %3729 = vmatpush2.bf16.msra.mxu0 %v2596
    %3730 = vmatprep.subr.bf16.mxu0 %v2593
    %3731 = vmatpush2.bf16.msra.mxu0 %v2592
    %3732 = vmatprep.mubr.bf16.mxu0 %v3551
    %3733 = vmatmul.mubr.bf16.gmra.mxu0 %v3658
    %v3734 = vpop.f32.mrf.mxu0
    %v3735 = vadd.f32 %v223, %v3734
    %v3736 = vpop.f32.mrf.mxu0
    %v3737 = vadd.f32 %v227, %v3736
    %v3738 = vpop.f32.mrf.mxu0
    %v3739 = vpop.f32.mrf.mxu0
    %3740 = vdwg.mxu0
    %v3741 = vxor.u32 %v3694, 2147483648
    %v3742 = vxor.u32 %v3696, 2147483648
    %v3743 = vxor.u32 %v3735, 2147483648
    %v3744 = vmul.f32 %v3741, 1.442695
    %v3745 = vpow.pop %v3744
    %v3746 = vmul.f32 %v3742, 1.442695
    %v3747 = vpow.pop %v3746
    %v3748 = vmul.f32 %v3743, 1.442695
    %v3749 = vpow.pop %v3748
    %v3750 = vadd.f32 %v3745, 1.0
    %v3751 = vadd.f32 %v3747, 1.0
    %v3752 = vadd.f32 %v3749, 1.0
    %v3753 = vrcp.pop %v3750
    %v3754 = vmul.f32 1.0, %v3753
    %v3755 = vrcp.pop %v3751
    %v3756 = vmul.f32 1.0, %v3755
    %v3757 = vrcp.pop %v3752
    %v3758 = vmul.f32 1.0, %v3757
    %v3759 = vtanh.pop %v3737
    %v3760 = vmul.f32 %v3756, %v3548
    %v3761 = vmul.f32 %v3754, %v3759
    %v3762 = vadd.f32 %v3760, %v3761
    %v3763 = vtanh.pop %v3762
    %v3764 = vmul.f32 %v3758, %v3763
    %v3765 = vpack.c.bf16 %v3764, %v3764
    %3766 = vmatprep.subr.bf16.mxu0 %v3047
    %3767 = vmatpush1.bf16.msra.mxu0 %v3046
    %3768 = vmatprep.subr.bf16.mxu0 %v3043
    %3769 = vmatpush1.bf16.msra.mxu0 %v3042
    %3770 = vmatprep.subr.bf16.mxu0 %v3039
    %3771 = vmatpush1.bf16.msra.mxu0 %v3038
    %3772 = vmatprep.subr.bf16.mxu0 %v3035
    %3773 = vmatpush1.bf16.msra.mxu0 %v3034
    %3774 = vmatprep.subr.bf16.mxu0 %v3031
    %3775 = vmatpush1.bf16.msra.mxu0 %v3030
    %3776 = vmatprep.subr.bf16.mxu0 %v3027
    %3777 = vmatpush1.bf16.msra.mxu0 %v3026
    %3778 = vmatprep.subr.bf16.mxu0 %v3023
    %3779 = vmatpush1.bf16.msra.mxu0 %v3022
    %3780 = vmatprep.subr.bf16.mxu0 %v3019
    %3781 = vmatpush1.bf16.msra.mxu0 %v3018
    %3782 = vmatprep.subr.bf16.mxu0 %v3079
    %3783 = vmatpush2.bf16.msra.mxu0 %v3078
    %3784 = vmatprep.subr.bf16.mxu0 %v3075
    %3785 = vmatpush2.bf16.msra.mxu0 %v3074
    %3786 = vmatprep.subr.bf16.mxu0 %v3071
    %3787 = vmatpush2.bf16.msra.mxu0 %v3070
    %3788 = vmatprep.subr.bf16.mxu0 %v3067
    %3789 = vmatpush2.bf16.msra.mxu0 %v3066
    %3790 = vmatprep.subr.bf16.mxu0 %v3063
    %3791 = vmatpush2.bf16.msra.mxu0 %v3062
    %3792 = vmatprep.subr.bf16.mxu0 %v3059
    %3793 = vmatpush2.bf16.msra.mxu0 %v3058
    %3794 = vmatprep.subr.bf16.mxu0 %v3055
    %3795 = vmatpush2.bf16.msra.mxu0 %v3054
    %3796 = vmatprep.subr.bf16.mxu0 %v3051
    %3797 = vmatpush2.bf16.msra.mxu0 %v3050
    %3798 = vmatprep.mubr.bf16.mxu0 %v3658
    %3799 = vmatmul.mubr.bf16.gmra.mxu0 %v3765
    %v3800 = vpop.f32.mrf.mxu0
    %v3801 = vadd.f32 %v237, %v3800
    %v3802 = vpop.f32.mrf.mxu0
    %v3803 = vadd.f32 %v241, %v3802
    %v3804 = vpop.f32.mrf.mxu0
    %v3805 = vpop.f32.mrf.mxu0
    %3806 = vdwg.mxu0
    %3807 = vmatprep.subr.bf16.mxu0 %v3049
    %3808 = vmatpush1.bf16.msra.mxu0 %v3048
    %3809 = vmatprep.subr.bf16.mxu0 %v3045
    %3810 = vmatpush1.bf16.msra.mxu0 %v3044
    %3811 = vmatprep.subr.bf16.mxu0 %v3041
    %3812 = vmatpush1.bf16.msra.mxu0 %v3040
    %3813 = vmatprep.subr.bf16.mxu0 %v3037
    %3814 = vmatpush1.bf16.msra.mxu0 %v3036
    %3815 = vmatprep.subr.bf16.mxu0 %v3033
    %3816 = vmatpush1.bf16.msra.mxu0 %v3032
    %3817 = vmatprep.subr.bf16.mxu0 %v3029
    %3818 = vmatpush1.bf16.msra.mxu0 %v3028
    %3819 = vmatprep.subr.bf16.mxu0 %v3025
    %3820 = vmatpush1.bf16.msra.mxu0 %v3024
    %3821 = vmatprep.subr.bf16.mxu0 %v3021
    %3822 = vmatpush1.bf16.msra.mxu0 %v3020
    %3823 = vmatprep.subr.bf16.mxu0 %v3081
    %3824 = vmatpush2.bf16.msra.mxu0 %v3080
    %3825 = vmatprep.subr.bf16.mxu0 %v3077
    %3826 = vmatpush2.bf16.msra.mxu0 %v3076
    %3827 = vmatprep.subr.bf16.mxu0 %v3073
    %3828 = vmatpush2.bf16.msra.mxu0 %v3072
    %3829 = vmatprep.subr.bf16.mxu0 %v3069
    %3830 = vmatpush2.bf16.msra.mxu0 %v3068
    %3831 = vmatprep.subr.bf16.mxu0 %v3065
    %3832 = vmatpush2.bf16.msra.mxu0 %v3064
    %3833 = vmatprep.subr.bf16.mxu0 %v3061
    %3834 = vmatpush2.bf16.msra.mxu0 %v3060
    %3835 = vmatprep.subr.bf16.mxu0 %v3057
    %3836 = vmatpush2.bf16.msra.mxu0 %v3056
    %3837 = vmatprep.subr.bf16.mxu0 %v3053
    %3838 = vmatpush2.bf16.msra.mxu0 %v3052
    %3839 = vmatprep.mubr.bf16.mxu0 %v3658
    %3840 = vmatmul.mubr.bf16.gmra.mxu0 %v3765
    %v3841 = vpop.f32.mrf.mxu0
    %v3842 = vadd.f32 %v245, %v3841
    %v3843 = vpop.f32.mrf.mxu0
    %v3844 = vadd.f32 %v249, %v3843
    %v3845 = vpop.f32.mrf.mxu0
    %v3846 = vpop.f32.mrf.mxu0
    %3847 = vdwg.mxu0
    %v3848 = vxor.u32 %v3801, 2147483648
    %v3849 = vxor.u32 %v3803, 2147483648
    %v3850 = vxor.u32 %v3842, 2147483648
    %v3851 = vmul.f32 %v3848, 1.442695
    %v3852 = vpow.pop %v3851
    %v3853 = vmul.f32 %v3849, 1.442695
    %v3854 = vpow.pop %v3853
    %v3855 = vmul.f32 %v3850, 1.442695
    %v3856 = vpow.pop %v3855
    %v3857 = vadd.f32 %v3852, 1.0
    %v3858 = vadd.f32 %v3854, 1.0
    %v3859 = vadd.f32 %v3856, 1.0
    %v3860 = vrcp.pop %v3857
    %v3861 = vmul.f32 1.0, %v3860
    %v3862 = vrcp.pop %v3858
    %v3863 = vmul.f32 1.0, %v3862
    %v3864 = vrcp.pop %v3859
    %v3865 = vmul.f32 1.0, %v3864
    %v3866 = vtanh.pop %v3844
    %v3867 = vmul.f32 %v3863, %v3655
    %v3868 = vmul.f32 %v3861, %v3866
    %v3869 = vadd.f32 %v3867, %v3868
    %v3870 = vtanh.pop %v3869
    %v3871 = vmul.f32 %v3865, %v3870
    %v3872 = vpack.c.bf16 %v3871, %v3871
    %3873 = vmatprep.subr.bf16.mxu0 %v3410
    %3874 = vmatpush1.bf16.msra.mxu0 %v3409
    %3875 = vmatprep.subr.bf16.mxu0 %v3406
    %3876 = vmatpush1.bf16.msra.mxu0 %v3405
    %3877 = vmatprep.subr.bf16.mxu0 %v3402
    %3878 = vmatpush1.bf16.msra.mxu0 %v3401
    %3879 = vmatprep.subr.bf16.mxu0 %v3398
    %3880 = vmatpush1.bf16.msra.mxu0 %v3397
    %3881 = vmatprep.subr.bf16.mxu0 %v3394
    %3882 = vmatpush1.bf16.msra.mxu0 %v3393
    %3883 = vmatprep.subr.bf16.mxu0 %v3390
    %3884 = vmatpush1.bf16.msra.mxu0 %v3389
    %3885 = vmatprep.subr.bf16.mxu0 %v3386
    %3886 = vmatpush1.bf16.msra.mxu0 %v3385
    %3887 = vmatprep.subr.bf16.mxu0 %v3382
    %3888 = vmatpush1.bf16.msra.mxu0 %v3381
    %3889 = vmatprep.subr.bf16.mxu0 %v2619
    %3890 = vmatpush2.bf16.msra.mxu0 %v2618
    %3891 = vmatprep.subr.bf16.mxu0 %v2615
    %3892 = vmatpush2.bf16.msra.mxu0 %v2614
    %3893 = vmatprep.subr.bf16.mxu0 %v2611
    %3894 = vmatpush2.bf16.msra.mxu0 %v2610
    %3895 = vmatprep.subr.bf16.mxu0 %v2607
    %3896 = vmatpush2.bf16.msra.mxu0 %v2606
    %3897 = vmatprep.subr.bf16.mxu0 %v2603
    %3898 = vmatpush2.bf16.msra.mxu0 %v2602
    %3899 = vmatprep.subr.bf16.mxu0 %v2599
    %3900 = vmatpush2.bf16.msra.mxu0 %v2598
    %3901 = vmatprep.subr.bf16.mxu0 %v2595
    %3902 = vmatpush2.bf16.msra.mxu0 %v2594
    %3903 = vmatprep.subr.bf16.mxu0 %v2591
    %3904 = vmatpush2.bf16.msra.mxu0 %v2590
    %3905 = vmatprep.mubr.bf16.mxu0 %v3765
    %3906 = vmatmul.mubr.bf16.gmra.mxu0 %v3872
    %v3907 = vpop.f32.mrf.mxu0
    %v3908 = vadd.f32 %v215, %v3907
    %v3909 = vpop.f32.mrf.mxu0
    %v3910 = vadd.f32 %v219, %v3909
    %v3911 = vpop.f32.mrf.mxu0
    %v3912 = vpop.f32.mrf.mxu0
    %3913 = vdwg.mxu0
    %3914 = vmatprep.subr.bf16.mxu0 %v3412
    %3915 = vmatpush1.bf16.msra.mxu0 %v3411
    %3916 = vmatprep.subr.bf16.mxu0 %v3408
    %3917 = vmatpush1.bf16.msra.mxu0 %v3407
    %3918 = vmatprep.subr.bf16.mxu0 %v3404
    %3919 = vmatpush1.bf16.msra.mxu0 %v3403
    %3920 = vmatprep.subr.bf16.mxu0 %v3400
    %3921 = vmatpush1.bf16.msra.mxu0 %v3399
    %3922 = vmatprep.subr.bf16.mxu0 %v3396
    %3923 = vmatpush1.bf16.msra.mxu0 %v3395
    %3924 = vmatprep.subr.bf16.mxu0 %v3392
    %3925 = vmatpush1.bf16.msra.mxu0 %v3391
    %3926 = vmatprep.subr.bf16.mxu0 %v3388
    %3927 = vmatpush1.bf16.msra.mxu0 %v3387
    %3928 = vmatprep.subr.bf16.mxu0 %v3384
    %3929 = vmatpush1.bf16.msra.mxu0 %v3383
    %3930 = vmatprep.subr.bf16.mxu0 %v2621
    %3931 = vmatpush2.bf16.msra.mxu0 %v2620
    %3932 = vmatprep.subr.bf16.mxu0 %v2617
    %3933 = vmatpush2.bf16.msra.mxu0 %v2616
    %3934 = vmatprep.subr.bf16.mxu0 %v2613
    %3935 = vmatpush2.bf16.msra.mxu0 %v2612
    %3936 = vmatprep.subr.bf16.mxu0 %v2609
    %3937 = vmatpush2.bf16.msra.mxu0 %v2608
    %3938 = vmatprep.subr.bf16.mxu0 %v2605
    %3939 = vmatpush2.bf16.msra.mxu0 %v2604
    %3940 = vmatprep.subr.bf16.mxu0 %v2601
    %3941 = vmatpush2.bf16.msra.mxu0 %v2600
    %3942 = vmatprep.subr.bf16.mxu0 %v2597
    %3943 = vmatpush2.bf16.msra.mxu0 %v2596
    %3944 = vmatprep.subr.bf16.mxu0 %v2593
    %3945 = vmatpush2.bf16.msra.mxu0 %v2592
    %3946 = vmatprep.mubr.bf16.mxu0 %v3765
    %3947 = vmatmul.mubr.bf16.gmra.mxu0 %v3872
    %v3948 = vpop.f32.mrf.mxu0
    %v3949 = vadd.f32 %v223, %v3948
    %v3950 = vpop.f32.mrf.mxu0
    %v3951 = vadd.f32 %v227, %v3950
    %v3952 = vpop.f32.mrf.mxu0
    %v3953 = vpop.f32.mrf.mxu0
    %3954 = vdwg.mxu0
    %v3955 = vxor.u32 %v3908, 2147483648
    %v3956 = vxor.u32 %v3910, 2147483648
    %v3957 = vxor.u32 %v3949, 2147483648
    %v3958 = vmul.f32 %v3955, 1.442695
    %v3959 = vpow.pop %v3958
    %v3960 = vmul.f32 %v3956, 1.442695
    %v3961 = vpow.pop %v3960
    %v3962 = vmul.f32 %v3957, 1.442695
    %v3963 = vpow.pop %v3962
    %v3964 = vadd.f32 %v3959, 1.0
    %v3965 = vadd.f32 %v3961, 1.0
    %v3966 = vadd.f32 %v3963, 1.0
    %v3967 = vrcp.pop %v3964
    %v3968 = vmul.f32 1.0, %v3967
    %v3969 = vrcp.pop %v3965
    %v3970 = vmul.f32 1.0, %v3969
    %v3971 = vrcp.pop %v3966
    %v3972 = vmul.f32 1.0, %v3971
    %v3973 = vtanh.pop %v3951
    %v3974 = vmul.f32 %v3970, %v3762
    %v3975 = vmul.f32 %v3968, %v3973
    %v3976 = vadd.f32 %v3974, %v3975
    %v3977 = vtanh.pop %v3976
    %v3978 = vmul.f32 %v3972, %v3977
    %v3979 = vpack.c.bf16 %v3978, %v3978
    %3980 = vmatprep.subr.bf16.mxu0 %v3047
    %3981 = vmatpush1.bf16.msra.mxu0 %v3046
    %3982 = vmatprep.subr.bf16.mxu0 %v3043
    %3983 = vmatpush1.bf16.msra.mxu0 %v3042
    %3984 = vmatprep.subr.bf16.mxu0 %v3039
    %3985 = vmatpush1.bf16.msra.mxu0 %v3038
    %3986 = vmatprep.subr.bf16.mxu0 %v3035
    %3987 = vmatpush1.bf16.msra.mxu0 %v3034
    %3988 = vmatprep.subr.bf16.mxu0 %v3031
    %3989 = vmatpush1.bf16.msra.mxu0 %v3030
    %3990 = vmatprep.subr.bf16.mxu0 %v3027
    %3991 = vmatpush1.bf16.msra.mxu0 %v3026
    %3992 = vmatprep.subr.bf16.mxu0 %v3023
    %3993 = vmatpush1.bf16.msra.mxu0 %v3022
    %3994 = vmatprep.subr.bf16.mxu0 %v3019
    %3995 = vmatpush1.bf16.msra.mxu0 %v3018
    %3996 = vmatprep.subr.bf16.mxu0 %v3079
    %3997 = vmatpush2.bf16.msra.mxu0 %v3078
    %3998 = vmatprep.subr.bf16.mxu0 %v3075
    %3999 = vmatpush2.bf16.msra.mxu0 %v3074
    %4000 = vmatprep.subr.bf16.mxu0 %v3071
    %4001 = vmatpush2.bf16.msra.mxu0 %v3070
    %4002 = vmatprep.subr.bf16.mxu0 %v3067
    %4003 = vmatpush2.bf16.msra.mxu0 %v3066
    %4004 = vmatprep.subr.bf16.mxu0 %v3063
    %4005 = vmatpush2.bf16.msra.mxu0 %v3062
    %4006 = vmatprep.subr.bf16.mxu0 %v3059
    %4007 = vmatpush2.bf16.msra.mxu0 %v3058
    %4008 = vmatprep.subr.bf16.mxu0 %v3055
    %4009 = vmatpush2.bf16.msra.mxu0 %v3054
    %4010 = vmatprep.subr.bf16.mxu0 %v3051
    %4011 = vmatpush2.bf16.msra.mxu0 %v3050
    %4012 = vmatprep.mubr.bf16.mxu0 %v3872
    %4013 = vmatmul.mubr.bf16.gmra.mxu0 %v3979
    %v4014 = vpop.f32.mrf.mxu0
    %v4015 = vadd.f32 %v237, %v4014
    %v4016 = vpop.f32.mrf.mxu0
    %v4017 = vadd.f32 %v241, %v4016
    %v4018 = vpop.f32.mrf.mxu0
    %v4019 = vpop.f32.mrf.mxu0
    %4020 = vdwg.mxu0
    %4021 = vmatprep.subr.bf16.mxu0 %v3049
    %4022 = vmatpush1.bf16.msra.mxu0 %v3048
    %4023 = vmatprep.subr.bf16.mxu0 %v3045
    %4024 = vmatpush1.bf16.msra.mxu0 %v3044
    %4025 = vmatprep.subr.bf16.mxu0 %v3041
    %4026 = vmatpush1.bf16.msra.mxu0 %v3040
    %4027 = vmatprep.subr.bf16.mxu0 %v3037
    %4028 = vmatpush1.bf16.msra.mxu0 %v3036
    %4029 = vmatprep.subr.bf16.mxu0 %v3033
    %4030 = vmatpush1.bf16.msra.mxu0 %v3032
    %4031 = vmatprep.subr.bf16.mxu0 %v3029
    %4032 = vmatpush1.bf16.msra.mxu0 %v3028
    %4033 = vmatprep.subr.bf16.mxu0 %v3025
    %4034 = vmatpush1.bf16.msra.mxu0 %v3024
    %4035 = vmatprep.subr.bf16.mxu0 %v3021
    %4036 = vmatpush1.bf16.msra.mxu0 %v3020
    %4037 = vmatprep.subr.bf16.mxu0 %v3081
    %4038 = vmatpush2.bf16.msra.mxu0 %v3080
    %4039 = vmatprep.subr.bf16.mxu0 %v3077
    %4040 = vmatpush2.bf16.msra.mxu0 %v3076
    %4041 = vmatprep.subr.bf16.mxu0 %v3073
    %4042 = vmatpush2.bf16.msra.mxu0 %v3072
    %4043 = vmatprep.subr.bf16.mxu0 %v3069
    %4044 = vmatpush2.bf16.msra.mxu0 %v3068
    %4045 = vmatprep.subr.bf16.mxu0 %v3065
    %4046 = vmatpush2.bf16.msra.mxu0 %v3064
    %4047 = vmatprep.subr.bf16.mxu0 %v3061
    %4048 = vmatpush2.bf16.msra.mxu0 %v3060
    %4049 = vmatprep.subr.bf16.mxu0 %v3057
    %4050 = vmatpush2.bf16.msra.mxu0 %v3056
    %4051 = vmatprep.subr.bf16.mxu0 %v3053
    %4052 = vmatpush2.bf16.msra.mxu0 %v3052
    %4053 = vmatprep.mubr.bf16.mxu0 %v3872
    %4054 = vmatmul.mubr.bf16.gmra.mxu0 %v3979
    %v4055 = vpop.f32.mrf.mxu0
    %v4056 = vadd.f32 %v245, %v4055
    %v4057 = vpop.f32.mrf.mxu0
    %v4058 = vadd.f32 %v249, %v4057
    %v4059 = vpop.f32.mrf.mxu0
    %v4060 = vpop.f32.mrf.mxu0
    %4061 = vdwg.mxu0
    %v4062 = vxor.u32 %v4015, 2147483648
    %v4063 = vxor.u32 %v4017, 2147483648
    %v4064 = vxor.u32 %v4056, 2147483648
    %v4065 = vmul.f32 %v4062, 1.442695
    %v4066 = vpow.pop %v4065
    %v4067 = vmul.f32 %v4063, 1.442695
    %v4068 = vpow.pop %v4067
    %v4069 = vmul.f32 %v4064, 1.442695
    %v4070 = vpow.pop %v4069
    %v4071 = vadd.f32 %v4066, 1.0
    %v4072 = vadd.f32 %v4068, 1.0
    %v4073 = vadd.f32 %v4070, 1.0
    %v4074 = vrcp.pop %v4071
    %v4075 = vmul.f32 1.0, %v4074
    %v4076 = vrcp.pop %v4072
    %v4077 = vmul.f32 1.0, %v4076
    %v4078 = vrcp.pop %v4073
    %v4079 = vmul.f32 1.0, %v4078
    %v4080 = vtanh.pop %v4058
    %v4081 = vmul.f32 %v4077, %v3869
    %v4082 = vmul.f32 %v4075, %v4080
    %v4083 = vadd.f32 %v4081, %v4082
    %v4084 = vtanh.pop %v4083
    %v4085 = vmul.f32 %v4079, %v4084
    %v4086 = vpack.c.bf16 %v4085, %v4085
    %4087 = vmatprep.subr.bf16.mxu0 %v3410
    %4088 = vmatpush1.bf16.msra.mxu0 %v3409
    %4089 = vmatprep.subr.bf16.mxu0 %v3406
    %4090 = vmatpush1.bf16.msra.mxu0 %v3405
    %4091 = vmatprep.subr.bf16.mxu0 %v3402
    %4092 = vmatpush1.bf16.msra.mxu0 %v3401
    %4093 = vmatprep.subr.bf16.mxu0 %v3398
    %4094 = vmatpush1.bf16.msra.mxu0 %v3397
    %4095 = vmatprep.subr.bf16.mxu0 %v3394
    %4096 = vmatpush1.bf16.msra.mxu0 %v3393
    %4097 = vmatprep.subr.bf16.mxu0 %v3390
    %4098 = vmatpush1.bf16.msra.mxu0 %v3389
    %4099 = vmatprep.subr.bf16.mxu0 %v3386
    %4100 = vmatpush1.bf16.msra.mxu0 %v3385
    %4101 = vmatprep.subr.bf16.mxu0 %v3382
    %4102 = vmatpush1.bf16.msra.mxu0 %v3381
    %4103 = vmatprep.subr.bf16.mxu0 %v2619
    %4104 = vmatpush2.bf16.msra.mxu0 %v2618
    %4105 = vmatprep.subr.bf16.mxu0 %v2615
    %4106 = vmatpush2.bf16.msra.mxu0 %v2614
    %4107 = vmatprep.subr.bf16.mxu0 %v2611
    %4108 = vmatpush2.bf16.msra.mxu0 %v2610
    %4109 = vmatprep.subr.bf16.mxu0 %v2607
    %4110 = vmatpush2.bf16.msra.mxu0 %v2606
    %4111 = vmatprep.subr.bf16.mxu0 %v2603
    %4112 = vmatpush2.bf16.msra.mxu0 %v2602
    %4113 = vmatprep.subr.bf16.mxu0 %v2599
    %4114 = vmatpush2.bf16.msra.mxu0 %v2598
    %4115 = vmatprep.subr.bf16.mxu0 %v2595
    %4116 = vmatpush2.bf16.msra.mxu0 %v2594
    %4117 = vmatprep.subr.bf16.mxu0 %v2591
    %4118 = vmatpush2.bf16.msra.mxu0 %v2590
    %4119 = vmatprep.mubr.bf16.mxu0 %v3979
    %4120 = vmatmul.mubr.bf16.gmra.mxu0 %v4086
    %v4121 = vpop.f32.mrf.mxu0
    %v4122 = vadd.f32 %v215, %v4121
    %v4123 = vpop.f32.mrf.mxu0
    %v4124 = vadd.f32 %v219, %v4123
    %v4125 = vpop.f32.mrf.mxu0
    %v4126 = vpop.f32.mrf.mxu0
    %4127 = vdwg.mxu0
    %4128 = vmatprep.subr.bf16.mxu0 %v3412
    %4129 = vmatpush1.bf16.msra.mxu0 %v3411
    %4130 = vmatprep.subr.bf16.mxu0 %v3408
    %4131 = vmatpush1.bf16.msra.mxu0 %v3407
    %4132 = vmatprep.subr.bf16.mxu0 %v3404
    %4133 = vmatpush1.bf16.msra.mxu0 %v3403
    %4134 = vmatprep.subr.bf16.mxu0 %v3400
    %4135 = vmatpush1.bf16.msra.mxu0 %v3399
    %4136 = vmatprep.subr.bf16.mxu0 %v3396
    %4137 = vmatpush1.bf16.msra.mxu0 %v3395
    %4138 = vmatprep.subr.bf16.mxu0 %v3392
    %4139 = vmatpush1.bf16.msra.mxu0 %v3391
    %4140 = vmatprep.subr.bf16.mxu0 %v3388
    %4141 = vmatpush1.bf16.msra.mxu0 %v3387
    %4142 = vmatprep.subr.bf16.mxu0 %v3384
    %4143 = vmatpush1.bf16.msra.mxu0 %v3383
    %4144 = vmatprep.subr.bf16.mxu0 %v2621
    %4145 = vmatpush2.bf16.msra.mxu0 %v2620
    %4146 = vmatprep.subr.bf16.mxu0 %v2617
    %4147 = vmatpush2.bf16.msra.mxu0 %v2616
    %4148 = vmatprep.subr.bf16.mxu0 %v2613
    %4149 = vmatpush2.bf16.msra.mxu0 %v2612
    %4150 = vmatprep.subr.bf16.mxu0 %v2609
    %4151 = vmatpush2.bf16.msra.mxu0 %v2608
    %4152 = vmatprep.subr.bf16.mxu0 %v2605
    %4153 = vmatpush2.bf16.msra.mxu0 %v2604
    %4154 = vmatprep.subr.bf16.mxu0 %v2601
    %4155 = vmatpush2.bf16.msra.mxu0 %v2600
    %4156 = vmatprep.subr.bf16.mxu0 %v2597
    %4157 = vmatpush2.bf16.msra.mxu0 %v2596
    %4158 = vmatprep.subr.bf16.mxu0 %v2593
    %4159 = vmatpush2.bf16.msra.mxu0 %v2592
    %4160 = vmatprep.mubr.bf16.mxu0 %v3979
    %4161 = vmatmul.mubr.bf16.gmra.mxu0 %v4086
    %v4162 = vpop.f32.mrf.mxu0
    %v4163 = vadd.f32 %v223, %v4162
    %v4164 = vpop.f32.mrf.mxu0
    %v4165 = vadd.f32 %v227, %v4164
    %v4166 = vpop.f32.mrf.mxu0
    %v4167 = vpop.f32.mrf.mxu0
    %4168 = vdwg.mxu0
    %v4169 = vxor.u32 %v4122, 2147483648
    %v4170 = vxor.u32 %v4124, 2147483648
    %v4171 = vxor.u32 %v4163, 2147483648
    %v4172 = vmul.f32 %v4169, 1.442695
    %v4173 = vpow.pop %v4172
    %v4174 = vmul.f32 %v4170, 1.442695
    %v4175 = vpow.pop %v4174
    %v4176 = vmul.f32 %v4171, 1.442695
    %v4177 = vpow.pop %v4176
    %v4178 = vadd.f32 %v4173, 1.0
    %v4179 = vadd.f32 %v4175, 1.0
    %v4180 = vadd.f32 %v4177, 1.0
    %v4181 = vrcp.pop %v4178
    %v4182 = vmul.f32 1.0, %v4181
    %v4183 = vrcp.pop %v4179
    %v4184 = vmul.f32 1.0, %v4183
    %v4185 = vrcp.pop %v4180
    %v4186 = vmul.f32 1.0, %v4185
    %v4187 = vtanh.pop %v4165
    %v4188 = vmul.f32 %v4184, %v3976
    %v4189 = vmul.f32 %v4182, %v4187
    %v4190 = vadd.f32 %v4188, %v4189
    %v4191 = vtanh.pop %v4190
    %v4192 = vmul.f32 %v4186, %v4191
    %v4193 = vpack.c.bf16 %v4192, %v4192
    %4194 = vmatprep.subr.bf16.mxu0 %v3047
    %4195 = vmatpush1.bf16.msra.mxu0 %v3046
    %4196 = vmatprep.subr.bf16.mxu0 %v3043
    %4197 = vmatpush1.bf16.msra.mxu0 %v3042
    %4198 = vmatprep.subr.bf16.mxu0 %v3039
    %4199 = vmatpush1.bf16.msra.mxu0 %v3038
    %4200 = vmatprep.subr.bf16.mxu0 %v3035
    %4201 = vmatpush1.bf16.msra.mxu0 %v3034
    %4202 = vmatprep.subr.bf16.mxu0 %v3031
    %4203 = vmatpush1.bf16.msra.mxu0 %v3030
    %4204 = vmatprep.subr.bf16.mxu0 %v3027
    %4205 = vmatpush1.bf16.msra.mxu0 %v3026
    %4206 = vmatprep.subr.bf16.mxu0 %v3023
    %4207 = vmatpush1.bf16.msra.mxu0 %v3022
    %4208 = vmatprep.subr.bf16.mxu0 %v3019
    %4209 = vmatpush1.bf16.msra.mxu0 %v3018
    %4210 = vmatprep.subr.bf16.mxu0 %v3079
    %4211 = vmatpush2.bf16.msra.mxu0 %v3078
    %4212 = vmatprep.subr.bf16.mxu0 %v3075
    %4213 = vmatpush2.bf16.msra.mxu0 %v3074
    %4214 = vmatprep.subr.bf16.mxu0 %v3071
    %4215 = vmatpush2.bf16.msra.mxu0 %v3070
    %4216 = vmatprep.subr.bf16.mxu0 %v3067
    %4217 = vmatpush2.bf16.msra.mxu0 %v3066
    %4218 = vmatprep.subr.bf16.mxu0 %v3063
    %4219 = vmatpush2.bf16.msra.mxu0 %v3062
    %4220 = vmatprep.subr.bf16.mxu0 %v3059
    %4221 = vmatpush2.bf16.msra.mxu0 %v3058
    %4222 = vmatprep.subr.bf16.mxu0 %v3055
    %4223 = vmatpush2.bf16.msra.mxu0 %v3054
    %4224 = vmatprep.subr.bf16.mxu0 %v3051
    %4225 = vmatpush2.bf16.msra.mxu0 %v3050
    %4226 = vmatprep.mubr.bf16.mxu0 %v4086
    %4227 = vmatmul.mubr.bf16.gmra.mxu0 %v4193
    %v4228 = vpop.f32.mrf.mxu0
    %v4229 = vadd.f32 %v237, %v4228
    %v4230 = vpop.f32.mrf.mxu0
    %v4231 = vadd.f32 %v241, %v4230
    %v4232 = vpop.f32.mrf.mxu0
    %v4233 = vpop.f32.mrf.mxu0
    %4234 = vdwg.mxu0
    %4235 = vmatprep.subr.bf16.mxu0 %v3049
    %4236 = vmatpush1.bf16.msra.mxu0 %v3048
    %4237 = vmatprep.subr.bf16.mxu0 %v3045
    %4238 = vmatpush1.bf16.msra.mxu0 %v3044
    %4239 = vmatprep.subr.bf16.mxu0 %v3041
    %4240 = vmatpush1.bf16.msra.mxu0 %v3040
    %4241 = vmatprep.subr.bf16.mxu0 %v3037
    %4242 = vmatpush1.bf16.msra.mxu0 %v3036
    %4243 = vmatprep.subr.bf16.mxu0 %v3033
    %4244 = vmatpush1.bf16.msra.mxu0 %v3032
    %4245 = vmatprep.subr.bf16.mxu0 %v3029
    %4246 = vmatpush1.bf16.msra.mxu0 %v3028
    %4247 = vmatprep.subr.bf16.mxu0 %v3025
    %4248 = vmatpush1.bf16.msra.mxu0 %v3024
    %4249 = vmatprep.subr.bf16.mxu0 %v3021
    %4250 = vmatpush1.bf16.msra.mxu0 %v3020
    %4251 = vmatprep.subr.bf16.mxu0 %v3081
    %4252 = vmatpush2.bf16.msra.mxu0 %v3080
    %4253 = vmatprep.subr.bf16.mxu0 %v3077
    %4254 = vmatpush2.bf16.msra.mxu0 %v3076
    %4255 = vmatprep.subr.bf16.mxu0 %v3073
    %4256 = vmatpush2.bf16.msra.mxu0 %v3072
    %4257 = vmatprep.subr.bf16.mxu0 %v3069
    %4258 = vmatpush2.bf16.msra.mxu0 %v3068
    %4259 = vmatprep.subr.bf16.mxu0 %v3065
    %4260 = vmatpush2.bf16.msra.mxu0 %v3064
    %4261 = vmatprep.subr.bf16.mxu0 %v3061
    %4262 = vmatpush2.bf16.msra.mxu0 %v3060
    %4263 = vmatprep.subr.bf16.mxu0 %v3057
    %4264 = vmatpush2.bf16.msra.mxu0 %v3056
    %4265 = vmatprep.subr.bf16.mxu0 %v3053
    %4266 = vmatpush2.bf16.msra.mxu0 %v3052
    %4267 = vmatprep.mubr.bf16.mxu0 %v4086
    %4268 = vmatmul.mubr.bf16.gmra.mxu0 %v4193
    %v4269 = vpop.f32.mrf.mxu0
    %v4270 = vadd.f32 %v245, %v4269
    %v4271 = vpop.f32.mrf.mxu0
    %v4272 = vadd.f32 %v249, %v4271
    %v4273 = vpop.f32.mrf.mxu0
    %v4274 = vpop.f32.mrf.mxu0
    %4275 = vdwg.mxu0
    %v4276 = vxor.u32 %v4229, 2147483648
    %v4277 = vxor.u32 %v4231, 2147483648
    %v4278 = vxor.u32 %v4270, 2147483648
    %v4279 = vmul.f32 %v4276, 1.442695
    %v4280 = vpow.pop %v4279
    %v4281 = vmul.f32 %v4277, 1.442695
    %v4282 = vpow.pop %v4281
    %v4283 = vmul.f32 %v4278, 1.442695
    %v4284 = vpow.pop %v4283
    %v4285 = vadd.f32 %v4280, 1.0
    %v4286 = vadd.f32 %v4282, 1.0
    %v4287 = vadd.f32 %v4284, 1.0
    %v4288 = vrcp.pop %v4285
    %v4289 = vmul.f32 1.0, %v4288
    %v4290 = vrcp.pop %v4286
    %v4291 = vmul.f32 1.0, %v4290
    %v4292 = vrcp.pop %v4287
    %v4293 = vmul.f32 1.0, %v4292
    %v4294 = vtanh.pop %v4272
    %v4295 = vmul.f32 %v4291, %v4083
    %v4296 = vmul.f32 %v4289, %v4294
    %v4297 = vadd.f32 %v4295, %v4296
    %v4298 = vtanh.pop %v4297
    %v4299 = vmul.f32 %v4293, %v4298
    %v4300 = vpack.c.bf16 %v4299, %v4299
    %4301 = vmatprep.subr.bf16.mxu0 %v3410
    %4302 = vmatpush1.bf16.msra.mxu0 %v3409
    %4303 = vmatprep.subr.bf16.mxu0 %v3406
    %4304 = vmatpush1.bf16.msra.mxu0 %v3405
    %4305 = vmatprep.subr.bf16.mxu0 %v3402
    %4306 = vmatpush1.bf16.msra.mxu0 %v3401
    %4307 = vmatprep.subr.bf16.mxu0 %v3398
    %4308 = vmatpush1.bf16.msra.mxu0 %v3397
    %4309 = vmatprep.subr.bf16.mxu0 %v3394
    %4310 = vmatpush1.bf16.msra.mxu0 %v3393
    %4311 = vmatprep.subr.bf16.mxu0 %v3390
    %4312 = vmatpush1.bf16.msra.mxu0 %v3389
    %4313 = vmatprep.subr.bf16.mxu0 %v3386
    %4314 = vmatpush1.bf16.msra.mxu0 %v3385
    %4315 = vmatprep.subr.bf16.mxu0 %v3382
    %4316 = vmatpush1.bf16.msra.mxu0 %v3381
    %4317 = vmatprep.subr.bf16.mxu0 %v2619
    %4318 = vmatpush2.bf16.msra.mxu0 %v2618
    %4319 = vmatprep.subr.bf16.mxu0 %v2615
    %4320 = vmatpush2.bf16.msra.mxu0 %v2614
    %4321 = vmatprep.subr.bf16.mxu0 %v2611
    %4322 = vmatpush2.bf16.msra.mxu0 %v2610
    %4323 = vmatprep.subr.bf16.mxu0 %v2607
    %4324 = vmatpush2.bf16.msra.mxu0 %v2606
    %4325 = vmatprep.subr.bf16.mxu0 %v2603
    %4326 = vmatpush2.bf16.msra.mxu0 %v2602
    %4327 = vmatprep.subr.bf16.mxu0 %v2599
    %4328 = vmatpush2.bf16.msra.mxu0 %v2598
    %4329 = vmatprep.subr.bf16.mxu0 %v2595
    %4330 = vmatpush2.bf16.msra.mxu0 %v2594
    %4331 = vmatprep.subr.bf16.mxu0 %v2591
    %4332 = vmatpush2.bf16.msra.mxu0 %v2590
    %4333 = vmatprep.mubr.bf16.mxu0 %v4193
    %4334 = vmatmul.mubr.bf16.gmra.mxu0 %v4300
    %v4335 = vpop.f32.mrf.mxu0
    %v4336 = vadd.f32 %v215, %v4335
    %v4337 = vpop.f32.mrf.mxu0
    %v4338 = vadd.f32 %v219, %v4337
    %v4339 = vpop.f32.mrf.mxu0
    %v4340 = vpop.f32.mrf.mxu0
    %4341 = vdwg.mxu0
    %4342 = vmatprep.subr.bf16.mxu0 %v3412
    %4343 = vmatpush1.bf16.msra.mxu0 %v3411
    %4344 = vmatprep.subr.bf16.mxu0 %v3408
    %4345 = vmatpush1.bf16.msra.mxu0 %v3407
    %4346 = vmatprep.subr.bf16.mxu0 %v3404
    %4347 = vmatpush1.bf16.msra.mxu0 %v3403
    %4348 = vmatprep.subr.bf16.mxu0 %v3400
    %4349 = vmatpush1.bf16.msra.mxu0 %v3399
    %4350 = vmatprep.subr.bf16.mxu0 %v3396
    %4351 = vmatpush1.bf16.msra.mxu0 %v3395
    %4352 = vmatprep.subr.bf16.mxu0 %v3392
    %4353 = vmatpush1.bf16.msra.mxu0 %v3391
    %4354 = vmatprep.subr.bf16.mxu0 %v3388
    %4355 = vmatpush1.bf16.msra.mxu0 %v3387
    %4356 = vmatprep.subr.bf16.mxu0 %v3384
    %4357 = vmatpush1.bf16.msra.mxu0 %v3383
    %4358 = vmatprep.subr.bf16.mxu0 %v2621
    %4359 = vmatpush2.bf16.msra.mxu0 %v2620
    %4360 = vmatprep.subr.bf16.mxu0 %v2617
    %4361 = vmatpush2.bf16.msra.mxu0 %v2616
    %4362 = vmatprep.subr.bf16.mxu0 %v2613
    %4363 = vmatpush2.bf16.msra.mxu0 %v2612
    %4364 = vmatprep.subr.bf16.mxu0 %v2609
    %4365 = vmatpush2.bf16.msra.mxu0 %v2608
    %4366 = vmatprep.subr.bf16.mxu0 %v2605
    %4367 = vmatpush2.bf16.msra.mxu0 %v2604
    %4368 = vmatprep.subr.bf16.mxu0 %v2601
    %4369 = vmatpush2.bf16.msra.mxu0 %v2600
    %4370 = vmatprep.subr.bf16.mxu0 %v2597
    %4371 = vmatpush2.bf16.msra.mxu0 %v2596
    %4372 = vmatprep.subr.bf16.mxu0 %v2593
    %4373 = vmatpush2.bf16.msra.mxu0 %v2592
    %4374 = vmatprep.mubr.bf16.mxu0 %v4193
    %4375 = vmatmul.mubr.bf16.gmra.mxu0 %v4300
    %v4376 = vpop.f32.mrf.mxu0
    %v4377 = vadd.f32 %v223, %v4376
    %v4378 = vpop.f32.mrf.mxu0
    %v4379 = vadd.f32 %v227, %v4378
    %v4380 = vpop.f32.mrf.mxu0
    %v4381 = vpop.f32.mrf.mxu0
    %4382 = vdwg.mxu0
    %v4383 = vxor.u32 %v4336, 2147483648
    %v4384 = vxor.u32 %v4338, 2147483648
    %v4385 = vxor.u32 %v4377, 2147483648
    %v4386 = vmul.f32 %v4383, 1.442695
    %v4387 = vpow.pop %v4386
    %v4388 = vmul.f32 %v4384, 1.442695
    %v4389 = vpow.pop %v4388
    %v4390 = vmul.f32 %v4385, 1.442695
    %v4391 = vpow.pop %v4390
    %v4392 = vadd.f32 %v4387, 1.0
    %v4393 = vadd.f32 %v4389, 1.0
    %v4394 = vadd.f32 %v4391, 1.0
    %v4395 = vrcp.pop %v4392
    %v4396 = vmul.f32 1.0, %v4395
    %v4397 = vrcp.pop %v4393
    %v4398 = vmul.f32 1.0, %v4397
    %v4399 = vrcp.pop %v4394
    %v4400 = vmul.f32 1.0, %v4399
    %v4401 = vtanh.pop %v4379
    %v4402 = vmul.f32 %v4398, %v4190
    %v4403 = vmul.f32 %v4396, %v4401
    %v4404 = vadd.f32 %v4402, %v4403
    %v4405 = vtanh.pop %v4404
    %v4406 = vmul.f32 %v4400, %v4405
    %v4407 = vpack.c.bf16 %v4406, %v4406
    %4408 = vmatprep.subr.bf16.mxu0 %v3047
    %4409 = vmatpush1.bf16.msra.mxu0 %v3046
    %4410 = vmatprep.subr.bf16.mxu0 %v3043
    %4411 = vmatpush1.bf16.msra.mxu0 %v3042
    %4412 = vmatprep.subr.bf16.mxu0 %v3039
    %4413 = vmatpush1.bf16.msra.mxu0 %v3038
    %4414 = vmatprep.subr.bf16.mxu0 %v3035
    %4415 = vmatpush1.bf16.msra.mxu0 %v3034
    %4416 = vmatprep.subr.bf16.mxu0 %v3031
    %4417 = vmatpush1.bf16.msra.mxu0 %v3030
    %4418 = vmatprep.subr.bf16.mxu0 %v3027
    %4419 = vmatpush1.bf16.msra.mxu0 %v3026
    %4420 = vmatprep.subr.bf16.mxu0 %v3023
    %4421 = vmatpush1.bf16.msra.mxu0 %v3022
    %4422 = vmatprep.subr.bf16.mxu0 %v3019
    %4423 = vmatpush1.bf16.msra.mxu0 %v3018
    %4424 = vmatprep.subr.bf16.mxu0 %v3079
    %4425 = vmatpush2.bf16.msra.mxu0 %v3078
    %4426 = vmatprep.subr.bf16.mxu0 %v3075
    %4427 = vmatpush2.bf16.msra.mxu0 %v3074
    %4428 = vmatprep.subr.bf16.mxu0 %v3071
    %4429 = vmatpush2.bf16.msra.mxu0 %v3070
    %4430 = vmatprep.subr.bf16.mxu0 %v3067
    %4431 = vmatpush2.bf16.msra.mxu0 %v3066
    %4432 = vmatprep.subr.bf16.mxu0 %v3063
    %4433 = vmatpush2.bf16.msra.mxu0 %v3062
    %4434 = vmatprep.subr.bf16.mxu0 %v3059
    %4435 = vmatpush2.bf16.msra.mxu0 %v3058
    %4436 = vmatprep.subr.bf16.mxu0 %v3055
    %4437 = vmatpush2.bf16.msra.mxu0 %v3054
    %4438 = vmatprep.subr.bf16.mxu0 %v3051
    %4439 = vmatpush2.bf16.msra.mxu0 %v3050
    %4440 = vmatprep.mubr.bf16.mxu0 %v4300
    %4441 = vmatmul.mubr.bf16.gmra.mxu0 %v4407
    %v4442 = vpop.f32.mrf.mxu0
    %v4443 = vadd.f32 %v237, %v4442
    %v4444 = vpop.f32.mrf.mxu0
    %v4445 = vadd.f32 %v241, %v4444
    %v4446 = vpop.f32.mrf.mxu0
    %v4447 = vpop.f32.mrf.mxu0
    %4448 = vdwg.mxu0
    %4449 = vmatprep.subr.bf16.mxu0 %v3049
    %4450 = vmatpush1.bf16.msra.mxu0 %v3048
    %4451 = vmatprep.subr.bf16.mxu0 %v3045
    %4452 = vmatpush1.bf16.msra.mxu0 %v3044
    %4453 = vmatprep.subr.bf16.mxu0 %v3041
    %4454 = vmatpush1.bf16.msra.mxu0 %v3040
    %4455 = vmatprep.subr.bf16.mxu0 %v3037
    %4456 = vmatpush1.bf16.msra.mxu0 %v3036
    %4457 = vmatprep.subr.bf16.mxu0 %v3033
    %4458 = vmatpush1.bf16.msra.mxu0 %v3032
    %4459 = vmatprep.subr.bf16.mxu0 %v3029
    %4460 = vmatpush1.bf16.msra.mxu0 %v3028
    %4461 = vmatprep.subr.bf16.mxu0 %v3025
    %4462 = vmatpush1.bf16.msra.mxu0 %v3024
    %4463 = vmatprep.subr.bf16.mxu0 %v3021
    %4464 = vmatpush1.bf16.msra.mxu0 %v3020
    %4465 = vmatprep.subr.bf16.mxu0 %v3081
    %4466 = vmatpush2.bf16.msra.mxu0 %v3080
    %4467 = vmatprep.subr.bf16.mxu0 %v3077
    %4468 = vmatpush2.bf16.msra.mxu0 %v3076
    %4469 = vmatprep.subr.bf16.mxu0 %v3073
    %4470 = vmatpush2.bf16.msra.mxu0 %v3072
    %4471 = vmatprep.subr.bf16.mxu0 %v3069
    %4472 = vmatpush2.bf16.msra.mxu0 %v3068
    %4473 = vmatprep.subr.bf16.mxu0 %v3065
    %4474 = vmatpush2.bf16.msra.mxu0 %v3064
    %4475 = vmatprep.subr.bf16.mxu0 %v3061
    %4476 = vmatpush2.bf16.msra.mxu0 %v3060
    %4477 = vmatprep.subr.bf16.mxu0 %v3057
    %4478 = vmatpush2.bf16.msra.mxu0 %v3056
    %4479 = vmatprep.subr.bf16.mxu0 %v3053
    %4480 = vmatpush2.bf16.msra.mxu0 %v3052
    %4481 = vmatprep.mubr.bf16.mxu0 %v4300
    %4482 = vmatmul.mubr.bf16.gmra.mxu0 %v4407
    %v4483 = vpop.f32.mrf.mxu0
    %v4484 = vadd.f32 %v245, %v4483
    %v4485 = vpop.f32.mrf.mxu0
    %v4486 = vadd.f32 %v249, %v4485
    %v4487 = vpop.f32.mrf.mxu0
    %v4488 = vpop.f32.mrf.mxu0
    %4489 = vdwg.mxu0
    %v4490 = vxor.u32 %v4443, 2147483648
    %v4491 = vxor.u32 %v4445, 2147483648
    %v4492 = vxor.u32 %v4484, 2147483648
    %v4493 = vmul.f32 %v4490, 1.442695
    %v4494 = vpow.pop %v4493
    %v4495 = vmul.f32 %v4491, 1.442695
    %v4496 = vpow.pop %v4495
    %v4497 = vmul.f32 %v4492, 1.442695
    %v4498 = vpow.pop %v4497
    %v4499 = vadd.f32 %v4494, 1.0
    %v4500 = vadd.f32 %v4496, 1.0
    %v4501 = vadd.f32 %v4498, 1.0
    %v4502 = vrcp.pop %v4499
    %v4503 = vmul.f32 1.0, %v4502
    %v4504 = vrcp.pop %v4500
    %v4505 = vmul.f32 1.0, %v4504
    %v4506 = vrcp.pop %v4501
    %v4507 = vmul.f32 1.0, %v4506
    %v4508 = vtanh.pop %v4486
    %v4509 = vmul.f32 %v4505, %v4297
    %v4510 = vmul.f32 %v4503, %v4508
    %v4511 = vadd.f32 %v4509, %v4510
    %v4512 = vtanh.pop %v4511
    %v4513 = vmul.f32 %v4507, %v4512
    %v4514 = vpack.c.bf16 %v4299, %v4513
    %v4515 = vpack.c.bf16 %v3871, %v4085
    %v4516 = vpack.c.bf16 %v3251, %v3657
    %s4517 = smul.u32 4, 16
    %s4518 = smul.u32 %s4517, 1
    %s4519 = sshll.u32 %s4518, 4
    %4520 = dma.done %s108, %s4519
    %v4521 = vld [vmem:[#allocation4] sm:$0xf]
    %v4522 = vld [vmem:[#allocation4 + $0x4] sm:$0xf]
    %v4523 = vld [vmem:[#allocation4 + $0x8] sm:$0xf]
    %v4524 = vld [vmem:[#allocation4 + $0xc] sm:$0xf]
    %v4525 = vld [vmem:[#allocation4 + $0x10] sm:$0xf]
    %v4526 = vld [vmem:[#allocation4 + $0x14] sm:$0xf]
    %v4527 = vld [vmem:[#allocation4 + $0x18] sm:$0xf]
    %v4528 = vld [vmem:[#allocation4 + $0x1c] sm:$0xf]
    %v4529 = vld [vmem:[#allocation4 + $0x20] sm:$0xf]
    %v4530 = vld [vmem:[#allocation4 + $0x24] sm:$0xf]
    %v4531 = vld [vmem:[#allocation4 + $0x28] sm:$0xf]
    %v4532 = vld [vmem:[#allocation4 + $0x2c] sm:$0xf]
    %v4533 = vld [vmem:[#allocation4 + $0x30] sm:$0xf]
    %v4534 = vld [vmem:[#allocation4 + $0x34] sm:$0xf]
    %v4535 = vld [vmem:[#allocation4 + $0x38] sm:$0xf]
    %v4536 = vld [vmem:[#allocation4 + $0x3c] sm:$0xf]
    %v4537 = vld [vmem:[%s13] sm:$0x1]
    %v4539 = vlaneseq
    %v4540 = vshrl.u32 %v4539, 7
    %v4541 = vsub.s32 0, %v4540
    %v4542 = vrot.slane %v4537, %v4541
    %v4560 = vunpack.c.l.b16 %v4521
    %v4561 = vunpack.c.l.b16 %v4522
    %v4562 = vunpack.c.l.b16 %v4523
    %v4563 = vunpack.c.l.b16 %v4524
    %v4564 = vunpack.c.l.b16 %v4525
    %v4565 = vunpack.c.l.b16 %v4526
    %v4566 = vunpack.c.l.b16 %v4527
    %v4567 = vunpack.c.l.b16 %v4528
    %v4568 = vunpack.c.l.b16 %v4529
    %v4569 = vunpack.c.l.b16 %v4530
    %v4570 = vunpack.c.l.b16 %v4531
    %v4571 = vunpack.c.l.b16 %v4532
    %v4572 = vunpack.c.l.b16 %v4533
    %v4573 = vunpack.c.l.b16 %v4534
    %v4574 = vunpack.c.l.b16 %v4535
    %v4575 = vunpack.c.l.b16 %v4536
    %v4576 = vpack.c.b16 %v4561, %v4560
    %v4577 = vpack.c.b16 %v4563, %v4562
    %v4578 = vpack.c.b16 %v4565, %v4564
    %v4579 = vpack.c.b16 %v4567, %v4566
    %v4580 = vpack.c.b16 %v4569, %v4568
    %v4581 = vpack.c.b16 %v4571, %v4570
    %v4582 = vpack.c.b16 %v4573, %v4572
    %v4583 = vpack.c.b16 %v4575, %v4574
    %4592 = vmatprep.subr.bf16.mxu0 0
    %4593 = vmatpush1.bf16.msra.mxu0 %v4583
    %4594 = vmatprep.subr.bf16.mxu0 0
    %4595 = vmatpush1.bf16.msra.mxu0 %v4582
    %4596 = vmatprep.subr.bf16.mxu0 0
    %4597 = vmatpush1.bf16.msra.mxu0 %v4581
    %4598 = vmatprep.subr.bf16.mxu0 0
    %4599 = vmatpush1.bf16.msra.mxu0 %v4580
    %4600 = vmatprep.subr.bf16.mxu0 0
    %4601 = vmatpush1.bf16.msra.mxu0 %v4579
    %4602 = vmatprep.subr.bf16.mxu0 0
    %4603 = vmatpush1.bf16.msra.mxu0 %v4578
    %4604 = vmatprep.subr.bf16.mxu0 0
    %4605 = vmatpush1.bf16.msra.mxu0 %v4577
    %4606 = vmatprep.subr.bf16.mxu0 0
    %4607 = vmatpush1.bf16.msra.mxu0 %v4576
    %4608 = vmatprep.subr.bf16.mxu0 0
    %4609 = vmatpush2.bf16.msra.mxu0 0
    %4610 = vmatprep.subr.bf16.mxu0 0
    %4611 = vmatpush2.bf16.msra.mxu0 0
    %4612 = vmatprep.subr.bf16.mxu0 0
    %4613 = vmatpush2.bf16.msra.mxu0 0
    %4614 = vmatprep.subr.bf16.mxu0 0
    %4615 = vmatpush2.bf16.msra.mxu0 0
    %4616 = vmatprep.subr.bf16.mxu0 0
    %4617 = vmatpush2.bf16.msra.mxu0 0
    %4618 = vmatprep.subr.bf16.mxu0 0
    %4619 = vmatpush2.bf16.msra.mxu0 0
    %4620 = vmatprep.subr.bf16.mxu0 0
    %4621 = vmatpush2.bf16.msra.mxu0 0
    %4622 = vmatprep.subr.bf16.mxu0 0
    %4623 = vmatpush2.bf16.msra.mxu0 0
    %4624 = vmatprep.mubr.bf16.mxu0 0
    %4625 = vmatmul.mubr.bf16.gmra.mxu0 %v4514
    %v4626 = vpop.f32.mrf.mxu0
    %v4627 = vadd.f32 %v4542, %v4626
    %v4628 = vpop.f32.mrf.mxu0
    %v4629 = vpop.f32.mrf.mxu0
    %v4630 = vadd.f32 %v4542, %v4629
    %v4631 = vpop.f32.mrf.mxu0
    %4632 = vmatprep.mubr.bf16.mxu0 0
    %4633 = vmatmul.mubr.bf16.gmra.mxu0 %v4515
    %v4634 = vpop.f32.mrf.mxu0
    %v4635 = vadd.f32 %v4542, %v4634
    %v4636 = vpop.f32.mrf.mxu0
    %v4637 = vpop.f32.mrf.mxu0
    %v4638 = vadd.f32 %v4542, %v4637
    %v4639 = vpop.f32.mrf.mxu0
    %4640 = vmatprep.mubr.bf16.mxu0 0
    %4641 = vmatmul.mubr.bf16.gmra.mxu0 %v4516
    %v4642 = vpop.f32.mrf.mxu0
    %v4643 = vadd.f32 %v4542, %v4642
    %v4644 = vpop.f32.mrf.mxu0
    %v4645 = vpop.f32.mrf.mxu0
    %v4646 = vadd.f32 %v4542, %v4645
    %v4647 = vpop.f32.mrf.mxu0
    %4648 = vdwg.mxu0
    %4649 = vst [vmem:[%s14] sm:$0xff] %v4627
    %4650 = vst [vmem:[%s14 + $0x8] sm:$0xff] %v4630
    %4651 = vst [vmem:[%s14 + $0x10] sm:$0xff] %v4635
    %4652 = vst [vmem:[%s14 + $0x18] sm:$0xff] %v4638
    %4653 = vst [vmem:[%s14 + $0x20] sm:$0xff] %v4643
    %4654 = vst [vmem:[%s14 + $0x28] sm:$0xff] %v4646
    // Predicated region
    $region100: #{vae_forward.1} parent=1 // pred_check
      _
    $region101: #{vae_forward.1} parent=1 // pred_check_branch
      %4656 = sbr.rel (0) target = $region103
    $region102: #{vae_forward.1} parent=1 // pred_region
      _
    $region103: #{vae_forward.1} parent=1 // pred_fallthru
      _
    // Predicated region
    $region104: #{vae_forward.1} parent=1 // pred_check
      _
    $region105: #{vae_forward.1} parent=1 // pred_check_branch
      %4658 = sbr.rel (0) target = $region107
    $region106: #{vae_forward.1} parent=1 // pred_region
      _
    $region107: #{vae_forward.1} parent=1 // pred_fallthru
      _
    // Predicated region
    $region108: #{vae_forward.1} parent=1 // pred_check
      _
    $region109: #{vae_forward.1} parent=1 // pred_check_branch
      %4660 = sbr.rel (0) target = $region111
    $region110: #{vae_forward.1} parent=1 // pred_region
      _
    $region111: #{vae_forward.1} parent=1 // pred_fallthru
      _
    // Predicated region
    $region112: #{vae_forward.1} parent=1 // pred_check
      _
    $region113: #{vae_forward.1} parent=1 // pred_check_branch
      %4662 = sbr.rel (0) target = $region115
    $region114: #{vae_forward.1} parent=1 // pred_region
      _
    $region115: #{vae_forward.1} parent=1 // pred_fallthru
      _
    %4663 = vsyncpa [#allocation7], 1
    %4664 = vsyncpa [#allocation9], 1
  %4665 = vsyncmov [#allocation5]
  %s4666 = vpop.sfrf %4665
  %p4667 = scmp.eq.s32.totalorder %s4666, 0
  %p4668 = pneg %p4667
  %4670 = shalt.err (%p4668)
  %s4671 = scalar_lea.sflag [#allocation5], 1
  %4672 = vsyncmov %s4671
  %s4673 = vpop.sfrf %4672
  %p4674 = scmp.eq.s32.totalorder %s4673, 0
  %p4675 = pneg %p4674
  %4677 = shalt.err (%p4675)
  %s4678 = scalar_lea.sflag [#allocation5], 2
  %4679 = vsyncmov %s4678
  %s4680 = vpop.sfrf %4679
  %p4681 = scmp.eq.s32.totalorder %s4680, 0
  %p4682 = pneg %p4681
  %4684 = shalt.err (%p4682)

</llo_original>
